<compile_context>
chip_gen: v5e
topology: v5e:2x2
jax: 0.10.0
libtpu: 0.0.40
codegen_flags: <defaults>
</compile_context>

<pallas_src>
import functools

import jax
import jax.numpy as jnp
from jax.experimental import pallas as pl
from jax.experimental.pallas import tpu as pltpu


# ----------------------------------------------------------------------------
# Fused ResidualConvUnit kernel (one batch image per grid step)
# ----------------------------------------------------------------------------
def _rcu_kernel(x_ref, w1_ref, b1_ref, w2_ref, b2_ref, o_ref,
                xpad_ref, hpad_ref, *, H, W, C):
    # x_ref    : (1, H, W, C)    f32   un-padded NHWC input image
    # w*_ref   : (9*C, C)        bf16  tap-major packed weights ((kh,kw,Cin) x Cout)
    # b*_ref   : (1, C)          f32   biases
    # o_ref    : (1, H, W, C)    f32   output image
    # xpad_ref : (H+2, W+2, C)   bf16  VMEM scratch: zero-padded relu(x)
    # hpad_ref : (H+2, W+2, C)   bf16  VMEM scratch: zero-padded relu(conv1(..)+b1)
    bf16 = jnp.bfloat16

    # ---- zero only the 1-wide halo ring of both scratches (cheap, per step; the
    #      interior is fully overwritten below, so no stale data can leak in).
    zrow = jnp.zeros((1, W + 2, C), bf16)
    zcol = jnp.zeros((H + 2, 1, C), bf16)
    for ref in (xpad_ref, hpad_ref):
        ref[0:1, :, :] = zrow
        ref[H + 1:H + 2, :, :] = zrow
        ref[:, 0:1, :] = zcol
        ref[:, W + 1:W + 2, :] = zcol

    x = x_ref[0]                                              # (H, W, C) f32 (residual)

    # prologue ReLU -> bf16 MXU operand, written into the padded scratch interior
    xpad_ref[1:H + 1, 1:W + 1, :] = jnp.maximum(x, 0.0).astype(bf16)

    def conv3x3(pad_ref, w_ref):
        p = pad_ref[...]                                      # (H+2, W+2, C) bf16
        # 3 sublane-shifted planes (dj); the 9 taps are then leading-axis views (di).
        planes = [p[:, dj:dj + W, :] for dj in range(3)]      # (H+2, W, C) each
        cols = [planes[dj][di:di + H] for di in range(3) for dj in range(3)]
        big = jnp.concatenate(cols, axis=-1)                  # (H, W, 9C) bf16
        # single wide-K MXU dot: (H*W, 9C) x (9C, C) -> f32 accumulate
        return jnp.dot(big.reshape(H * W, 9 * C), w_ref[...],
                       preferred_element_type=jnp.float32)    # (H*W, C) f32

    # ---- conv1 + bias + mid ReLU (stays VMEM-resident in the second scratch) ----
    h = jnp.maximum(conv3x3(xpad_ref, w1_ref) + b1_ref[...], 0.0)
    hpad_ref[1:H + 1, 1:W + 1, :] = h.reshape(H, W, C).astype(bf16)

    # ---- conv2 + bias + residual add (residual is the exact f32 input) ----------
    y = conv3x3(hpad_ref, w2_ref) + b2_ref[...] + x.reshape(H * W, C)
    o_ref[...] = y.reshape(1, H, W, C).astype(o_ref.dtype)


def residual_conv_unit(x_nchw, conv1_w, conv1_b, conv2_w, conv2_b):
    """ResidualConvUnit forward (PyTorch semantics, bn=False, activation=ReLU).

    x_nchw : (B, C, H, W) float32
    conv*_w: (C, C, 3, 3) float32 (PyTorch Conv2d weight layout: Cout, Cin, kh, kw)
    conv*_b: (C,)         float32
    returns: (B, C, H, W) float32
    """
    B, C, H, W = x_nchw.shape
    # kernel assumes: 3x3, stride 1, padding 1, Cin == Cout, bn=False
    assert conv1_w.shape == (C, C, 3, 3), conv1_w.shape
    assert conv2_w.shape == (C, C, 3, 3), conv2_w.shape
    assert conv1_b.shape == (C,) and conv2_b.shape == (C,)

    # NHWC at the kernel boundary (channels on lanes); single transpose each way.
    x = jnp.transpose(x_nchw, (0, 2, 3, 1)).astype(jnp.float32)

    # tap-major packed weights (9*Cin, Cout) in bf16 for the wide-K implicit GEMM
    def pack(w):
        return jnp.transpose(w, (2, 3, 1, 0)).reshape(9 * C, C).astype(jnp.bfloat16)

    w1_t, w2_t = pack(conv1_w), pack(conv2_w)
    b1_r = conv1_b.astype(jnp.float32).reshape(1, C)
    b2_r = conv2_b.astype(jnp.float32).reshape(1, C)

    # VMEM budget: double-buffered in/out blocks + weights + bf16 scratches + temps,
    # clamped under the physical per-TensorCore capacity with headroom.
    blk_io = H * W * C * 4                        # one f32 image block
    wbytes = 9 * C * C * 2                        # one bf16 packed weight
    scratch = 2 * (H + 2) * (W + 2) * C * 2       # two bf16 padded scratches
    temps = H * W * 9 * C * 2 + 3 * H * W * C * 4 # wide-K operand + f32 temporaries
    est = 2 * 2 * blk_io + 2 * 2 * wbytes + scratch + temps
    try:
        vmem_cap = int(pltpu.get_tpu_info().vmem_capacity_bytes)
    except Exception:
        vmem_cap = 64 * 1024 * 1024
    vmem_limit = int(min(max(2 * est, 32 * 1024 * 1024), vmem_cap - 8 * 1024 * 1024))

    flops = int(B * 2 * (2 * 9 * H * W * C * C))
    bytes_accessed = int(2 * B * blk_io + 2 * wbytes + 2 * C * 4)
    cost = pl.CostEstimate(flops=flops, transcendentals=0,
                           bytes_accessed=bytes_accessed)

    out_nhwc = pl.pallas_call(
        functools.partial(_rcu_kernel, H=H, W=W, C=C),
        out_shape=jax.ShapeDtypeStruct((B, H, W, C), jnp.float32),
        grid_spec=pltpu.PrefetchScalarGridSpec(
            num_scalar_prefetch=0,
            grid=(B,),
            in_specs=[
                pl.BlockSpec((1, H, W, C), lambda b: (b, 0, 0, 0)),
                pl.BlockSpec((9 * C, C), lambda b: (0, 0)),
                pl.BlockSpec((1, C), lambda b: (0, 0)),
                pl.BlockSpec((9 * C, C), lambda b: (0, 0)),
                pl.BlockSpec((1, C), lambda b: (0, 0)),
            ],
            out_specs=pl.BlockSpec((1, H, W, C), lambda b: (b, 0, 0, 0)),
            scratch_shapes=[
                pltpu.VMEM((H + 2, W + 2, C), jnp.bfloat16),
                pltpu.VMEM((H + 2, W + 2, C), jnp.bfloat16),
            ],
        ),
        compiler_params=pltpu.CompilerParams(
            dimension_semantics=("parallel",),
            vmem_limit_bytes=vmem_limit),
        cost_estimate=cost,
    )(x, w1_t, b1_r, w2_t, b2_r)

    return jnp.transpose(out_nhwc, (0, 3, 1, 2))


# ----------------------------------------------------------------------------
# Pure-JAX reference (for correctness check)
# ----------------------------------------------------------------------------
def rcu_reference(x_nchw, w1, b1, w2, b2):
    x = jnp.transpose(x_nchw, (0, 2, 3, 1))

    def conv(v, w, b):
        wk = jnp.transpose(w, (2, 3, 1, 0))  # (kh, kw, Cin, Cout)
        y = jax.lax.conv_general_dilated(
            v, wk, window_strides=(1, 1), padding=((1, 1), (1, 1)),
            dimension_numbers=('NHWC', 'HWIO', 'NHWC'))
        return y + b

    out = conv(jnp.maximum(x, 0.0), w1, b1)
    out = jnp.maximum(out, 0.0)
    out = conv(out, w2, b2)
    out = out + x
    return jnp.transpose(out, (0, 3, 1, 2))


# ----------------------------------------------------------------------------
# Main
# ----------------------------------------------------------------------------
if __name__ == "__main__":
    B, C, H, W = 2, 128, 16, 16   # features=128 (lane-dense), small spatial / batch

    key = jax.random.PRNGKey(0)
    k1, k2, k3, k4, k5 = jax.random.split(key, 5)
    x = jax.random.normal(k1, (B, C, H, W), jnp.float32)
    conv1_w = jax.random.normal(k2, (C, C, 3, 3), jnp.float32) * 0.05
    conv1_b = jax.random.normal(k3, (C,), jnp.float32) * 0.05
    conv2_w = jax.random.normal(k4, (C, C, 3, 3), jnp.float32) * 0.05
    conv2_b = jax.random.normal(k5, (C,), jnp.float32) * 0.05

    out = residual_conv_unit(x, conv1_w, conv1_b, conv2_w, conv2_b)
    out = jax.block_until_ready(out)

    assert out.shape == (B, C, H, W), out.shape
    assert out.dtype == jnp.float32
    assert bool(jnp.all(jnp.isfinite(out)))

    ref = rcu_reference(x, conv1_w, conv1_b, conv2_w, conv2_b)
    max_err = float(jnp.max(jnp.abs(out - ref)))
    assert max_err < 0.1, f"max abs err vs reference: {max_err}"

    print("KERNEL_OK")
</pallas_src>

<mosaic_0001>
module attributes {stable_mosaic.version = 11 : i64} {
  func.func @_rcu_kernel(%arg0: i32, %arg1: memref<1x16x16x128xf32, #tpu.memory_space<vmem>>, %arg2: memref<1152x128xbf16, #tpu.memory_space<vmem>>, %arg3: memref<1x128xf32, #tpu.memory_space<vmem>>, %arg4: memref<1152x128xbf16, #tpu.memory_space<vmem>>, %arg5: memref<1x128xf32, #tpu.memory_space<vmem>>, %arg6: memref<1x16x16x128xf32, #tpu.memory_space<vmem>>, %arg7: memref<18x18x128xbf16, #tpu.memory_space<vmem>>, %arg8: memref<18x18x128xbf16, #tpu.memory_space<vmem>>) attributes {dimension_semantics = [#tpu.dimension_semantics<parallel>], iteration_bounds = array<i64: 2>, scalar_prefetch = 0 : i64, scratch_operands = 2 : i64, tpu.core_type = #tpu.core_type<tc>, window_params = [{transform_indices = @transform_0, window_bounds = array<i64: 1, 16, 16, 128>}, {pipeline_mode = #tpu.pipeline_mode<synchronous>, transform_indices = @transform_1, window_bounds = array<i64: 1152, 128>}, {pipeline_mode = #tpu.pipeline_mode<synchronous>, transform_indices = @transform_2, window_bounds = array<i64: 1, 128>}, {pipeline_mode = #tpu.pipeline_mode<synchronous>, transform_indices = @transform_3, window_bounds = array<i64: 1152, 128>}, {pipeline_mode = #tpu.pipeline_mode<synchronous>, transform_indices = @transform_4, window_bounds = array<i64: 1, 128>}, {transform_indices = @transform_5, window_bounds = array<i64: 1, 16, 16, 128>}]} {
    %cst = arith.constant 0.000000e+00 : bf16
    %0 = vector.broadcast %cst : bf16 to vector<1x18x128xbf16>
    %cst_0 = arith.constant 0.000000e+00 : bf16
    %1 = vector.broadcast %cst_0 : bf16 to vector<18x1x128xbf16>
    %c0 = arith.constant 0 : index
    %c0_1 = arith.constant 0 : index
    %c0_2 = arith.constant 0 : index
    %2 = vector.load %arg7[%c0, %c0_1, %c0_2] : memref<18x18x128xbf16, #tpu.memory_space<vmem>>, vector<1x18x128xbf16>
    tpu.vector_store %arg7[%c0, %c0_1, %c0_2], %0 {strides = array<i32>} : memref<18x18x128xbf16, #tpu.memory_space<vmem>>, vector<1x18x128xbf16>,
    %c17 = arith.constant 17 : index
    %c0_3 = arith.constant 0 : index
    %c0_4 = arith.constant 0 : index
    %3 = vector.load %arg7[%c17, %c0_3, %c0_4] : memref<18x18x128xbf16, #tpu.memory_space<vmem>>, vector<1x18x128xbf16>
    tpu.vector_store %arg7[%c17, %c0_3, %c0_4], %0 {strides = array<i32>} : memref<18x18x128xbf16, #tpu.memory_space<vmem>>, vector<1x18x128xbf16>,
    %c0_5 = arith.constant 0 : index
    %c0_6 = arith.constant 0 : index
    %c0_7 = arith.constant 0 : index
    %4 = vector.load %arg7[%c0_5, %c0_6, %c0_7] : memref<18x18x128xbf16, #tpu.memory_space<vmem>>, vector<18x1x128xbf16>
    tpu.vector_store %arg7[%c0_5, %c0_6, %c0_7], %1 {strides = array<i32>} : memref<18x18x128xbf16, #tpu.memory_space<vmem>>, vector<18x1x128xbf16>,
    %c0_8 = arith.constant 0 : index
    %c17_9 = arith.constant 17 : index
    %c0_10 = arith.constant 0 : index
    %5 = vector.load %arg7[%c0_8, %c17_9, %c0_10] : memref<18x18x128xbf16, #tpu.memory_space<vmem>>, vector<18x1x128xbf16>
    tpu.vector_store %arg7[%c0_8, %c17_9, %c0_10], %1 {strides = array<i32>} : memref<18x18x128xbf16, #tpu.memory_space<vmem>>, vector<18x1x128xbf16>,
    %c0_11 = arith.constant 0 : index
    %c0_12 = arith.constant 0 : index
    %c0_13 = arith.constant 0 : index
    %6 = vector.load %arg8[%c0_11, %c0_12, %c0_13] : memref<18x18x128xbf16, #tpu.memory_space<vmem>>, vector<1x18x128xbf16>
    tpu.vector_store %arg8[%c0_11, %c0_12, %c0_13], %0 {strides = array<i32>} : memref<18x18x128xbf16, #tpu.memory_space<vmem>>, vector<1x18x128xbf16>,
    %c17_14 = arith.constant 17 : index
    %c0_15 = arith.constant 0 : index
    %c0_16 = arith.constant 0 : index
    %7 = vector.load %arg8[%c17_14, %c0_15, %c0_16] : memref<18x18x128xbf16, #tpu.memory_space<vmem>>, vector<1x18x128xbf16>
    tpu.vector_store %arg8[%c17_14, %c0_15, %c0_16], %0 {strides = array<i32>} : memref<18x18x128xbf16, #tpu.memory_space<vmem>>, vector<1x18x128xbf16>,
    %c0_17 = arith.constant 0 : index
    %c0_18 = arith.constant 0 : index
    %c0_19 = arith.constant 0 : index
    %8 = vector.load %arg8[%c0_17, %c0_18, %c0_19] : memref<18x18x128xbf16, #tpu.memory_space<vmem>>, vector<18x1x128xbf16>
    tpu.vector_store %arg8[%c0_17, %c0_18, %c0_19], %1 {strides = array<i32>} : memref<18x18x128xbf16, #tpu.memory_space<vmem>>, vector<18x1x128xbf16>,
    %c0_20 = arith.constant 0 : index
    %c17_21 = arith.constant 17 : index
    %c0_22 = arith.constant 0 : index
    %9 = vector.load %arg8[%c0_20, %c17_21, %c0_22] : memref<18x18x128xbf16, #tpu.memory_space<vmem>>, vector<18x1x128xbf16>
    tpu.vector_store %arg8[%c0_20, %c17_21, %c0_22], %1 {strides = array<i32>} : memref<18x18x128xbf16, #tpu.memory_space<vmem>>, vector<18x1x128xbf16>,
    %c0_23 = arith.constant 0 : index
    %c0_24 = arith.constant 0 : index
    %c0_25 = arith.constant 0 : index
    %c0_26 = arith.constant 0 : index
    %10 = vector.load %arg1[%c0_23, %c0_24, %c0_25, %c0_26] : memref<1x16x16x128xf32, #tpu.memory_space<vmem>>, vector<1x16x16x128xf32>
    %11 = vector.shape_cast %10 : vector<1x16x16x128xf32> to vector<16x16x128xf32>
    %cst_27 = arith.constant 0.000000e+00 : f32
    %12 = vector.broadcast %cst_27 : f32 to vector<16x16x128xf32>
    %13 = arith.maximumf %11, %12 : vector<16x16x128xf32>
    %14 = arith.truncf %13 : vector<16x16x128xf32> to vector<16x16x128xbf16>
    %c1 = arith.constant 1 : index
    %c1_28 = arith.constant 1 : index
    %c0_29 = arith.constant 0 : index
    %15 = vector.load %arg7[%c1, %c1_28, %c0_29] : memref<18x18x128xbf16, #tpu.memory_space<vmem>>, vector<16x16x128xbf16>
    tpu.vector_store %arg7[%c1, %c1_28, %c0_29], %14 {strides = array<i32>} : memref<18x18x128xbf16, #tpu.memory_space<vmem>>, vector<16x16x128xbf16>,
    %c0_30 = arith.constant 0 : index
    %c0_31 = arith.constant 0 : index
    %c0_32 = arith.constant 0 : index
    %16 = vector.load %arg7[%c0_30, %c0_31, %c0_32] : memref<18x18x128xbf16, #tpu.memory_space<vmem>>, vector<18x18x128xbf16>
    %17 = vector.extract_strided_slice %16 {offsets = [0, 0, 0], sizes = [18, 16, 128], strides = [1, 1, 1]} : vector<18x18x128xbf16> to vector<18x16x128xbf16>
    %18 = vector.extract_strided_slice %16 {offsets = [0, 1, 0], sizes = [18, 16, 128], strides = [1, 1, 1]} : vector<18x18x128xbf16> to vector<18x16x128xbf16>
    %19 = vector.extract_strided_slice %16 {offsets = [0, 2, 0], sizes = [18, 16, 128], strides = [1, 1, 1]} : vector<18x18x128xbf16> to vector<18x16x128xbf16>
    %20 = vector.extract_strided_slice %17 {offsets = [0, 0, 0], sizes = [16, 16, 128], strides = [1, 1, 1]} : vector<18x16x128xbf16> to vector<16x16x128xbf16>
    %21 = vector.extract_strided_slice %18 {offsets = [0, 0, 0], sizes = [16, 16, 128], strides = [1, 1, 1]} : vector<18x16x128xbf16> to vector<16x16x128xbf16>
    %22 = vector.extract_strided_slice %19 {offsets = [0, 0, 0], sizes = [16, 16, 128], strides = [1, 1, 1]} : vector<18x16x128xbf16> to vector<16x16x128xbf16>
    %23 = vector.extract_strided_slice %17 {offsets = [1, 0, 0], sizes = [16, 16, 128], strides = [1, 1, 1]} : vector<18x16x128xbf16> to vector<16x16x128xbf16>
    %24 = vector.extract_strided_slice %18 {offsets = [1, 0, 0], sizes = [16, 16, 128], strides = [1, 1, 1]} : vector<18x16x128xbf16> to vector<16x16x128xbf16>
    %25 = vector.extract_strided_slice %19 {offsets = [1, 0, 0], sizes = [16, 16, 128], strides = [1, 1, 1]} : vector<18x16x128xbf16> to vector<16x16x128xbf16>
    %26 = vector.extract_strided_slice %17 {offsets = [2, 0, 0], sizes = [16, 16, 128], strides = [1, 1, 1]} : vector<18x16x128xbf16> to vector<16x16x128xbf16>
    %27 = vector.extract_strided_slice %18 {offsets = [2, 0, 0], sizes = [16, 16, 128], strides = [1, 1, 1]} : vector<18x16x128xbf16> to vector<16x16x128xbf16>
    %28 = vector.extract_strided_slice %19 {offsets = [2, 0, 0], sizes = [16, 16, 128], strides = [1, 1, 1]} : vector<18x16x128xbf16> to vector<16x16x128xbf16>
    %29 = tpu.concatenate %20, %21, %22, %23, %24, %25, %26, %27, %28 in 2 : vector<16x16x128xbf16>, vector<16x16x128xbf16>, vector<16x16x128xbf16>, vector<16x16x128xbf16>, vector<16x16x128xbf16>, vector<16x16x128xbf16>, vector<16x16x128xbf16>, vector<16x16x128xbf16>, vector<16x16x128xbf16> -> vector<16x16x1152xbf16>
    %30 = vector.shape_cast %29 : vector<16x16x1152xbf16> to vector<256x1152xbf16>
    %c0_33 = arith.constant 0 : index
    %c0_34 = arith.constant 0 : index
    %31 = vector.load %arg2[%c0_33, %c0_34] : memref<1152x128xbf16, #tpu.memory_space<vmem>>, vector<1152x128xbf16>
    %cst_35 = arith.constant dense<0.000000e+00> : vector<256x128xf32>
    %32 = tpu.matmul %30, %31, %cst_35 {dimension_numbers = #tpu.dot_dimension_numbers<[1], [0], [0], [1], [0, 0, 1, 1], [], []>} : vector<256x1152xbf16>, vector<1152x128xbf16>, vector<256x128xf32> -> vector<256x128xf32>
    %c0_36 = arith.constant 0 : index
    %c0_37 = arith.constant 0 : index
    %33 = vector.load %arg3[%c0_36, %c0_37] : memref<1x128xf32, #tpu.memory_space<vmem>>, vector<1x128xf32>
    %34 = vector.broadcast %33 : vector<1x128xf32> to vector<256x128xf32>
    %35 = arith.addf %32, %34 : vector<256x128xf32>
    %cst_38 = arith.constant 0.000000e+00 : f32
    %36 = vector.broadcast %cst_38 : f32 to vector<256x128xf32>
    %37 = arith.maximumf %35, %36 : vector<256x128xf32>
    %38 = vector.shape_cast %37 : vector<256x128xf32> to vector<16x16x128xf32>
    %39 = arith.truncf %38 : vector<16x16x128xf32> to vector<16x16x128xbf16>
    %c1_39 = arith.constant 1 : index
    %c1_40 = arith.constant 1 : index
    %c0_41 = arith.constant 0 : index
    %40 = vector.load %arg8[%c1_39, %c1_40, %c0_41] : memref<18x18x128xbf16, #tpu.memory_space<vmem>>, vector<16x16x128xbf16>
    tpu.vector_store %arg8[%c1_39, %c1_40, %c0_41], %39 {strides = array<i32>} : memref<18x18x128xbf16, #tpu.memory_space<vmem>>, vector<16x16x128xbf16>,
    %c0_42 = arith.constant 0 : index
    %c0_43 = arith.constant 0 : index
    %c0_44 = arith.constant 0 : index
    %41 = vector.load %arg8[%c0_42, %c0_43, %c0_44] : memref<18x18x128xbf16, #tpu.memory_space<vmem>>, vector<18x18x128xbf16>
    %42 = vector.extract_strided_slice %41 {offsets = [0, 0, 0], sizes = [18, 16, 128], strides = [1, 1, 1]} : vector<18x18x128xbf16> to vector<18x16x128xbf16>
    %43 = vector.extract_strided_slice %41 {offsets = [0, 1, 0], sizes = [18, 16, 128], strides = [1, 1, 1]} : vector<18x18x128xbf16> to vector<18x16x128xbf16>
    %44 = vector.extract_strided_slice %41 {offsets = [0, 2, 0], sizes = [18, 16, 128], strides = [1, 1, 1]} : vector<18x18x128xbf16> to vector<18x16x128xbf16>
    %45 = vector.extract_strided_slice %42 {offsets = [0, 0, 0], sizes = [16, 16, 128], strides = [1, 1, 1]} : vector<18x16x128xbf16> to vector<16x16x128xbf16>
    %46 = vector.extract_strided_slice %43 {offsets = [0, 0, 0], sizes = [16, 16, 128], strides = [1, 1, 1]} : vector<18x16x128xbf16> to vector<16x16x128xbf16>
    %47 = vector.extract_strided_slice %44 {offsets = [0, 0, 0], sizes = [16, 16, 128], strides = [1, 1, 1]} : vector<18x16x128xbf16> to vector<16x16x128xbf16>
    %48 = vector.extract_strided_slice %42 {offsets = [1, 0, 0], sizes = [16, 16, 128], strides = [1, 1, 1]} : vector<18x16x128xbf16> to vector<16x16x128xbf16>
    %49 = vector.extract_strided_slice %43 {offsets = [1, 0, 0], sizes = [16, 16, 128], strides = [1, 1, 1]} : vector<18x16x128xbf16> to vector<16x16x128xbf16>
    %50 = vector.extract_strided_slice %44 {offsets = [1, 0, 0], sizes = [16, 16, 128], strides = [1, 1, 1]} : vector<18x16x128xbf16> to vector<16x16x128xbf16>
    %51 = vector.extract_strided_slice %42 {offsets = [2, 0, 0], sizes = [16, 16, 128], strides = [1, 1, 1]} : vector<18x16x128xbf16> to vector<16x16x128xbf16>
    %52 = vector.extract_strided_slice %43 {offsets = [2, 0, 0], sizes = [16, 16, 128], strides = [1, 1, 1]} : vector<18x16x128xbf16> to vector<16x16x128xbf16>
    %53 = vector.extract_strided_slice %44 {offsets = [2, 0, 0], sizes = [16, 16, 128], strides = [1, 1, 1]} : vector<18x16x128xbf16> to vector<16x16x128xbf16>
    %54 = tpu.concatenate %45, %46, %47, %48, %49, %50, %51, %52, %53 in 2 : vector<16x16x128xbf16>, vector<16x16x128xbf16>, vector<16x16x128xbf16>, vector<16x16x128xbf16>, vector<16x16x128xbf16>, vector<16x16x128xbf16>, vector<16x16x128xbf16>, vector<16x16x128xbf16>, vector<16x16x128xbf16> -> vector<16x16x1152xbf16>
    %55 = vector.shape_cast %54 : vector<16x16x1152xbf16> to vector<256x1152xbf16>
    %c0_45 = arith.constant 0 : index
    %c0_46 = arith.constant 0 : index
    %56 = vector.load %arg4[%c0_45, %c0_46] : memref<1152x128xbf16, #tpu.memory_space<vmem>>, vector<1152x128xbf16>
    %cst_47 = arith.constant dense<0.000000e+00> : vector<256x128xf32>
    %57 = tpu.matmul %55, %56, %cst_47 {dimension_numbers = #tpu.dot_dimension_numbers<[1], [0], [0], [1], [0, 0, 1, 1], [], []>} : vector<256x1152xbf16>, vector<1152x128xbf16>, vector<256x128xf32> -> vector<256x128xf32>
    %c0_48 = arith.constant 0 : index
    %c0_49 = arith.constant 0 : index
    %58 = vector.load %arg5[%c0_48, %c0_49] : memref<1x128xf32, #tpu.memory_space<vmem>>, vector<1x128xf32>
    %59 = vector.broadcast %58 : vector<1x128xf32> to vector<256x128xf32>
    %60 = arith.addf %57, %59 : vector<256x128xf32>
    %61 = vector.shape_cast %11 : vector<16x16x128xf32> to vector<256x128xf32>
    %62 = arith.addf %60, %61 : vector<256x128xf32>
    %63 = vector.shape_cast %62 : vector<256x128xf32> to vector<1x16x16x128xf32>
    %c0_50 = arith.constant 0 : index
    %c0_51 = arith.constant 0 : index
    %c0_52 = arith.constant 0 : index
    %c0_53 = arith.constant 0 : index
    %64 = vector.load %arg6[%c0_50, %c0_51, %c0_52, %c0_53] : memref<1x16x16x128xf32, #tpu.memory_space<vmem>>, vector<1x16x16x128xf32>
    tpu.vector_store %arg6[%c0_50, %c0_51, %c0_52, %c0_53], %63 {strides = array<i32>} : memref<1x16x16x128xf32, #tpu.memory_space<vmem>>, vector<1x16x16x128xf32>,
    return
  }
  func.func @transform_0(%arg0: i32) -> (i32, i32, i32, i32) {
    %c0_i32 = arith.constant 0 : i32
    %c0_i32_0 = arith.constant 0 : i32
    %c0_i32_1 = arith.constant 0 : i32
    %c0_i32_2 = arith.constant 0 : i32
    return %arg0, %c0_i32, %c0_i32_0, %c0_i32_1 : i32, i32, i32, i32
  }
  func.func @transform_1(%arg0: i32) -> (i32, i32) {
    %c0_i32 = arith.constant 0 : i32
    %c0_i32_0 = arith.constant 0 : i32
    %c0_i32_1 = arith.constant 0 : i32
    return %c0_i32, %c0_i32_0 : i32, i32
  }
  func.func @transform_2(%arg0: i32) -> (i32, i32) {
    %c0_i32 = arith.constant 0 : i32
    %c0_i32_0 = arith.constant 0 : i32
    %c0_i32_1 = arith.constant 0 : i32
    return %c0_i32, %c0_i32_0 : i32, i32
  }
  func.func @transform_3(%arg0: i32) -> (i32, i32) {
    %c0_i32 = arith.constant 0 : i32
    %c0_i32_0 = arith.constant 0 : i32
    %c0_i32_1 = arith.constant 0 : i32
    return %c0_i32, %c0_i32_0 : i32, i32
  }
  func.func @transform_4(%arg0: i32) -> (i32, i32) {
    %c0_i32 = arith.constant 0 : i32
    %c0_i32_0 = arith.constant 0 : i32
    %c0_i32_1 = arith.constant 0 : i32
    return %c0_i32, %c0_i32_0 : i32, i32
  }
  func.func @transform_5(%arg0: i32) -> (i32, i32, i32, i32) {
    %c0_i32 = arith.constant 0 : i32
    %c0_i32_0 = arith.constant 0 : i32
    %c0_i32_1 = arith.constant 0 : i32
    %c0_i32_2 = arith.constant 0 : i32
    return %arg0, %c0_i32, %c0_i32_0, %c0_i32_1 : i32, i32, i32, i32
  }
}

</mosaic_0001>

<llo_original>
// kernel: tpu_custom_call.1
$region0: #{tpu_custom_call.1}
  #allocation0 [shape = 'u32[]', space=smem, size = 0x4, offset = 0x4, fixed_abs, tag = 'smem constant byte address 0x4 - core index']
  #allocation1 [shape = 'u32[72,128]{1,0:T(1,128)}', space=vmem, size = 0x9000, scoped, tag = 'internal scratch']
  #allocation2 [shape = 'bf16[18,18,128]{2,1,0:T(8,128)(2,1)}', space=vmem, size = 0x1b000, scoped, tag = 'scratch operand']
  #allocation3 [shape = 'bf16[18,18,128]{2,1,0:T(8,128)(2,1)}', space=vmem, size = 0x1b000, scoped, tag = 'scratch operand']
  %s0 = inlined_call_operand.hbm [shape: f32[2,16,16,128], index: 0, kind: input, shape index: {}]
  %s1 = inlined_call_operand.hbm [shape: bf16[1152,128], index: 1, kind: input, shape index: {}]
  %s2 = inlined_call_operand.vmem [shape: f32[1,128], index: 2, kind: input, shape index: {}]
  %s3 = inlined_call_operand.hbm [shape: bf16[1152,128], index: 3, kind: input, shape index: {}]
  %s4 = inlined_call_operand.vmem [shape: f32[1,128], index: 4, kind: input, shape index: {}]
  %s5 = inlined_call_operand.hbm [shape: f32[2,16,16,128], index: 5, kind: output, shape index: {}]
  %s6 = sld [smem:[#allocation0]]
  $region65: #{tpu_custom_call.1} parent=0
    _
  %s8 = ssub.s32 1, %s6
  %s9 = scalar_select 0, %s8, %s6
  $region1: #{tpu_custom_call.1} parent=0
    #allocation4 [shape = 'u8[262144]{0}', space=vmem, size = 0x40000, scoped, tag = 'input window, operand 0']
    #allocation5 [shape = 's32[2]{0}', space=sflag, size = 0x8, scoped, tag = 'scoped memory for tpu_custom_call.1']
    #allocation6 [shape = 's32[2]{0}', space=sflag, size = 0x8, scoped, tag = 'scoped memory for tpu_custom_call.1']
    #allocation7 [shape = 'u8[294912]{0}', space=vmem, size = 0x48000, scoped, tag = 'input window, operand 1, single buffered']
    #allocation8 [shape = 's32[1]{0}', space=sflag, size = 0x4, scoped, tag = 'scoped memory for tpu_custom_call.1']
    #allocation9 [shape = 'u8[294912]{0}', space=vmem, size = 0x48000, scoped, tag = 'input window, operand 3, single buffered']
    #allocation10 [shape = 'u8[262144]{0}', space=vmem, size = 0x40000, scoped, tag = 'output window, operand 0']
    %10 = vsyncpa [#allocation5], 0
    %s11 = scalar_lea.sflag [#allocation5], 1
    %12 = vsyncpa %s11, 0
    %13 = vsyncpa [#allocation8], 0
    %14 = vsyncpa [#allocation6], 0
    %s15 = scalar_lea.sflag [#allocation6], 1
    %16 = vsyncpa %s15, 0
    loop: start=0, step=1, limit=4
    $region2: #{tpu_custom_call.1} parent=1 // loop_pre_header
      _
    $region3: #{tpu_custom_call.1} parent=1 // loop_header
      %s18 = sphi 0, %s22
      %p19 = scmp.ge.s32.totalorder %s18, 4
      %s28 = sphi 0, %s30
      %s31 = sphi 0, %s28
      %s32 = sphi 0, %s31
      %s48 = sphi 0, %s32
      %s52 = sphi 0, %s52
      %s54 = sphi 0, %s52
      %s55 = sphi 0, %s54
      %s69 = sphi 0, %s55
      %s73 = sphi 0, %s73
      %s75 = sphi 0, %s73
      %s76 = sphi 0, %s75
      %s90 = sphi 0, %s76
      %s94 = sphi 0, %s94
      %s96 = sphi 0, %s94
      %s97 = sphi 0, %s96
      %s111 = sphi 0, %s97
      %s115 = sphi 0, %s115
      %s117 = sphi 0, %s115
      %s118 = sphi 0, %s117
      %s132 = sphi 0, %s118
      %s138 = sphi 0, %s140
      %s141 = sphi 0, %s138
      %s142 = sphi 0, %s141
      %s158 = sphi 0, %s142
    $region4: #{tpu_custom_call.1} parent=1 // loop_header_branch
      %21 = sbr.rel (%p19) target = $region8
    $region5: #{tpu_custom_call.1} parent=1 // loop_body
      %s23 = ssub.s32 %s18, 1
      %s24 = ssub.s32 %s18, 2
      %s25 = sadd.s32 %s18, 1
      %s26 = ssub.s32 %s18, %s25
      %p27 = scmp.eq.s32.totalorder %s26, 0
      %s29 = sadd.s32 %s28, 1
      %s30 = scalar_select %p27, %s28, %s29
      %p33 = pneg %p27
      %p34 = scmp.eq.s32.totalorder %s18, 1
      %p35 = por %p33, %p34
      %p36 = scmp.ne.s32.totalorder %s28, %s31
      %p37 = scmp.eq.s32.totalorder %s18, 0
      %p38 = por %p36, %p37
      %p39 = scmp.ne.s32.totalorder %s28, %s31
      %p40 = scmp.eq.s32.totalorder %s23, 1
      %p41 = por %p39, %p40
      %p42 = scmp.ne.s32.totalorder %s31, %s32
      %p43 = scmp.eq.s32.totalorder %s23, 0
      %p44 = por %p42, %p43
      %p45 = scmp.ne.s32.totalorder %s31, %s32
      %p46 = scmp.eq.s32.totalorder %s24, 1
      %p47 = por %p45, %p46
      %p49 = scmp.ne.s32.totalorder %s32, %s48
      %p50 = scmp.eq.s32.totalorder %s24, 0
      %p51 = por %p49, %p50
      %s53 = sadd.s32 %s52, 1
      %p56 = scmp.eq.s32.totalorder %s18, 1
      %p57 = scmp.ne.s32.totalorder %s52, %s54
      %p58 = scmp.eq.s32.totalorder %s18, 0
      %p59 = por %p57, %p58
      %p60 = scmp.ne.s32.totalorder %s52, %s54
      %p61 = scmp.eq.s32.totalorder %s23, 1
      %p62 = por %p60, %p61
      %p63 = scmp.ne.s32.totalorder %s54, %s55
      %p64 = scmp.eq.s32.totalorder %s23, 0
      %p65 = por %p63, %p64
      %p66 = scmp.ne.s32.totalorder %s54, %s55
      %p67 = scmp.eq.s32.totalorder %s24, 1
      %p68 = por %p66, %p67
      %p70 = scmp.ne.s32.totalorder %s55, %s69
      %p71 = scmp.eq.s32.totalorder %s24, 0
      %p72 = por %p70, %p71
      %s74 = sadd.s32 %s73, 1
      %p77 = scmp.eq.s32.totalorder %s18, 1
      %p78 = scmp.ne.s32.totalorder %s73, %s75
      %p79 = scmp.eq.s32.totalorder %s18, 0
      %p80 = por %p78, %p79
      %p81 = scmp.ne.s32.totalorder %s73, %s75
      %p82 = scmp.eq.s32.totalorder %s23, 1
      %p83 = por %p81, %p82
      %p84 = scmp.ne.s32.totalorder %s75, %s76
      %p85 = scmp.eq.s32.totalorder %s23, 0
      %p86 = por %p84, %p85
      %p87 = scmp.ne.s32.totalorder %s75, %s76
      %p88 = scmp.eq.s32.totalorder %s24, 1
      %p89 = por %p87, %p88
      %p91 = scmp.ne.s32.totalorder %s76, %s90
      %p92 = scmp.eq.s32.totalorder %s24, 0
      %p93 = por %p91, %p92
      %s95 = sadd.s32 %s94, 1
      %p98 = scmp.eq.s32.totalorder %s18, 1
      %p99 = scmp.ne.s32.totalorder %s94, %s96
      %p100 = scmp.eq.s32.totalorder %s18, 0
      %p101 = por %p99, %p100
      %p102 = scmp.ne.s32.totalorder %s94, %s96
      %p103 = scmp.eq.s32.totalorder %s23, 1
      %p104 = por %p102, %p103
      %p105 = scmp.ne.s32.totalorder %s96, %s97
      %p106 = scmp.eq.s32.totalorder %s23, 0
      %p107 = por %p105, %p106
      %p108 = scmp.ne.s32.totalorder %s96, %s97
      %p109 = scmp.eq.s32.totalorder %s24, 1
      %p110 = por %p108, %p109
      %p112 = scmp.ne.s32.totalorder %s97, %s111
      %p113 = scmp.eq.s32.totalorder %s24, 0
      %p114 = por %p112, %p113
      %s116 = sadd.s32 %s115, 1
      %p119 = scmp.eq.s32.totalorder %s18, 1
      %p120 = scmp.ne.s32.totalorder %s115, %s117
      %p121 = scmp.eq.s32.totalorder %s18, 0
      %p122 = por %p120, %p121
      %p123 = scmp.ne.s32.totalorder %s115, %s117
      %p124 = scmp.eq.s32.totalorder %s23, 1
      %p125 = por %p123, %p124
      %p126 = scmp.ne.s32.totalorder %s117, %s118
      %p127 = scmp.eq.s32.totalorder %s23, 0
      %p128 = por %p126, %p127
      %p129 = scmp.ne.s32.totalorder %s117, %s118
      %p130 = scmp.eq.s32.totalorder %s24, 1
      %p131 = por %p129, %p130
      %p133 = scmp.ne.s32.totalorder %s118, %s132
      %p134 = scmp.eq.s32.totalorder %s24, 0
      %p135 = por %p133, %p134
      %s136 = ssub.s32 %s18, %s25
      %p137 = scmp.eq.s32.totalorder %s136, 0
      %s139 = sadd.s32 %s138, 1
      %s140 = scalar_select %p137, %s138, %s139
      %p143 = pneg %p137
      %p144 = scmp.eq.s32.totalorder %s18, 1
      %p145 = por %p143, %p144
      %p146 = scmp.ne.s32.totalorder %s138, %s141
      %p147 = scmp.eq.s32.totalorder %s18, 0
      %p148 = por %p146, %p147
      %p149 = scmp.ne.s32.totalorder %s138, %s141
      %p150 = scmp.eq.s32.totalorder %s23, 1
      %p151 = por %p149, %p150
      %p152 = scmp.ne.s32.totalorder %s141, %s142
      %p153 = scmp.eq.s32.totalorder %s23, 0
      %p154 = por %p152, %p153
      %p155 = scmp.ne.s32.totalorder %s141, %s142
      %p156 = scmp.eq.s32.totalorder %s24, 1
      %p157 = por %p155, %p156
      %p159 = scmp.ne.s32.totalorder %s142, %s158
      %p160 = scmp.eq.s32.totalorder %s24, 0
      %p161 = por %p159, %p160
      %p162 = scmp.le.s32.totalorder 1, %s18
      %p163 = scmp.lt.s32.totalorder %s18, 3
      %p164 = pnand %p162, %p163
      %p165 = pneg %p164
      // Predicated region
      $region9: #{tpu_custom_call.1} parent=5 // pred_check
        _
      $region10: #{tpu_custom_call.1} parent=5 // pred_check_branch
        %167 = sbr.rel (%p164) target = $region12
      $region11: #{tpu_custom_call.1} parent=5 // pred_region
        %s168 = ssub.s32 %s18, 1
        // Predicated region
        $region13: #{tpu_custom_call.1} parent=11 // pred_check
          %p169 = pneg %p65
        $region14: #{tpu_custom_call.1} parent=11 // pred_check_branch
          %171 = sbr.rel (%p169) target = $region16
        $region15: #{tpu_custom_call.1} parent=11 // pred_region
          %173 = vsyncadd [#allocation8], 0
          %s174 = sshll.u32 %s1, 4
          %s175 = int_to_ptr.hbm [resolvable:$true] %s174
          %s176 = sshll.u32 [#allocation7], 4
          %s177 = int_to_ptr.vmem [resolvable:$true] %s176
          %182 = dma.hbm_to_vmem [thread:$0]  %s175, 9216, %s177, [#allocation8], 64, 64, 4
        $region16: #{tpu_custom_call.1} parent=11 // pred_fallthru
          _
        // Predicated region
        $region17: #{tpu_custom_call.1} parent=11 // pred_check
          %p183 = pneg %p86
        $region18: #{tpu_custom_call.1} parent=11 // pred_check_branch
          %185 = sbr.rel (%p183) target = $region20
        $region19: #{tpu_custom_call.1} parent=11 // pred_region
          _
        $region20: #{tpu_custom_call.1} parent=11 // pred_fallthru
          _
        // Predicated region
        $region21: #{tpu_custom_call.1} parent=11 // pred_check
          %p186 = pneg %p107
        $region22: #{tpu_custom_call.1} parent=11 // pred_check_branch
          %188 = sbr.rel (%p186) target = $region24
        $region23: #{tpu_custom_call.1} parent=11 // pred_region
          %190 = vsyncadd [#allocation8], 0
          %s191 = sshll.u32 %s3, 4
          %s192 = int_to_ptr.hbm [resolvable:$true] %s191
          %s193 = sshll.u32 [#allocation9], 4
          %s194 = int_to_ptr.vmem [resolvable:$true] %s193
          %199 = dma.hbm_to_vmem [thread:$0]  %s192, 9216, %s194, [#allocation8], 64, 64, 4
        $region24: #{tpu_custom_call.1} parent=11 // pred_fallthru
          _
        // Predicated region
        $region25: #{tpu_custom_call.1} parent=11 // pred_check
          %p200 = pneg %p128
        $region26: #{tpu_custom_call.1} parent=11 // pred_check_branch
          %202 = sbr.rel (%p200) target = $region28
        $region27: #{tpu_custom_call.1} parent=11 // pred_region
          _
        $region28: #{tpu_custom_call.1} parent=11 // pred_fallthru
          _
      $region12: #{tpu_custom_call.1} parent=5 // pred_fallthru
        _
      %p203 = scmp.lt.s32.totalorder %s18, 2
      // Predicated region
      $region29: #{tpu_custom_call.1} parent=5 // pred_check
        %p204 = pneg %p203
      $region30: #{tpu_custom_call.1} parent=5 // pred_check_branch
        %206 = sbr.rel (%p204) target = $region32
      $region31: #{tpu_custom_call.1} parent=5 // pred_region
        // Predicated region
        $region33: #{tpu_custom_call.1} parent=31 // pred_check
          %p207 = pneg %p38
        $region34: #{tpu_custom_call.1} parent=31 // pred_check_branch
          %209 = sbr.rel (%p207) target = $region36
        $region35: #{tpu_custom_call.1} parent=31 // pred_region
          %s210 = sand.u32 %s28, 1
          %s211 = scalar_lea.sflag [#allocation5], %s210
          %s212 = sand.u32 %s28, 1
          %s213 = smul.addr %s212, 256
          %s214 = scalar_lea.vmem [#allocation4], %s213
          %216 = vsyncadd %s211, 0
          %s217 = smul.addr %s18, 32
          %s218 = smul.addr %s217, 8
          %s219 = scalar_lea.hbm %s0, %s218
          %s220 = sshll.u32 %s219, 4
          %s221 = int_to_ptr.hbm [resolvable:$true] %s220
          %s222 = sshll.u32 %s214, 4
          %s223 = int_to_ptr.vmem [resolvable:$true] %s222
          %228 = dma.hbm_to_vmem [thread:$0]  %s221, 4096, %s223, %s211, 128, 128, 8
        $region36: #{tpu_custom_call.1} parent=31 // pred_fallthru
          _
      $region32: #{tpu_custom_call.1} parent=5 // pred_fallthru
        _
      %p229 = scmp.le.s32.totalorder 1, %s18
      %p230 = scmp.lt.s32.totalorder %s18, 3
      %p231 = pnand %p229, %p230
      %p232 = pneg %p231
      // Predicated region
      $region37: #{tpu_custom_call.1} parent=5 // pred_check
        _
      $region38: #{tpu_custom_call.1} parent=5 // pred_check_branch
        %234 = sbr.rel (%p231) target = $region40
      $region39: #{tpu_custom_call.1} parent=5 // pred_region
        %s235 = ssub.s32 %s18, 1
        %s236 = sand.u32 %s31, 1
        %s237 = scalar_lea.sflag [#allocation5], %s236
        %s238 = sand.u32 %s31, 1
        %s239 = smul.addr %s238, 256
        %s240 = scalar_lea.vmem [#allocation4], %s239
        // Predicated region
        $region41: #{tpu_custom_call.1} parent=39 // pred_check
          %p241 = pneg %p44
        $region42: #{tpu_custom_call.1} parent=39 // pred_check_branch
          %243 = sbr.rel (%p241) target = $region44
        $region43: #{tpu_custom_call.1} parent=39 // pred_region
          %245 = dma.done %s237, 4096
        $region44: #{tpu_custom_call.1} parent=39 // pred_fallthru
          _
        // Predicated region
        $region45: #{tpu_custom_call.1} parent=39 // pred_check
          %p246 = pneg %p65
        $region46: #{tpu_custom_call.1} parent=39 // pred_check_branch
          %248 = sbr.rel (%p246) target = $region48
        $region47: #{tpu_custom_call.1} parent=39 // pred_region
          %250 = dma.done [#allocation8], 9216
        $region48: #{tpu_custom_call.1} parent=39 // pred_fallthru
          _
        // Predicated region
        $region49: #{tpu_custom_call.1} parent=39 // pred_check
          %p251 = pneg %p107
        $region50: #{tpu_custom_call.1} parent=39 // pred_check_branch
          %253 = sbr.rel (%p251) target = $region52
        $region51: #{tpu_custom_call.1} parent=39 // pred_region
          %255 = dma.done [#allocation8], 9216
        $region52: #{tpu_custom_call.1} parent=39 // pred_fallthru
          _
        %s256 = sand.u32 %s31, 1
        %s257 = scalar_lea.sflag [#allocation5], %s256
        %s258 = sand.u32 %s31, 1
        %s259 = smul.addr %s258, 256
        %s260 = scalar_lea.vmem [#allocation4], %s259
        %p261 = pneg %p44
        %p262 = pneg %p41
        %p263 = pneg %p65
        %p264 = pneg %p62
        %p265 = pneg %p86
        %p266 = pneg %p83
        %p267 = pneg %p107
        %p268 = pneg %p104
        %p269 = pneg %p128
        %p270 = pneg %p125
        %p271 = pneg %p154
        %p272 = pneg %p151
        %s273 = sand.u32 %s141, 1
        %s274 = scalar_lea.sflag [#allocation6], %s273
        %s275 = sand.u32 %s141, 1
        %s276 = smul.addr %s275, 256
        %s277 = scalar_lea.vmem [#allocation10], %s276
        %279 = vst [vmem:[#allocation2] sm:$0xf] 0
        %280 = vst [vmem:[#allocation2 + $0x4] sm:$0xf] 0
        %281 = vst [vmem:[#allocation2 + $0x8] sm:$0x1] 0
        %s282 = scalar_lea.vmem [#allocation2], 204
        %283 = vst [vmem:[%s282] sm:$0xf] 0
        %284 = vst [vmem:[%s282 + $0x4] sm:$0xf] 0
        %285 = vst [vmem:[%s282 + $0x8] sm:$0x1] 0
        %vm286 = vcmask 1040384
        %vm287 = vsmask.f32 256
        %vm288 = vmand %vm286, %vm287
        %v289 = vld [vmem:[#allocation2] sm:$0x1]
        %v290 = vsel %vm288, 0, %v289
        %291 = vst [vmem:[#allocation2] sm:$0x1] %v290
        %v292 = vld [vmem:[#allocation2 + $0xc] sm:$0x1]
        %v293 = vsel %vm288, 0, %v292
        %294 = vst [vmem:[#allocation2 + $0xc] sm:$0x1] %v293
        %v295 = vld [vmem:[#allocation2 + $0x18] sm:$0x1]
        %v296 = vsel %vm288, 0, %v295
        %297 = vst [vmem:[#allocation2 + $0x18] sm:$0x1] %v296
        %v298 = vld [vmem:[#allocation2 + $0x24] sm:$0x1]
        %v299 = vsel %vm288, 0, %v298
        %300 = vst [vmem:[#allocation2 + $0x24] sm:$0x1] %v299
        %v301 = vld [vmem:[#allocation2 + $0x30] sm:$0x1]
        %v302 = vsel %vm288, 0, %v301
        %303 = vst [vmem:[#allocation2 + $0x30] sm:$0x1] %v302
        %v304 = vld [vmem:[#allocation2 + $0x3c] sm:$0x1]
        %v305 = vsel %vm288, 0, %v304
        %306 = vst [vmem:[#allocation2 + $0x3c] sm:$0x1] %v305
        %v307 = vld [vmem:[#allocation2 + $0x48] sm:$0x1]
        %v308 = vsel %vm288, 0, %v307
        %309 = vst [vmem:[#allocation2 + $0x48] sm:$0x1] %v308
        %v310 = vld [vmem:[#allocation2 + $0x54] sm:$0x1]
        %v311 = vsel %vm288, 0, %v310
        %312 = vst [vmem:[#allocation2 + $0x54] sm:$0x1] %v311
        %v313 = vld [vmem:[#allocation2 + $0x60] sm:$0x1]
        %v314 = vsel %vm288, 0, %v313
        %315 = vst [vmem:[#allocation2 + $0x60] sm:$0x1] %v314
        %v316 = vld [vmem:[#allocation2 + $0x6c] sm:$0x1]
        %v317 = vsel %vm288, 0, %v316
        %318 = vst [vmem:[#allocation2 + $0x6c] sm:$0x1] %v317
        %v319 = vld [vmem:[#allocation2 + $0x78] sm:$0x1]
        %v320 = vsel %vm288, 0, %v319
        %321 = vst [vmem:[#allocation2 + $0x78] sm:$0x1] %v320
        %v322 = vld [vmem:[#allocation2 + $0x84] sm:$0x1]
        %v323 = vsel %vm288, 0, %v322
        %324 = vst [vmem:[#allocation2 + $0x84] sm:$0x1] %v323
        %v325 = vld [vmem:[#allocation2 + $0x90] sm:$0x1]
        %v326 = vsel %vm288, 0, %v325
        %327 = vst [vmem:[#allocation2 + $0x90] sm:$0x1] %v326
        %v328 = vld [vmem:[#allocation2 + $0x9c] sm:$0x1]
        %v329 = vsel %vm288, 0, %v328
        %330 = vst [vmem:[#allocation2 + $0x9c] sm:$0x1] %v329
        %v331 = vld [vmem:[#allocation2 + $0xa8] sm:$0x1]
        %v332 = vsel %vm288, 0, %v331
        %333 = vst [vmem:[#allocation2 + $0xa8] sm:$0x1] %v332
        %v334 = vld [vmem:[#allocation2 + $0xb4] sm:$0x1]
        %v335 = vsel %vm288, 0, %v334
        %336 = vst [vmem:[#allocation2 + $0xb4] sm:$0x1] %v335
        %v337 = vld [vmem:[#allocation2 + $0xc0] sm:$0x1]
        %v338 = vsel %vm288, 0, %v337
        %339 = vst [vmem:[#allocation2 + $0xc0] sm:$0x1] %v338
        %v340 = vld [vmem:[#allocation2 + $0xcc] sm:$0x1]
        %v341 = vsel %vm288, 0, %v340
        %342 = vst [vmem:[#allocation2 + $0xcc] sm:$0x1] %v341
        %vm343 = vsmask.f32 7938
        %vm344 = vmand %vm286, %vm343
        %v345 = vld [vmem:[#allocation2 + $0x8] sm:$0x1]
        %v346 = vsel %vm344, 0, %v345
        %347 = vst [vmem:[#allocation2 + $0x8] sm:$0x1] %v346
        %v348 = vld [vmem:[#allocation2 + $0x14] sm:$0x1]
        %v349 = vsel %vm344, 0, %v348
        %350 = vst [vmem:[#allocation2 + $0x14] sm:$0x1] %v349
        %v351 = vld [vmem:[#allocation2 + $0x20] sm:$0x1]
        %v352 = vsel %vm344, 0, %v351
        %353 = vst [vmem:[#allocation2 + $0x20] sm:$0x1] %v352
        %v354 = vld [vmem:[#allocation2 + $0x2c] sm:$0x1]
        %v355 = vsel %vm344, 0, %v354
        %356 = vst [vmem:[#allocation2 + $0x2c] sm:$0x1] %v355
        %v357 = vld [vmem:[#allocation2 + $0x38] sm:$0x1]
        %v358 = vsel %vm344, 0, %v357
        %359 = vst [vmem:[#allocation2 + $0x38] sm:$0x1] %v358
        %v360 = vld [vmem:[#allocation2 + $0x44] sm:$0x1]
        %v361 = vsel %vm344, 0, %v360
        %362 = vst [vmem:[#allocation2 + $0x44] sm:$0x1] %v361
        %v363 = vld [vmem:[#allocation2 + $0x50] sm:$0x1]
        %v364 = vsel %vm344, 0, %v363
        %365 = vst [vmem:[#allocation2 + $0x50] sm:$0x1] %v364
        %v366 = vld [vmem:[#allocation2 + $0x5c] sm:$0x1]
        %v367 = vsel %vm344, 0, %v366
        %368 = vst [vmem:[#allocation2 + $0x5c] sm:$0x1] %v367
        %v369 = vld [vmem:[#allocation2 + $0x68] sm:$0x1]
        %v370 = vsel %vm344, 0, %v369
        %371 = vst [vmem:[#allocation2 + $0x68] sm:$0x1] %v370
        %v372 = vld [vmem:[#allocation2 + $0x74] sm:$0x1]
        %v373 = vsel %vm344, 0, %v372
        %374 = vst [vmem:[#allocation2 + $0x74] sm:$0x1] %v373
        %v375 = vld [vmem:[#allocation2 + $0x80] sm:$0x1]
        %v376 = vsel %vm344, 0, %v375
        %377 = vst [vmem:[#allocation2 + $0x80] sm:$0x1] %v376
        %v378 = vld [vmem:[#allocation2 + $0x8c] sm:$0x1]
        %v379 = vsel %vm344, 0, %v378
        %380 = vst [vmem:[#allocation2 + $0x8c] sm:$0x1] %v379
        %v381 = vld [vmem:[#allocation2 + $0x98] sm:$0x1]
        %v382 = vsel %vm344, 0, %v381
        %383 = vst [vmem:[#allocation2 + $0x98] sm:$0x1] %v382
        %v384 = vld [vmem:[#allocation2 + $0xa4] sm:$0x1]
        %v385 = vsel %vm344, 0, %v384
        %386 = vst [vmem:[#allocation2 + $0xa4] sm:$0x1] %v385
        %v387 = vld [vmem:[#allocation2 + $0xb0] sm:$0x1]
        %v388 = vsel %vm344, 0, %v387
        %389 = vst [vmem:[#allocation2 + $0xb0] sm:$0x1] %v388
        %v390 = vld [vmem:[#allocation2 + $0xbc] sm:$0x1]
        %v391 = vsel %vm344, 0, %v390
        %392 = vst [vmem:[#allocation2 + $0xbc] sm:$0x1] %v391
        %v393 = vld [vmem:[#allocation2 + $0xc8] sm:$0x1]
        %v394 = vsel %vm344, 0, %v393
        %395 = vst [vmem:[#allocation2 + $0xc8] sm:$0x1] %v394
        %v396 = vld [vmem:[#allocation2 + $0xd4] sm:$0x1]
        %v397 = vsel %vm344, 0, %v396
        %398 = vst [vmem:[#allocation2 + $0xd4] sm:$0x1] %v397
        %399 = vst [vmem:[#allocation3] sm:$0xf] 0
        %400 = vst [vmem:[#allocation3 + $0x4] sm:$0xf] 0
        %401 = vst [vmem:[#allocation3 + $0x8] sm:$0x1] 0
        %s402 = scalar_lea.vmem [#allocation3], 204
        %403 = vst [vmem:[%s402] sm:$0xf] 0
        %404 = vst [vmem:[%s402 + $0x4] sm:$0xf] 0
        %405 = vst [vmem:[%s402 + $0x8] sm:$0x1] 0
        %v406 = vld [vmem:[#allocation3] sm:$0x1]
        %v407 = vsel %vm288, 0, %v406
        %408 = vst [vmem:[#allocation3] sm:$0x1] %v407
        %v409 = vld [vmem:[#allocation3 + $0xc] sm:$0x1]
        %v410 = vsel %vm288, 0, %v409
        %411 = vst [vmem:[#allocation3 + $0xc] sm:$0x1] %v410
        %v412 = vld [vmem:[#allocation3 + $0x18] sm:$0x1]
        %v413 = vsel %vm288, 0, %v412
        %414 = vst [vmem:[#allocation3 + $0x18] sm:$0x1] %v413
        %v415 = vld [vmem:[#allocation3 + $0x24] sm:$0x1]
        %v416 = vsel %vm288, 0, %v415
        %417 = vst [vmem:[#allocation3 + $0x24] sm:$0x1] %v416
        %v418 = vld [vmem:[#allocation3 + $0x30] sm:$0x1]
        %v419 = vsel %vm288, 0, %v418
        %420 = vst [vmem:[#allocation3 + $0x30] sm:$0x1] %v419
        %v421 = vld [vmem:[#allocation3 + $0x3c] sm:$0x1]
        %v422 = vsel %vm288, 0, %v421
        %423 = vst [vmem:[#allocation3 + $0x3c] sm:$0x1] %v422
        %v424 = vld [vmem:[#allocation3 + $0x48] sm:$0x1]
        %v425 = vsel %vm288, 0, %v424
        %426 = vst [vmem:[#allocation3 + $0x48] sm:$0x1] %v425
        %v427 = vld [vmem:[#allocation3 + $0x54] sm:$0x1]
        %v428 = vsel %vm288, 0, %v427
        %429 = vst [vmem:[#allocation3 + $0x54] sm:$0x1] %v428
        %v430 = vld [vmem:[#allocation3 + $0x60] sm:$0x1]
        %v431 = vsel %vm288, 0, %v430
        %432 = vst [vmem:[#allocation3 + $0x60] sm:$0x1] %v431
        %v433 = vld [vmem:[#allocation3 + $0x6c] sm:$0x1]
        %v434 = vsel %vm288, 0, %v433
        %435 = vst [vmem:[#allocation3 + $0x6c] sm:$0x1] %v434
        %v436 = vld [vmem:[#allocation3 + $0x78] sm:$0x1]
        %v437 = vsel %vm288, 0, %v436
        %438 = vst [vmem:[#allocation3 + $0x78] sm:$0x1] %v437
        %v439 = vld [vmem:[#allocation3 + $0x84] sm:$0x1]
        %v440 = vsel %vm288, 0, %v439
        %441 = vst [vmem:[#allocation3 + $0x84] sm:$0x1] %v440
        %v442 = vld [vmem:[#allocation3 + $0x90] sm:$0x1]
        %v443 = vsel %vm288, 0, %v442
        %444 = vst [vmem:[#allocation3 + $0x90] sm:$0x1] %v443
        %v445 = vld [vmem:[#allocation3 + $0x9c] sm:$0x1]
        %v446 = vsel %vm288, 0, %v445
        %447 = vst [vmem:[#allocation3 + $0x9c] sm:$0x1] %v446
        %v448 = vld [vmem:[#allocation3 + $0xa8] sm:$0x1]
        %v449 = vsel %vm288, 0, %v448
        %450 = vst [vmem:[#allocation3 + $0xa8] sm:$0x1] %v449
        %v451 = vld [vmem:[#allocation3 + $0xb4] sm:$0x1]
        %v452 = vsel %vm288, 0, %v451
        %453 = vst [vmem:[#allocation3 + $0xb4] sm:$0x1] %v452
        %v454 = vld [vmem:[#allocation3 + $0xc0] sm:$0x1]
        %v455 = vsel %vm288, 0, %v454
        %456 = vst [vmem:[#allocation3 + $0xc0] sm:$0x1] %v455
        %v457 = vld [vmem:[#allocation3 + $0xcc] sm:$0x1]
        %v458 = vsel %vm288, 0, %v457
        %459 = vst [vmem:[#allocation3 + $0xcc] sm:$0x1] %v458
        %v460 = vld [vmem:[#allocation3 + $0x8] sm:$0x1]
        %v461 = vsel %vm344, 0, %v460
        %462 = vst [vmem:[#allocation3 + $0x8] sm:$0x1] %v461
        %v463 = vld [vmem:[#allocation3 + $0x14] sm:$0x1]
        %v464 = vsel %vm344, 0, %v463
        %465 = vst [vmem:[#allocation3 + $0x14] sm:$0x1] %v464
        %v466 = vld [vmem:[#allocation3 + $0x20] sm:$0x1]
        %v467 = vsel %vm344, 0, %v466
        %468 = vst [vmem:[#allocation3 + $0x20] sm:$0x1] %v467
        %v469 = vld [vmem:[#allocation3 + $0x2c] sm:$0x1]
        %v470 = vsel %vm344, 0, %v469
        %471 = vst [vmem:[#allocation3 + $0x2c] sm:$0x1] %v470
        %v472 = vld [vmem:[#allocation3 + $0x38] sm:$0x1]
        %v473 = vsel %vm344, 0, %v472
        %474 = vst [vmem:[#allocation3 + $0x38] sm:$0x1] %v473
        %v475 = vld [vmem:[#allocation3 + $0x44] sm:$0x1]
        %v476 = vsel %vm344, 0, %v475
        %477 = vst [vmem:[#allocation3 + $0x44] sm:$0x1] %v476
        %v478 = vld [vmem:[#allocation3 + $0x50] sm:$0x1]
        %v479 = vsel %vm344, 0, %v478
        %480 = vst [vmem:[#allocation3 + $0x50] sm:$0x1] %v479
        %v481 = vld [vmem:[#allocation3 + $0x5c] sm:$0x1]
        %v482 = vsel %vm344, 0, %v481
        %483 = vst [vmem:[#allocation3 + $0x5c] sm:$0x1] %v482
        %v484 = vld [vmem:[#allocation3 + $0x68] sm:$0x1]
        %v485 = vsel %vm344, 0, %v484
        %486 = vst [vmem:[#allocation3 + $0x68] sm:$0x1] %v485
        %v487 = vld [vmem:[#allocation3 + $0x74] sm:$0x1]
        %v488 = vsel %vm344, 0, %v487
        %489 = vst [vmem:[#allocation3 + $0x74] sm:$0x1] %v488
        %v490 = vld [vmem:[#allocation3 + $0x80] sm:$0x1]
        %v491 = vsel %vm344, 0, %v490
        %492 = vst [vmem:[#allocation3 + $0x80] sm:$0x1] %v491
        %v493 = vld [vmem:[#allocation3 + $0x8c] sm:$0x1]
        %v494 = vsel %vm344, 0, %v493
        %495 = vst [vmem:[#allocation3 + $0x8c] sm:$0x1] %v494
        %v496 = vld [vmem:[#allocation3 + $0x98] sm:$0x1]
        %v497 = vsel %vm344, 0, %v496
        %498 = vst [vmem:[#allocation3 + $0x98] sm:$0x1] %v497
        %v499 = vld [vmem:[#allocation3 + $0xa4] sm:$0x1]
        %v500 = vsel %vm344, 0, %v499
        %501 = vst [vmem:[#allocation3 + $0xa4] sm:$0x1] %v500
        %v502 = vld [vmem:[#allocation3 + $0xb0] sm:$0x1]
        %v503 = vsel %vm344, 0, %v502
        %504 = vst [vmem:[#allocation3 + $0xb0] sm:$0x1] %v503
        %v505 = vld [vmem:[#allocation3 + $0xbc] sm:$0x1]
        %v506 = vsel %vm344, 0, %v505
        %507 = vst [vmem:[#allocation3 + $0xbc] sm:$0x1] %v506
        %v508 = vld [vmem:[#allocation3 + $0xc8] sm:$0x1]
        %v509 = vsel %vm344, 0, %v508
        %510 = vst [vmem:[#allocation3 + $0xc8] sm:$0x1] %v509
        %v511 = vld [vmem:[#allocation3 + $0xd4] sm:$0x1]
        %v512 = vsel %vm344, 0, %v511
        %513 = vst [vmem:[#allocation3 + $0xd4] sm:$0x1] %v512
        %v514 = vld [vmem:[%s240] sm:$0xff]
        %v515 = vld [vmem:[%s240 + $0x8] sm:$0xff]
        %v516 = vld [vmem:[%s240 + $0x10] sm:$0xff]
        %v517 = vld [vmem:[%s240 + $0x18] sm:$0xff]
        %v518 = vld [vmem:[%s240 + $0x20] sm:$0xff]
        %v519 = vld [vmem:[%s240 + $0x28] sm:$0xff]
        %v520 = vld [vmem:[%s240 + $0x30] sm:$0xff]
        %v521 = vld [vmem:[%s240 + $0x38] sm:$0xff]
        %v522 = vld [vmem:[%s240 + $0x40] sm:$0xff]
        %v523 = vld [vmem:[%s240 + $0x48] sm:$0xff]
        %v524 = vld [vmem:[%s240 + $0x50] sm:$0xff]
        %v525 = vld [vmem:[%s240 + $0x58] sm:$0xff]
        %v526 = vld [vmem:[%s240 + $0x60] sm:$0xff]
        %v527 = vld [vmem:[%s240 + $0x68] sm:$0xff]
        %v528 = vld [vmem:[%s240 + $0x70] sm:$0xff]
        %v529 = vld [vmem:[%s240 + $0x78] sm:$0xff]
        %v530 = vld [vmem:[%s240 + $0x80] sm:$0xff]
        %v531 = vld [vmem:[%s240 + $0x88] sm:$0xff]
        %v532 = vld [vmem:[%s240 + $0x90] sm:$0xff]
        %v533 = vld [vmem:[%s240 + $0x98] sm:$0xff]
        %v534 = vld [vmem:[%s240 + $0xa0] sm:$0xff]
        %v535 = vld [vmem:[%s240 + $0xa8] sm:$0xff]
        %v536 = vld [vmem:[%s240 + $0xb0] sm:$0xff]
        %v537 = vld [vmem:[%s240 + $0xb8] sm:$0xff]
        %v538 = vld [vmem:[%s240 + $0xc0] sm:$0xff]
        %v539 = vld [vmem:[%s240 + $0xc8] sm:$0xff]
        %v540 = vld [vmem:[%s240 + $0xd0] sm:$0xff]
        %v541 = vld [vmem:[%s240 + $0xd8] sm:$0xff]
        %v542 = vld [vmem:[%s240 + $0xe0] sm:$0xff]
        %v543 = vld [vmem:[%s240 + $0xe8] sm:$0xff]
        %v544 = vld [vmem:[%s240 + $0xf0] sm:$0xff]
        %v545 = vld [vmem:[%s240 + $0xf8] sm:$0xff]
        %v546 = vmax.f32 %v514, 0.0
        %v547 = vmax.f32 %v515, 0.0
        %v548 = vmax.f32 %v516, 0.0
        %v549 = vmax.f32 %v517, 0.0
        %v550 = vmax.f32 %v518, 0.0
        %v551 = vmax.f32 %v519, 0.0
        %v552 = vmax.f32 %v520, 0.0
        %v553 = vmax.f32 %v521, 0.0
        %v554 = vmax.f32 %v522, 0.0
        %v555 = vmax.f32 %v523, 0.0
        %v556 = vmax.f32 %v524, 0.0
        %v557 = vmax.f32 %v525, 0.0
        %v558 = vmax.f32 %v526, 0.0
        %v559 = vmax.f32 %v527, 0.0
        %v560 = vmax.f32 %v528, 0.0
        %v561 = vmax.f32 %v529, 0.0
        %v562 = vmax.f32 %v530, 0.0
        %v563 = vmax.f32 %v531, 0.0
        %v564 = vmax.f32 %v532, 0.0
        %v565 = vmax.f32 %v533, 0.0
        %v566 = vmax.f32 %v534, 0.0
        %v567 = vmax.f32 %v535, 0.0
        %v568 = vmax.f32 %v536, 0.0
        %v569 = vmax.f32 %v537, 0.0
        %v570 = vmax.f32 %v538, 0.0
        %v571 = vmax.f32 %v539, 0.0
        %v572 = vmax.f32 %v540, 0.0
        %v573 = vmax.f32 %v541, 0.0
        %v574 = vmax.f32 %v542, 0.0
        %v575 = vmax.f32 %v543, 0.0
        %v576 = vmax.f32 %v544, 0.0
        %v577 = vmax.f32 %v545, 0.0
        %v578 = vpack.c.bf16 %v546, %v546
        %v579 = vpack.c.bf16 %v547, %v547
        %v580 = vpack.c.bf16 %v548, %v548
        %v581 = vpack.c.bf16 %v549, %v549
        %v582 = vpack.c.bf16 %v550, %v550
        %v583 = vpack.c.bf16 %v551, %v551
        %v584 = vpack.c.bf16 %v552, %v552
        %v585 = vpack.c.bf16 %v553, %v553
        %v586 = vpack.c.bf16 %v554, %v554
        %v587 = vpack.c.bf16 %v555, %v555
        %v588 = vpack.c.bf16 %v556, %v556
        %v589 = vpack.c.bf16 %v557, %v557
        %v590 = vpack.c.bf16 %v558, %v558
        %v591 = vpack.c.bf16 %v559, %v559
        %v592 = vpack.c.bf16 %v560, %v560
        %v593 = vpack.c.bf16 %v561, %v561
        %v594 = vpack.c.bf16 %v562, %v562
        %v595 = vpack.c.bf16 %v563, %v563
        %v596 = vpack.c.bf16 %v564, %v564
        %v597 = vpack.c.bf16 %v565, %v565
        %v598 = vpack.c.bf16 %v566, %v566
        %v599 = vpack.c.bf16 %v567, %v567
        %v600 = vpack.c.bf16 %v568, %v568
        %v601 = vpack.c.bf16 %v569, %v569
        %v602 = vpack.c.bf16 %v570, %v570
        %v603 = vpack.c.bf16 %v571, %v571
        %v604 = vpack.c.bf16 %v572, %v572
        %v605 = vpack.c.bf16 %v573, %v573
        %v606 = vpack.c.bf16 %v574, %v574
        %v607 = vpack.c.bf16 %v575, %v575
        %v608 = vpack.c.bf16 %v576, %v576
        %v609 = vpack.c.bf16 %v577, %v577
        %vm610 = vsmask.f32 4368
        %vm611 = vmor %vm287, %vm610
        %v613 = vshrl.u32 %v578, 16
        %v615 = vrot.slane %v613, 7
        %v616 = vshll.u32 %v578, 16
        %v618 = vor.u32 %v615, %v616
        %v619 = vrot.slane %v615, 4
        %v621 = vshrl.u32 %v579, 16
        %v623 = vrot.slane %v621, 7
        %v624 = vshll.u32 %v579, 16
        %v626 = vor.u32 %v623, %v624
        %v627 = vsel %vm611, %v619, %v626
        %v628 = vrot.slane %v623, 4
        %v630 = vshrl.u32 %v580, 16
        %v632 = vrot.slane %v630, 7
        %v633 = vshll.u32 %v580, 16
        %v635 = vor.u32 %v632, %v633
        %v636 = vrot.slane %v632, 4
        %v638 = vshrl.u32 %v581, 16
        %v640 = vrot.slane %v638, 7
        %v641 = vshll.u32 %v581, 16
        %v643 = vor.u32 %v640, %v641
        %v644 = vsel %vm611, %v636, %v643
        %v645 = vrot.slane %v640, 4
        %v647 = vshrl.u32 %v582, 16
        %v649 = vrot.slane %v647, 7
        %v650 = vshll.u32 %v582, 16
        %v652 = vor.u32 %v649, %v650
        %v653 = vrot.slane %v649, 4
        %v655 = vshrl.u32 %v583, 16
        %v657 = vrot.slane %v655, 7
        %v658 = vshll.u32 %v583, 16
        %v660 = vor.u32 %v657, %v658
        %v661 = vsel %vm611, %v653, %v660
        %v662 = vrot.slane %v657, 4
        %v664 = vshrl.u32 %v584, 16
        %v666 = vrot.slane %v664, 7
        %v667 = vshll.u32 %v584, 16
        %v669 = vor.u32 %v666, %v667
        %v670 = vrot.slane %v666, 4
        %v672 = vshrl.u32 %v585, 16
        %v674 = vrot.slane %v672, 7
        %v675 = vshll.u32 %v585, 16
        %v677 = vor.u32 %v674, %v675
        %v678 = vsel %vm611, %v670, %v677
        %v679 = vrot.slane %v674, 4
        %v681 = vshrl.u32 %v586, 16
        %v683 = vrot.slane %v681, 7
        %v684 = vshll.u32 %v586, 16
        %v686 = vor.u32 %v683, %v684
        %v687 = vrot.slane %v683, 4
        %v689 = vshrl.u32 %v587, 16
        %v691 = vrot.slane %v689, 7
        %v692 = vshll.u32 %v587, 16
        %v694 = vor.u32 %v691, %v692
        %v695 = vsel %vm611, %v687, %v694
        %v696 = vrot.slane %v691, 4
        %v698 = vshrl.u32 %v588, 16
        %v700 = vrot.slane %v698, 7
        %v701 = vshll.u32 %v588, 16
        %v703 = vor.u32 %v700, %v701
        %v704 = vrot.slane %v700, 4
        %v706 = vshrl.u32 %v589, 16
        %v708 = vrot.slane %v706, 7
        %v709 = vshll.u32 %v589, 16
        %v711 = vor.u32 %v708, %v709
        %v712 = vsel %vm611, %v704, %v711
        %v713 = vrot.slane %v708, 4
        %v715 = vshrl.u32 %v590, 16
        %v717 = vrot.slane %v715, 7
        %v718 = vshll.u32 %v590, 16
        %v720 = vor.u32 %v717, %v718
        %v721 = vrot.slane %v717, 4
        %v723 = vshrl.u32 %v591, 16
        %v725 = vrot.slane %v723, 7
        %v726 = vshll.u32 %v591, 16
        %v728 = vor.u32 %v725, %v726
        %v729 = vsel %vm611, %v721, %v728
        %v730 = vrot.slane %v725, 4
        %v732 = vshrl.u32 %v592, 16
        %v734 = vrot.slane %v732, 7
        %v735 = vshll.u32 %v592, 16
        %v737 = vor.u32 %v734, %v735
        %v738 = vrot.slane %v734, 4
        %v740 = vshrl.u32 %v593, 16
        %v742 = vrot.slane %v740, 7
        %v743 = vshll.u32 %v593, 16
        %v745 = vor.u32 %v742, %v743
        %v746 = vsel %vm611, %v738, %v745
        %v747 = vrot.slane %v742, 4
        %v749 = vshrl.u32 %v594, 16
        %v751 = vrot.slane %v749, 7
        %v752 = vshll.u32 %v594, 16
        %v754 = vor.u32 %v751, %v752
        %v755 = vrot.slane %v751, 4
        %v757 = vshrl.u32 %v595, 16
        %v759 = vrot.slane %v757, 7
        %v760 = vshll.u32 %v595, 16
        %v762 = vor.u32 %v759, %v760
        %v763 = vsel %vm611, %v755, %v762
        %v764 = vrot.slane %v759, 4
        %v766 = vshrl.u32 %v596, 16
        %v768 = vrot.slane %v766, 7
        %v769 = vshll.u32 %v596, 16
        %v771 = vor.u32 %v768, %v769
        %v772 = vrot.slane %v768, 4
        %v774 = vshrl.u32 %v597, 16
        %v776 = vrot.slane %v774, 7
        %v777 = vshll.u32 %v597, 16
        %v779 = vor.u32 %v776, %v777
        %v780 = vsel %vm611, %v772, %v779
        %v781 = vrot.slane %v776, 4
        %v783 = vshrl.u32 %v598, 16
        %v785 = vrot.slane %v783, 7
        %v786 = vshll.u32 %v598, 16
        %v788 = vor.u32 %v785, %v786
        %v789 = vrot.slane %v785, 4
        %v791 = vshrl.u32 %v599, 16
        %v793 = vrot.slane %v791, 7
        %v794 = vshll.u32 %v599, 16
        %v796 = vor.u32 %v793, %v794
        %v797 = vsel %vm611, %v789, %v796
        %v798 = vrot.slane %v793, 4
        %v800 = vshrl.u32 %v600, 16
        %v802 = vrot.slane %v800, 7
        %v803 = vshll.u32 %v600, 16
        %v805 = vor.u32 %v802, %v803
        %v806 = vrot.slane %v802, 4
        %v808 = vshrl.u32 %v601, 16
        %v810 = vrot.slane %v808, 7
        %v811 = vshll.u32 %v601, 16
        %v813 = vor.u32 %v810, %v811
        %v814 = vsel %vm611, %v806, %v813
        %v815 = vrot.slane %v810, 4
        %v817 = vshrl.u32 %v602, 16
        %v819 = vrot.slane %v817, 7
        %v820 = vshll.u32 %v602, 16
        %v822 = vor.u32 %v819, %v820
        %v823 = vrot.slane %v819, 4
        %v825 = vshrl.u32 %v603, 16
        %v827 = vrot.slane %v825, 7
        %v828 = vshll.u32 %v603, 16
        %v830 = vor.u32 %v827, %v828
        %v831 = vsel %vm611, %v823, %v830
        %v832 = vrot.slane %v827, 4
        %v834 = vshrl.u32 %v604, 16
        %v836 = vrot.slane %v834, 7
        %v837 = vshll.u32 %v604, 16
        %v839 = vor.u32 %v836, %v837
        %v840 = vrot.slane %v836, 4
        %v842 = vshrl.u32 %v605, 16
        %v844 = vrot.slane %v842, 7
        %v845 = vshll.u32 %v605, 16
        %v847 = vor.u32 %v844, %v845
        %v848 = vsel %vm611, %v840, %v847
        %v849 = vrot.slane %v844, 4
        %v851 = vshrl.u32 %v606, 16
        %v853 = vrot.slane %v851, 7
        %v854 = vshll.u32 %v606, 16
        %v856 = vor.u32 %v853, %v854
        %v857 = vrot.slane %v853, 4
        %v859 = vshrl.u32 %v607, 16
        %v861 = vrot.slane %v859, 7
        %v862 = vshll.u32 %v607, 16
        %v864 = vor.u32 %v861, %v862
        %v865 = vsel %vm611, %v857, %v864
        %v866 = vrot.slane %v861, 4
        %v868 = vshrl.u32 %v608, 16
        %v870 = vrot.slane %v868, 7
        %v871 = vshll.u32 %v608, 16
        %v873 = vor.u32 %v870, %v871
        %v874 = vrot.slane %v870, 4
        %v876 = vshrl.u32 %v609, 16
        %v878 = vrot.slane %v876, 7
        %v879 = vshll.u32 %v609, 16
        %v881 = vor.u32 %v878, %v879
        %v882 = vsel %vm611, %v874, %v881
        %v883 = vrot.slane %v878, 4
        %s932 = scalar_lea.vmem [#allocation2], 12
        %vm933 = vcmask 1043456
        %vm934 = vmand %vm933, %vm343
        %v935 = vld [vmem:[%s932] sm:$0xf]
        %v936 = vsel %vm934, %v618, %v935
        %937 = vst [vmem:[%s932] sm:$0xf] %v936
        %938 = vst [vmem:[%s932 + $0x4] sm:$0xf] %v627
        %v939 = vld [vmem:[%s932 + $0x8] sm:$0x1]
        %v940 = vsel %vm288, %v628, %v939
        %941 = vst [vmem:[%s932 + $0x8] sm:$0x1] %v940
        %v942 = vld [vmem:[%s932 + $0xc] sm:$0xf]
        %v943 = vsel %vm934, %v635, %v942
        %944 = vst [vmem:[%s932 + $0xc] sm:$0xf] %v943
        %945 = vst [vmem:[%s932 + $0x10] sm:$0xf] %v644
        %v946 = vld [vmem:[%s932 + $0x14] sm:$0x1]
        %v947 = vsel %vm288, %v645, %v946
        %948 = vst [vmem:[%s932 + $0x14] sm:$0x1] %v947
        %v949 = vld [vmem:[%s932 + $0x18] sm:$0xf]
        %v950 = vsel %vm934, %v652, %v949
        %951 = vst [vmem:[%s932 + $0x18] sm:$0xf] %v950
        %952 = vst [vmem:[%s932 + $0x1c] sm:$0xf] %v661
        %v953 = vld [vmem:[%s932 + $0x20] sm:$0x1]
        %v954 = vsel %vm288, %v662, %v953
        %955 = vst [vmem:[%s932 + $0x20] sm:$0x1] %v954
        %v956 = vld [vmem:[%s932 + $0x24] sm:$0xf]
        %v957 = vsel %vm934, %v669, %v956
        %958 = vst [vmem:[%s932 + $0x24] sm:$0xf] %v957
        %959 = vst [vmem:[%s932 + $0x28] sm:$0xf] %v678
        %v960 = vld [vmem:[%s932 + $0x2c] sm:$0x1]
        %v961 = vsel %vm288, %v679, %v960
        %962 = vst [vmem:[%s932 + $0x2c] sm:$0x1] %v961
        %v963 = vld [vmem:[%s932 + $0x30] sm:$0xf]
        %v964 = vsel %vm934, %v686, %v963
        %965 = vst [vmem:[%s932 + $0x30] sm:$0xf] %v964
        %966 = vst [vmem:[%s932 + $0x34] sm:$0xf] %v695
        %v967 = vld [vmem:[%s932 + $0x38] sm:$0x1]
        %v968 = vsel %vm288, %v696, %v967
        %969 = vst [vmem:[%s932 + $0x38] sm:$0x1] %v968
        %v970 = vld [vmem:[%s932 + $0x3c] sm:$0xf]
        %v971 = vsel %vm934, %v703, %v970
        %972 = vst [vmem:[%s932 + $0x3c] sm:$0xf] %v971
        %973 = vst [vmem:[%s932 + $0x40] sm:$0xf] %v712
        %v974 = vld [vmem:[%s932 + $0x44] sm:$0x1]
        %v975 = vsel %vm288, %v713, %v974
        %976 = vst [vmem:[%s932 + $0x44] sm:$0x1] %v975
        %v977 = vld [vmem:[%s932 + $0x48] sm:$0xf]
        %v978 = vsel %vm934, %v720, %v977
        %979 = vst [vmem:[%s932 + $0x48] sm:$0xf] %v978
        %980 = vst [vmem:[%s932 + $0x4c] sm:$0xf] %v729
        %v981 = vld [vmem:[%s932 + $0x50] sm:$0x1]
        %v982 = vsel %vm288, %v730, %v981
        %983 = vst [vmem:[%s932 + $0x50] sm:$0x1] %v982
        %v984 = vld [vmem:[%s932 + $0x54] sm:$0xf]
        %v985 = vsel %vm934, %v737, %v984
        %986 = vst [vmem:[%s932 + $0x54] sm:$0xf] %v985
        %987 = vst [vmem:[%s932 + $0x58] sm:$0xf] %v746
        %v988 = vld [vmem:[%s932 + $0x5c] sm:$0x1]
        %v989 = vsel %vm288, %v747, %v988
        %990 = vst [vmem:[%s932 + $0x5c] sm:$0x1] %v989
        %v991 = vld [vmem:[%s932 + $0x60] sm:$0xf]
        %v992 = vsel %vm934, %v754, %v991
        %993 = vst [vmem:[%s932 + $0x60] sm:$0xf] %v992
        %994 = vst [vmem:[%s932 + $0x64] sm:$0xf] %v763
        %v995 = vld [vmem:[%s932 + $0x68] sm:$0x1]
        %v996 = vsel %vm288, %v764, %v995
        %997 = vst [vmem:[%s932 + $0x68] sm:$0x1] %v996
        %v998 = vld [vmem:[%s932 + $0x6c] sm:$0xf]
        %v999 = vsel %vm934, %v771, %v998
        %1000 = vst [vmem:[%s932 + $0x6c] sm:$0xf] %v999
        %1001 = vst [vmem:[%s932 + $0x70] sm:$0xf] %v780
        %v1002 = vld [vmem:[%s932 + $0x74] sm:$0x1]
        %v1003 = vsel %vm288, %v781, %v1002
        %1004 = vst [vmem:[%s932 + $0x74] sm:$0x1] %v1003
        %v1005 = vld [vmem:[%s932 + $0x78] sm:$0xf]
        %v1006 = vsel %vm934, %v788, %v1005
        %1007 = vst [vmem:[%s932 + $0x78] sm:$0xf] %v1006
        %1008 = vst [vmem:[%s932 + $0x7c] sm:$0xf] %v797
        %v1009 = vld [vmem:[%s932 + $0x80] sm:$0x1]
        %v1010 = vsel %vm288, %v798, %v1009
        %1011 = vst [vmem:[%s932 + $0x80] sm:$0x1] %v1010
        %v1012 = vld [vmem:[%s932 + $0x84] sm:$0xf]
        %v1013 = vsel %vm934, %v805, %v1012
        %1014 = vst [vmem:[%s932 + $0x84] sm:$0xf] %v1013
        %1015 = vst [vmem:[%s932 + $0x88] sm:$0xf] %v814
        %v1016 = vld [vmem:[%s932 + $0x8c] sm:$0x1]
        %v1017 = vsel %vm288, %v815, %v1016
        %1018 = vst [vmem:[%s932 + $0x8c] sm:$0x1] %v1017
        %v1019 = vld [vmem:[%s932 + $0x90] sm:$0xf]
        %v1020 = vsel %vm934, %v822, %v1019
        %1021 = vst [vmem:[%s932 + $0x90] sm:$0xf] %v1020
        %1022 = vst [vmem:[%s932 + $0x94] sm:$0xf] %v831
        %v1023 = vld [vmem:[%s932 + $0x98] sm:$0x1]
        %v1024 = vsel %vm288, %v832, %v1023
        %1025 = vst [vmem:[%s932 + $0x98] sm:$0x1] %v1024
        %v1026 = vld [vmem:[%s932 + $0x9c] sm:$0xf]
        %v1027 = vsel %vm934, %v839, %v1026
        %1028 = vst [vmem:[%s932 + $0x9c] sm:$0xf] %v1027
        %1029 = vst [vmem:[%s932 + $0xa0] sm:$0xf] %v848
        %v1030 = vld [vmem:[%s932 + $0xa4] sm:$0x1]
        %v1031 = vsel %vm288, %v849, %v1030
        %1032 = vst [vmem:[%s932 + $0xa4] sm:$0x1] %v1031
        %v1033 = vld [vmem:[%s932 + $0xa8] sm:$0xf]
        %v1034 = vsel %vm934, %v856, %v1033
        %1035 = vst [vmem:[%s932 + $0xa8] sm:$0xf] %v1034
        %1036 = vst [vmem:[%s932 + $0xac] sm:$0xf] %v865
        %v1037 = vld [vmem:[%s932 + $0xb0] sm:$0x1]
        %v1038 = vsel %vm288, %v866, %v1037
        %1039 = vst [vmem:[%s932 + $0xb0] sm:$0x1] %v1038
        %v1040 = vld [vmem:[%s932 + $0xb4] sm:$0xf]
        %v1041 = vsel %vm934, %v873, %v1040
        %1042 = vst [vmem:[%s932 + $0xb4] sm:$0xf] %v1041
        %1043 = vst [vmem:[%s932 + $0xb8] sm:$0xf] %v882
        %v1044 = vld [vmem:[%s932 + $0xbc] sm:$0x1]
        %v1045 = vsel %vm288, %v883, %v1044
        %1046 = vst [vmem:[%s932 + $0xbc] sm:$0x1] %v1045
        %v1047 = vld [vmem:[#allocation2] sm:$0xf]
        %v1048 = vld [vmem:[#allocation2 + $0x4] sm:$0xf]
        %v1049 = vld [vmem:[#allocation2 + $0x8] sm:$0x1]
        %v1050 = vld [vmem:[#allocation2 + $0xc] sm:$0xf]
        %v1051 = vld [vmem:[#allocation2 + $0x10] sm:$0xf]
        %v1052 = vld [vmem:[#allocation2 + $0x14] sm:$0x1]
        %v1053 = vld [vmem:[#allocation2 + $0x18] sm:$0xf]
        %v1054 = vld [vmem:[#allocation2 + $0x1c] sm:$0xf]
        %v1055 = vld [vmem:[#allocation2 + $0x20] sm:$0x1]
        %v1056 = vld [vmem:[#allocation2 + $0x24] sm:$0xf]
        %v1057 = vld [vmem:[#allocation2 + $0x28] sm:$0xf]
        %v1058 = vld [vmem:[#allocation2 + $0x2c] sm:$0x1]
        %v1059 = vld [vmem:[#allocation2 + $0x30] sm:$0xf]
        %v1060 = vld [vmem:[#allocation2 + $0x34] sm:$0xf]
        %v1061 = vld [vmem:[#allocation2 + $0x38] sm:$0x1]
        %v1062 = vld [vmem:[#allocation2 + $0x3c] sm:$0xf]
        %v1063 = vld [vmem:[#allocation2 + $0x40] sm:$0xf]
        %v1064 = vld [vmem:[#allocation2 + $0x44] sm:$0x1]
        %v1065 = vld [vmem:[#allocation2 + $0x48] sm:$0xf]
        %v1066 = vld [vmem:[#allocation2 + $0x4c] sm:$0xf]
        %v1067 = vld [vmem:[#allocation2 + $0x50] sm:$0x1]
        %v1068 = vld [vmem:[#allocation2 + $0x54] sm:$0xf]
        %v1069 = vld [vmem:[#allocation2 + $0x58] sm:$0xf]
        %v1070 = vld [vmem:[#allocation2 + $0x5c] sm:$0x1]
        %v1071 = vld [vmem:[#allocation2 + $0x60] sm:$0xf]
        %v1072 = vld [vmem:[#allocation2 + $0x64] sm:$0xf]
        %v1073 = vld [vmem:[#allocation2 + $0x68] sm:$0x1]
        %v1074 = vld [vmem:[#allocation2 + $0x6c] sm:$0xf]
        %v1075 = vld [vmem:[#allocation2 + $0x70] sm:$0xf]
        %v1076 = vld [vmem:[#allocation2 + $0x74] sm:$0x1]
        %v1077 = vld [vmem:[#allocation2 + $0x78] sm:$0xf]
        %v1078 = vld [vmem:[#allocation2 + $0x7c] sm:$0xf]
        %v1079 = vld [vmem:[#allocation2 + $0x80] sm:$0x1]
        %v1080 = vld [vmem:[#allocation2 + $0x84] sm:$0xf]
        %v1081 = vld [vmem:[#allocation2 + $0x88] sm:$0xf]
        %v1082 = vld [vmem:[#allocation2 + $0x8c] sm:$0x1]
        %v1083 = vld [vmem:[#allocation2 + $0x90] sm:$0xf]
        %v1084 = vld [vmem:[#allocation2 + $0x94] sm:$0xf]
        %v1085 = vld [vmem:[#allocation2 + $0x98] sm:$0x1]
        %v1086 = vld [vmem:[#allocation2 + $0x9c] sm:$0xf]
        %v1087 = vld [vmem:[#allocation2 + $0xa0] sm:$0xf]
        %v1088 = vld [vmem:[#allocation2 + $0xa4] sm:$0x1]
        %v1089 = vld [vmem:[#allocation2 + $0xa8] sm:$0xf]
        %v1090 = vld [vmem:[#allocation2 + $0xac] sm:$0xf]
        %v1091 = vld [vmem:[#allocation2 + $0xb0] sm:$0x1]
        %v1092 = vld [vmem:[#allocation2 + $0xb4] sm:$0xf]
        %v1093 = vld [vmem:[#allocation2 + $0xb8] sm:$0xf]
        %v1094 = vld [vmem:[#allocation2 + $0xbc] sm:$0x1]
        %v1095 = vld [vmem:[#allocation2 + $0xc0] sm:$0xf]
        %v1096 = vld [vmem:[#allocation2 + $0xc4] sm:$0xf]
        %v1097 = vld [vmem:[#allocation2 + $0xc8] sm:$0x1]
        %v1098 = vld [vmem:[#allocation2 + $0xcc] sm:$0xf]
        %v1099 = vld [vmem:[#allocation2 + $0xd0] sm:$0xf]
        %v1100 = vld [vmem:[#allocation2 + $0xd4] sm:$0x1]
        %v1133 = vunpack.c.l.b16 %v1047
        %v1134 = vunpack.c.l.b16 %v1048
        %v1135 = vunpack.c.l.b16 %v1050
        %v1136 = vunpack.c.l.b16 %v1051
        %v1137 = vunpack.c.l.b16 %v1053
        %v1138 = vunpack.c.l.b16 %v1054
        %v1139 = vunpack.c.l.b16 %v1056
        %v1140 = vunpack.c.l.b16 %v1057
        %v1141 = vunpack.c.l.b16 %v1059
        %v1142 = vunpack.c.l.b16 %v1060
        %v1143 = vunpack.c.l.b16 %v1062
        %v1144 = vunpack.c.l.b16 %v1063
        %v1145 = vunpack.c.l.b16 %v1065
        %v1146 = vunpack.c.l.b16 %v1066
        %v1147 = vunpack.c.l.b16 %v1068
        %v1148 = vunpack.c.l.b16 %v1069
        %v1149 = vunpack.c.l.b16 %v1071
        %v1150 = vunpack.c.l.b16 %v1072
        %v1151 = vunpack.c.l.b16 %v1074
        %v1152 = vunpack.c.l.b16 %v1075
        %v1153 = vunpack.c.l.b16 %v1077
        %v1154 = vunpack.c.l.b16 %v1078
        %v1155 = vunpack.c.l.b16 %v1080
        %v1156 = vunpack.c.l.b16 %v1081
        %v1157 = vunpack.c.l.b16 %v1083
        %v1158 = vunpack.c.l.b16 %v1084
        %v1159 = vunpack.c.l.b16 %v1086
        %v1160 = vunpack.c.l.b16 %v1087
        %v1161 = vunpack.c.l.b16 %v1089
        %v1162 = vunpack.c.l.b16 %v1090
        %v1163 = vunpack.c.l.b16 %v1092
        %v1164 = vunpack.c.l.b16 %v1093
        %v1165 = vpack.c.b16 %v1134, %v1133
        %v1166 = vpack.c.b16 %v1136, %v1135
        %v1167 = vpack.c.b16 %v1138, %v1137
        %v1168 = vpack.c.b16 %v1140, %v1139
        %v1169 = vpack.c.b16 %v1142, %v1141
        %v1170 = vpack.c.b16 %v1144, %v1143
        %v1171 = vpack.c.b16 %v1146, %v1145
        %v1172 = vpack.c.b16 %v1148, %v1147
        %v1173 = vpack.c.b16 %v1150, %v1149
        %v1174 = vpack.c.b16 %v1152, %v1151
        %v1175 = vpack.c.b16 %v1154, %v1153
        %v1176 = vpack.c.b16 %v1156, %v1155
        %v1177 = vpack.c.b16 %v1158, %v1157
        %v1178 = vpack.c.b16 %v1160, %v1159
        %v1179 = vpack.c.b16 %v1162, %v1161
        %v1180 = vpack.c.b16 %v1164, %v1163
        %v1213 = vunpack.c.l.b16 %v1049
        %v1214 = vunpack.c.l.b16 %v1052
        %v1215 = vunpack.c.l.b16 %v1055
        %v1216 = vunpack.c.l.b16 %v1058
        %v1217 = vunpack.c.l.b16 %v1061
        %v1218 = vunpack.c.l.b16 %v1064
        %v1219 = vunpack.c.l.b16 %v1067
        %v1220 = vunpack.c.l.b16 %v1070
        %v1221 = vunpack.c.l.b16 %v1073
        %v1222 = vunpack.c.l.b16 %v1076
        %v1223 = vunpack.c.l.b16 %v1079
        %v1224 = vunpack.c.l.b16 %v1082
        %v1225 = vunpack.c.l.b16 %v1085
        %v1226 = vunpack.c.l.b16 %v1088
        %v1227 = vunpack.c.l.b16 %v1091
        %v1228 = vunpack.c.l.b16 %v1094
        %v1229 = vpack.c.b16 %v1213, %v1213
        %v1230 = vpack.c.b16 %v1214, %v1214
        %v1231 = vpack.c.b16 %v1215, %v1215
        %v1232 = vpack.c.b16 %v1216, %v1216
        %v1233 = vpack.c.b16 %v1217, %v1217
        %v1234 = vpack.c.b16 %v1218, %v1218
        %v1235 = vpack.c.b16 %v1219, %v1219
        %v1236 = vpack.c.b16 %v1220, %v1220
        %v1237 = vpack.c.b16 %v1221, %v1221
        %v1238 = vpack.c.b16 %v1222, %v1222
        %v1239 = vpack.c.b16 %v1223, %v1223
        %v1240 = vpack.c.b16 %v1224, %v1224
        %v1241 = vpack.c.b16 %v1225, %v1225
        %v1242 = vpack.c.b16 %v1226, %v1226
        %v1243 = vpack.c.b16 %v1227, %v1227
        %v1244 = vpack.c.b16 %v1228, %v1228
        %vm1245 = vsmask.f32 7424
        %v1247 = vshrl.u32 %v1165, 16
        %v1249 = vshll.u32 %v1165, 16
        %v1251 = vrot.slane %v1249, 1
        %v1252 = vor.u32 %v1247, %v1251
        %v1254 = vshll.u32 %v1229, 16
        %v1256 = vrot.slane %v1254, 1
        %v1257 = vsel %vm1245, %v1252, %v1256
        %v1259 = vshrl.u32 %v1166, 16
        %v1261 = vshll.u32 %v1166, 16
        %v1263 = vrot.slane %v1261, 1
        %v1264 = vor.u32 %v1259, %v1263
        %v1266 = vshll.u32 %v1230, 16
        %v1268 = vrot.slane %v1266, 1
        %v1269 = vsel %vm1245, %v1264, %v1268
        %v1271 = vshrl.u32 %v1167, 16
        %v1273 = vshll.u32 %v1167, 16
        %v1275 = vrot.slane %v1273, 1
        %v1276 = vor.u32 %v1271, %v1275
        %v1278 = vshll.u32 %v1231, 16
        %v1280 = vrot.slane %v1278, 1
        %v1281 = vsel %vm1245, %v1276, %v1280
        %v1283 = vshrl.u32 %v1168, 16
        %v1285 = vshll.u32 %v1168, 16
        %v1287 = vrot.slane %v1285, 1
        %v1288 = vor.u32 %v1283, %v1287
        %v1290 = vshll.u32 %v1232, 16
        %v1292 = vrot.slane %v1290, 1
        %v1293 = vsel %vm1245, %v1288, %v1292
        %v1295 = vshrl.u32 %v1169, 16
        %v1297 = vshll.u32 %v1169, 16
        %v1299 = vrot.slane %v1297, 1
        %v1300 = vor.u32 %v1295, %v1299
        %v1302 = vshll.u32 %v1233, 16
        %v1304 = vrot.slane %v1302, 1
        %v1305 = vsel %vm1245, %v1300, %v1304
        %v1307 = vshrl.u32 %v1170, 16
        %v1309 = vshll.u32 %v1170, 16
        %v1311 = vrot.slane %v1309, 1
        %v1312 = vor.u32 %v1307, %v1311
        %v1314 = vshll.u32 %v1234, 16
        %v1316 = vrot.slane %v1314, 1
        %v1317 = vsel %vm1245, %v1312, %v1316
        %v1319 = vshrl.u32 %v1171, 16
        %v1321 = vshll.u32 %v1171, 16
        %v1323 = vrot.slane %v1321, 1
        %v1324 = vor.u32 %v1319, %v1323
        %v1326 = vshll.u32 %v1235, 16
        %v1328 = vrot.slane %v1326, 1
        %v1329 = vsel %vm1245, %v1324, %v1328
        %v1331 = vshrl.u32 %v1172, 16
        %v1333 = vshll.u32 %v1172, 16
        %v1335 = vrot.slane %v1333, 1
        %v1336 = vor.u32 %v1331, %v1335
        %v1338 = vshll.u32 %v1236, 16
        %v1340 = vrot.slane %v1338, 1
        %v1341 = vsel %vm1245, %v1336, %v1340
        %v1343 = vshrl.u32 %v1173, 16
        %v1345 = vshll.u32 %v1173, 16
        %v1347 = vrot.slane %v1345, 1
        %v1348 = vor.u32 %v1343, %v1347
        %v1350 = vshll.u32 %v1237, 16
        %v1352 = vrot.slane %v1350, 1
        %v1353 = vsel %vm1245, %v1348, %v1352
        %v1355 = vshrl.u32 %v1174, 16
        %v1357 = vshll.u32 %v1174, 16
        %v1359 = vrot.slane %v1357, 1
        %v1360 = vor.u32 %v1355, %v1359
        %v1362 = vshll.u32 %v1238, 16
        %v1364 = vrot.slane %v1362, 1
        %v1365 = vsel %vm1245, %v1360, %v1364
        %v1367 = vshrl.u32 %v1175, 16
        %v1369 = vshll.u32 %v1175, 16
        %v1371 = vrot.slane %v1369, 1
        %v1372 = vor.u32 %v1367, %v1371
        %v1374 = vshll.u32 %v1239, 16
        %v1376 = vrot.slane %v1374, 1
        %v1377 = vsel %vm1245, %v1372, %v1376
        %v1379 = vshrl.u32 %v1176, 16
        %v1381 = vshll.u32 %v1176, 16
        %v1383 = vrot.slane %v1381, 1
        %v1384 = vor.u32 %v1379, %v1383
        %v1386 = vshll.u32 %v1240, 16
        %v1388 = vrot.slane %v1386, 1
        %v1389 = vsel %vm1245, %v1384, %v1388
        %v1391 = vshrl.u32 %v1177, 16
        %v1393 = vshll.u32 %v1177, 16
        %v1395 = vrot.slane %v1393, 1
        %v1396 = vor.u32 %v1391, %v1395
        %v1398 = vshll.u32 %v1241, 16
        %v1400 = vrot.slane %v1398, 1
        %v1401 = vsel %vm1245, %v1396, %v1400
        %v1403 = vshrl.u32 %v1178, 16
        %v1405 = vshll.u32 %v1178, 16
        %v1407 = vrot.slane %v1405, 1
        %v1408 = vor.u32 %v1403, %v1407
        %v1410 = vshll.u32 %v1242, 16
        %v1412 = vrot.slane %v1410, 1
        %v1413 = vsel %vm1245, %v1408, %v1412
        %v1415 = vshrl.u32 %v1179, 16
        %v1417 = vshll.u32 %v1179, 16
        %v1419 = vrot.slane %v1417, 1
        %v1420 = vor.u32 %v1415, %v1419
        %v1422 = vshll.u32 %v1243, 16
        %v1424 = vrot.slane %v1422, 1
        %v1425 = vsel %vm1245, %v1420, %v1424
        %v1427 = vshrl.u32 %v1180, 16
        %v1429 = vshll.u32 %v1180, 16
        %v1431 = vrot.slane %v1429, 1
        %v1432 = vor.u32 %v1427, %v1431
        %v1434 = vshll.u32 %v1244, 16
        %v1436 = vrot.slane %v1434, 1
        %v1437 = vsel %vm1245, %v1432, %v1436
        %vm1454 = vcmask 1046528
        %v1455 = vrot.slane %v1165, 1
        %v1456 = vrot.slane %v1229, 1
        %v1457 = vsel %vm1454, %v1455, %v1456
        %v1458 = vrot.slane %v1166, 1
        %v1459 = vrot.slane %v1230, 1
        %v1460 = vsel %vm1454, %v1458, %v1459
        %v1461 = vrot.slane %v1167, 1
        %v1462 = vrot.slane %v1231, 1
        %v1463 = vsel %vm1454, %v1461, %v1462
        %v1464 = vrot.slane %v1168, 1
        %v1465 = vrot.slane %v1232, 1
        %v1466 = vsel %vm1454, %v1464, %v1465
        %v1467 = vrot.slane %v1169, 1
        %v1468 = vrot.slane %v1233, 1
        %v1469 = vsel %vm1454, %v1467, %v1468
        %v1470 = vrot.slane %v1170, 1
        %v1471 = vrot.slane %v1234, 1
        %v1472 = vsel %vm1454, %v1470, %v1471
        %v1473 = vrot.slane %v1171, 1
        %v1474 = vrot.slane %v1235, 1
        %v1475 = vsel %vm1454, %v1473, %v1474
        %v1476 = vrot.slane %v1172, 1
        %v1477 = vrot.slane %v1236, 1
        %v1478 = vsel %vm1454, %v1476, %v1477
        %v1479 = vrot.slane %v1173, 1
        %v1480 = vrot.slane %v1237, 1
        %v1481 = vsel %vm1454, %v1479, %v1480
        %v1482 = vrot.slane %v1174, 1
        %v1483 = vrot.slane %v1238, 1
        %v1484 = vsel %vm1454, %v1482, %v1483
        %v1485 = vrot.slane %v1175, 1
        %v1486 = vrot.slane %v1239, 1
        %v1487 = vsel %vm1454, %v1485, %v1486
        %v1488 = vrot.slane %v1176, 1
        %v1489 = vrot.slane %v1240, 1
        %v1490 = vsel %vm1454, %v1488, %v1489
        %v1491 = vrot.slane %v1177, 1
        %v1492 = vrot.slane %v1241, 1
        %v1493 = vsel %vm1454, %v1491, %v1492
        %v1494 = vrot.slane %v1178, 1
        %v1495 = vrot.slane %v1242, 1
        %v1496 = vsel %vm1454, %v1494, %v1495
        %v1497 = vrot.slane %v1179, 1
        %v1498 = vrot.slane %v1243, 1
        %v1499 = vsel %vm1454, %v1497, %v1498
        %v1500 = vrot.slane %v1180, 1
        %v1501 = vrot.slane %v1244, 1
        %v1502 = vsel %vm1454, %v1500, %v1501
        %v1521 = vunpack.c.l.b16 %v1095
        %v1522 = vunpack.c.l.b16 %v1096
        %v1523 = vpack.c.b16 %v1522, %v1521
        %v1526 = vunpack.c.l.b16 %v1097
        %v1527 = vpack.c.b16 %v1526, %v1526
        %v1529 = vshrl.u32 %v1523, 16
        %v1531 = vshll.u32 %v1523, 16
        %v1533 = vrot.slane %v1531, 1
        %v1534 = vor.u32 %v1529, %v1533
        %v1536 = vshll.u32 %v1527, 16
        %v1538 = vrot.slane %v1536, 1
        %v1539 = vsel %vm1245, %v1534, %v1538
        %v1541 = vrot.slane %v1523, 1
        %v1542 = vrot.slane %v1527, 1
        %v1543 = vsel %vm1454, %v1541, %v1542
        %v1547 = vunpack.c.l.b16 %v1098
        %v1548 = vunpack.c.l.b16 %v1099
        %v1549 = vpack.c.b16 %v1548, %v1547
        %v1552 = vunpack.c.l.b16 %v1100
        %v1553 = vpack.c.b16 %v1552, %v1552
        %v1555 = vshrl.u32 %v1549, 16
        %v1557 = vshll.u32 %v1549, 16
        %v1559 = vrot.slane %v1557, 1
        %v1560 = vor.u32 %v1555, %v1559
        %v1562 = vshll.u32 %v1553, 16
        %v1564 = vrot.slane %v1562, 1
        %v1565 = vsel %vm1245, %v1560, %v1564
        %v1567 = vrot.slane %v1549, 1
        %v1568 = vrot.slane %v1553, 1
        %v1569 = vsel %vm1454, %v1567, %v1568
        %v1571 = vld [vmem:[#allocation7] sm:$0xf]
        %v1572 = vld [vmem:[#allocation7 + $0x4] sm:$0xf]
        %v1573 = vld [vmem:[#allocation7 + $0x8] sm:$0xf]
        %v1574 = vld [vmem:[#allocation7 + $0xc] sm:$0xf]
        %v1575 = vld [vmem:[#allocation7 + $0x10] sm:$0xf]
        %v1576 = vld [vmem:[#allocation7 + $0x14] sm:$0xf]
        %v1577 = vld [vmem:[#allocation7 + $0x18] sm:$0xf]
        %v1578 = vld [vmem:[#allocation7 + $0x1c] sm:$0xf]
        %v1579 = vld [vmem:[#allocation7 + $0x20] sm:$0xf]
        %v1580 = vld [vmem:[#allocation7 + $0x24] sm:$0xf]
        %v1581 = vld [vmem:[#allocation7 + $0x28] sm:$0xf]
        %v1582 = vld [vmem:[#allocation7 + $0x2c] sm:$0xf]
        %v1583 = vld [vmem:[#allocation7 + $0x30] sm:$0xf]
        %v1584 = vld [vmem:[#allocation7 + $0x34] sm:$0xf]
        %v1585 = vld [vmem:[#allocation7 + $0x38] sm:$0xf]
        %v1586 = vld [vmem:[#allocation7 + $0x3c] sm:$0xf]
        %v1587 = vld [vmem:[#allocation7 + $0x40] sm:$0xf]
        %v1588 = vld [vmem:[#allocation7 + $0x44] sm:$0xf]
        %v1589 = vld [vmem:[#allocation7 + $0x48] sm:$0xf]
        %v1590 = vld [vmem:[#allocation7 + $0x4c] sm:$0xf]
        %v1591 = vld [vmem:[#allocation7 + $0x50] sm:$0xf]
        %v1592 = vld [vmem:[#allocation7 + $0x54] sm:$0xf]
        %v1593 = vld [vmem:[#allocation7 + $0x58] sm:$0xf]
        %v1594 = vld [vmem:[#allocation7 + $0x5c] sm:$0xf]
        %v1595 = vld [vmem:[#allocation7 + $0x60] sm:$0xf]
        %v1596 = vld [vmem:[#allocation7 + $0x64] sm:$0xf]
        %v1597 = vld [vmem:[#allocation7 + $0x68] sm:$0xf]
        %v1598 = vld [vmem:[#allocation7 + $0x6c] sm:$0xf]
        %v1599 = vld [vmem:[#allocation7 + $0x70] sm:$0xf]
        %v1600 = vld [vmem:[#allocation7 + $0x74] sm:$0xf]
        %v1601 = vld [vmem:[#allocation7 + $0x78] sm:$0xf]
        %v1602 = vld [vmem:[#allocation7 + $0x7c] sm:$0xf]
        %v1603 = vld [vmem:[#allocation7 + $0x80] sm:$0xf]
        %v1604 = vld [vmem:[#allocation7 + $0x84] sm:$0xf]
        %v1605 = vld [vmem:[#allocation7 + $0x88] sm:$0xf]
        %v1606 = vld [vmem:[#allocation7 + $0x8c] sm:$0xf]
        %v1607 = vld [vmem:[#allocation7 + $0x90] sm:$0xf]
        %v1608 = vld [vmem:[#allocation7 + $0x94] sm:$0xf]
        %v1609 = vld [vmem:[#allocation7 + $0x98] sm:$0xf]
        %v1610 = vld [vmem:[#allocation7 + $0x9c] sm:$0xf]
        %v1611 = vld [vmem:[#allocation7 + $0xa0] sm:$0xf]
        %v1612 = vld [vmem:[#allocation7 + $0xa4] sm:$0xf]
        %v1613 = vld [vmem:[#allocation7 + $0xa8] sm:$0xf]
        %v1614 = vld [vmem:[#allocation7 + $0xac] sm:$0xf]
        %v1615 = vld [vmem:[#allocation7 + $0xb0] sm:$0xf]
        %v1616 = vld [vmem:[#allocation7 + $0xb4] sm:$0xf]
        %v1617 = vld [vmem:[#allocation7 + $0xb8] sm:$0xf]
        %v1618 = vld [vmem:[#allocation7 + $0xbc] sm:$0xf]
        %v1619 = vld [vmem:[#allocation7 + $0xc0] sm:$0xf]
        %v1620 = vld [vmem:[#allocation7 + $0xc4] sm:$0xf]
        %v1621 = vld [vmem:[#allocation7 + $0xc8] sm:$0xf]
        %v1622 = vld [vmem:[#allocation7 + $0xcc] sm:$0xf]
        %v1623 = vld [vmem:[#allocation7 + $0xd0] sm:$0xf]
        %v1624 = vld [vmem:[#allocation7 + $0xd4] sm:$0xf]
        %v1625 = vld [vmem:[#allocation7 + $0xd8] sm:$0xf]
        %v1626 = vld [vmem:[#allocation7 + $0xdc] sm:$0xf]
        %v1627 = vld [vmem:[#allocation7 + $0xe0] sm:$0xf]
        %v1628 = vld [vmem:[#allocation7 + $0xe4] sm:$0xf]
        %v1629 = vld [vmem:[#allocation7 + $0xe8] sm:$0xf]
        %v1630 = vld [vmem:[#allocation7 + $0xec] sm:$0xf]
        %v1631 = vld [vmem:[#allocation7 + $0xf0] sm:$0xf]
        %v1632 = vld [vmem:[#allocation7 + $0xf4] sm:$0xf]
        %v1633 = vld [vmem:[#allocation7 + $0xf8] sm:$0xf]
        %v1634 = vld [vmem:[#allocation7 + $0xfc] sm:$0xf]
        %v1635 = vld [vmem:[#allocation7 + $0x100] sm:$0xf]
        %v1636 = vld [vmem:[#allocation7 + $0x104] sm:$0xf]
        %v1637 = vld [vmem:[#allocation7 + $0x108] sm:$0xf]
        %v1638 = vld [vmem:[#allocation7 + $0x10c] sm:$0xf]
        %v1639 = vld [vmem:[#allocation7 + $0x110] sm:$0xf]
        %v1640 = vld [vmem:[#allocation7 + $0x114] sm:$0xf]
        %v1641 = vld [vmem:[#allocation7 + $0x118] sm:$0xf]
        %v1642 = vld [vmem:[#allocation7 + $0x11c] sm:$0xf]
        %v1643 = vld [vmem:[#allocation7 + $0x120] sm:$0xf]
        %v1644 = vld [vmem:[#allocation7 + $0x124] sm:$0xf]
        %v1645 = vld [vmem:[#allocation7 + $0x128] sm:$0xf]
        %v1646 = vld [vmem:[#allocation7 + $0x12c] sm:$0xf]
        %v1647 = vld [vmem:[#allocation7 + $0x130] sm:$0xf]
        %v1648 = vld [vmem:[#allocation7 + $0x134] sm:$0xf]
        %v1649 = vld [vmem:[#allocation7 + $0x138] sm:$0xf]
        %v1650 = vld [vmem:[#allocation7 + $0x13c] sm:$0xf]
        %v1651 = vld [vmem:[#allocation7 + $0x140] sm:$0xf]
        %v1652 = vld [vmem:[#allocation7 + $0x144] sm:$0xf]
        %v1653 = vld [vmem:[#allocation7 + $0x148] sm:$0xf]
        %v1654 = vld [vmem:[#allocation7 + $0x14c] sm:$0xf]
        %v1655 = vld [vmem:[#allocation7 + $0x150] sm:$0xf]
        %v1656 = vld [vmem:[#allocation7 + $0x154] sm:$0xf]
        %v1657 = vld [vmem:[#allocation7 + $0x158] sm:$0xf]
        %v1658 = vld [vmem:[#allocation7 + $0x15c] sm:$0xf]
        %v1659 = vld [vmem:[#allocation7 + $0x160] sm:$0xf]
        %v1660 = vld [vmem:[#allocation7 + $0x164] sm:$0xf]
        %v1661 = vld [vmem:[#allocation7 + $0x168] sm:$0xf]
        %v1662 = vld [vmem:[#allocation7 + $0x16c] sm:$0xf]
        %v1663 = vld [vmem:[#allocation7 + $0x170] sm:$0xf]
        %v1664 = vld [vmem:[#allocation7 + $0x174] sm:$0xf]
        %v1665 = vld [vmem:[#allocation7 + $0x178] sm:$0xf]
        %v1666 = vld [vmem:[#allocation7 + $0x17c] sm:$0xf]
        %v1667 = vld [vmem:[#allocation7 + $0x180] sm:$0xf]
        %v1668 = vld [vmem:[#allocation7 + $0x184] sm:$0xf]
        %v1669 = vld [vmem:[#allocation7 + $0x188] sm:$0xf]
        %v1670 = vld [vmem:[#allocation7 + $0x18c] sm:$0xf]
        %v1671 = vld [vmem:[#allocation7 + $0x190] sm:$0xf]
        %v1672 = vld [vmem:[#allocation7 + $0x194] sm:$0xf]
        %v1673 = vld [vmem:[#allocation7 + $0x198] sm:$0xf]
        %v1674 = vld [vmem:[#allocation7 + $0x19c] sm:$0xf]
        %v1675 = vld [vmem:[#allocation7 + $0x1a0] sm:$0xf]
        %v1676 = vld [vmem:[#allocation7 + $0x1a4] sm:$0xf]
        %v1677 = vld [vmem:[#allocation7 + $0x1a8] sm:$0xf]
        %v1678 = vld [vmem:[#allocation7 + $0x1ac] sm:$0xf]
        %v1679 = vld [vmem:[#allocation7 + $0x1b0] sm:$0xf]
        %v1680 = vld [vmem:[#allocation7 + $0x1b4] sm:$0xf]
        %v1681 = vld [vmem:[#allocation7 + $0x1b8] sm:$0xf]
        %v1682 = vld [vmem:[#allocation7 + $0x1bc] sm:$0xf]
        %v1683 = vld [vmem:[#allocation7 + $0x1c0] sm:$0xf]
        %v1684 = vld [vmem:[#allocation7 + $0x1c4] sm:$0xf]
        %v1685 = vld [vmem:[#allocation7 + $0x1c8] sm:$0xf]
        %v1686 = vld [vmem:[#allocation7 + $0x1cc] sm:$0xf]
        %v1687 = vld [vmem:[#allocation7 + $0x1d0] sm:$0xf]
        %v1688 = vld [vmem:[#allocation7 + $0x1d4] sm:$0xf]
        %v1689 = vld [vmem:[#allocation7 + $0x1d8] sm:$0xf]
        %v1690 = vld [vmem:[#allocation7 + $0x1dc] sm:$0xf]
        %v1691 = vld [vmem:[#allocation7 + $0x1e0] sm:$0xf]
        %v1692 = vld [vmem:[#allocation7 + $0x1e4] sm:$0xf]
        %v1693 = vld [vmem:[#allocation7 + $0x1e8] sm:$0xf]
        %v1694 = vld [vmem:[#allocation7 + $0x1ec] sm:$0xf]
        %v1695 = vld [vmem:[#allocation7 + $0x1f0] sm:$0xf]
        %v1696 = vld [vmem:[#allocation7 + $0x1f4] sm:$0xf]
        %v1697 = vld [vmem:[#allocation7 + $0x1f8] sm:$0xf]
        %v1698 = vld [vmem:[#allocation7 + $0x1fc] sm:$0xf]
        %v1699 = vld [vmem:[#allocation7 + $0x200] sm:$0xf]
        %v1700 = vld [vmem:[#allocation7 + $0x204] sm:$0xf]
        %v1701 = vld [vmem:[#allocation7 + $0x208] sm:$0xf]
        %v1702 = vld [vmem:[#allocation7 + $0x20c] sm:$0xf]
        %v1703 = vld [vmem:[#allocation7 + $0x210] sm:$0xf]
        %v1704 = vld [vmem:[#allocation7 + $0x214] sm:$0xf]
        %v1705 = vld [vmem:[#allocation7 + $0x218] sm:$0xf]
        %v1706 = vld [vmem:[#allocation7 + $0x21c] sm:$0xf]
        %v1707 = vld [vmem:[#allocation7 + $0x220] sm:$0xf]
        %v1708 = vld [vmem:[#allocation7 + $0x224] sm:$0xf]
        %v1709 = vld [vmem:[#allocation7 + $0x228] sm:$0xf]
        %v1710 = vld [vmem:[#allocation7 + $0x22c] sm:$0xf]
        %v1711 = vld [vmem:[#allocation7 + $0x230] sm:$0xf]
        %v1712 = vld [vmem:[#allocation7 + $0x234] sm:$0xf]
        %v1713 = vld [vmem:[#allocation7 + $0x238] sm:$0xf]
        %v1714 = vld [vmem:[#allocation7 + $0x23c] sm:$0xf]
        %v1715 = vld [vmem:[%s2] sm:$0x1]
        %v1717 = vperm.slane %v1715, 0
        %v1863 = vunpack.c.l.b16 %v1571
        %v1864 = vunpack.c.l.b16 %v1572
        %v1865 = vunpack.c.l.b16 %v1573
        %v1866 = vunpack.c.l.b16 %v1574
        %v1867 = vunpack.c.l.b16 %v1575
        %v1868 = vunpack.c.l.b16 %v1576
        %v1869 = vunpack.c.l.b16 %v1577
        %v1870 = vunpack.c.l.b16 %v1578
        %v1871 = vunpack.c.l.b16 %v1579
        %v1872 = vunpack.c.l.b16 %v1580
        %v1873 = vunpack.c.l.b16 %v1581
        %v1874 = vunpack.c.l.b16 %v1582
        %v1875 = vunpack.c.l.b16 %v1583
        %v1876 = vunpack.c.l.b16 %v1584
        %v1877 = vunpack.c.l.b16 %v1585
        %v1878 = vunpack.c.l.b16 %v1586
        %v1879 = vunpack.c.l.b16 %v1587
        %v1880 = vunpack.c.l.b16 %v1588
        %v1881 = vunpack.c.l.b16 %v1589
        %v1882 = vunpack.c.l.b16 %v1590
        %v1883 = vunpack.c.l.b16 %v1591
        %v1884 = vunpack.c.l.b16 %v1592
        %v1885 = vunpack.c.l.b16 %v1593
        %v1886 = vunpack.c.l.b16 %v1594
        %v1887 = vunpack.c.l.b16 %v1595
        %v1888 = vunpack.c.l.b16 %v1596
        %v1889 = vunpack.c.l.b16 %v1597
        %v1890 = vunpack.c.l.b16 %v1598
        %v1891 = vunpack.c.l.b16 %v1599
        %v1892 = vunpack.c.l.b16 %v1600
        %v1893 = vunpack.c.l.b16 %v1601
        %v1894 = vunpack.c.l.b16 %v1602
        %v1895 = vunpack.c.l.b16 %v1603
        %v1896 = vunpack.c.l.b16 %v1604
        %v1897 = vunpack.c.l.b16 %v1605
        %v1898 = vunpack.c.l.b16 %v1606
        %v1899 = vunpack.c.l.b16 %v1607
        %v1900 = vunpack.c.l.b16 %v1608
        %v1901 = vunpack.c.l.b16 %v1609
        %v1902 = vunpack.c.l.b16 %v1610
        %v1903 = vunpack.c.l.b16 %v1611
        %v1904 = vunpack.c.l.b16 %v1612
        %v1905 = vunpack.c.l.b16 %v1613
        %v1906 = vunpack.c.l.b16 %v1614
        %v1907 = vunpack.c.l.b16 %v1615
        %v1908 = vunpack.c.l.b16 %v1616
        %v1909 = vunpack.c.l.b16 %v1617
        %v1910 = vunpack.c.l.b16 %v1618
        %v1911 = vunpack.c.l.b16 %v1619
        %v1912 = vunpack.c.l.b16 %v1620
        %v1913 = vunpack.c.l.b16 %v1621
        %v1914 = vunpack.c.l.b16 %v1622
        %v1915 = vunpack.c.l.b16 %v1623
        %v1916 = vunpack.c.l.b16 %v1624
        %v1917 = vunpack.c.l.b16 %v1625
        %v1918 = vunpack.c.l.b16 %v1626
        %v1919 = vunpack.c.l.b16 %v1627
        %v1920 = vunpack.c.l.b16 %v1628
        %v1921 = vunpack.c.l.b16 %v1629
        %v1922 = vunpack.c.l.b16 %v1630
        %v1923 = vunpack.c.l.b16 %v1631
        %v1924 = vunpack.c.l.b16 %v1632
        %v1925 = vunpack.c.l.b16 %v1633
        %v1926 = vunpack.c.l.b16 %v1634
        %v1927 = vunpack.c.l.b16 %v1635
        %v1928 = vunpack.c.l.b16 %v1636
        %v1929 = vunpack.c.l.b16 %v1637
        %v1930 = vunpack.c.l.b16 %v1638
        %v1931 = vunpack.c.l.b16 %v1639
        %v1932 = vunpack.c.l.b16 %v1640
        %v1933 = vunpack.c.l.b16 %v1641
        %v1934 = vunpack.c.l.b16 %v1642
        %v1935 = vunpack.c.l.b16 %v1643
        %v1936 = vunpack.c.l.b16 %v1644
        %v1937 = vunpack.c.l.b16 %v1645
        %v1938 = vunpack.c.l.b16 %v1646
        %v1939 = vunpack.c.l.b16 %v1647
        %v1940 = vunpack.c.l.b16 %v1648
        %v1941 = vunpack.c.l.b16 %v1649
        %v1942 = vunpack.c.l.b16 %v1650
        %v1943 = vunpack.c.l.b16 %v1651
        %v1944 = vunpack.c.l.b16 %v1652
        %v1945 = vunpack.c.l.b16 %v1653
        %v1946 = vunpack.c.l.b16 %v1654
        %v1947 = vunpack.c.l.b16 %v1655
        %v1948 = vunpack.c.l.b16 %v1656
        %v1949 = vunpack.c.l.b16 %v1657
        %v1950 = vunpack.c.l.b16 %v1658
        %v1951 = vunpack.c.l.b16 %v1659
        %v1952 = vunpack.c.l.b16 %v1660
        %v1953 = vunpack.c.l.b16 %v1661
        %v1954 = vunpack.c.l.b16 %v1662
        %v1955 = vunpack.c.l.b16 %v1663
        %v1956 = vunpack.c.l.b16 %v1664
        %v1957 = vunpack.c.l.b16 %v1665
        %v1958 = vunpack.c.l.b16 %v1666
        %v1959 = vunpack.c.l.b16 %v1667
        %v1960 = vunpack.c.l.b16 %v1668
        %v1961 = vunpack.c.l.b16 %v1669
        %v1962 = vunpack.c.l.b16 %v1670
        %v1963 = vunpack.c.l.b16 %v1671
        %v1964 = vunpack.c.l.b16 %v1672
        %v1965 = vunpack.c.l.b16 %v1673
        %v1966 = vunpack.c.l.b16 %v1674
        %v1967 = vunpack.c.l.b16 %v1675
        %v1968 = vunpack.c.l.b16 %v1676
        %v1969 = vunpack.c.l.b16 %v1677
        %v1970 = vunpack.c.l.b16 %v1678
        %v1971 = vunpack.c.l.b16 %v1679
        %v1972 = vunpack.c.l.b16 %v1680
        %v1973 = vunpack.c.l.b16 %v1681
        %v1974 = vunpack.c.l.b16 %v1682
        %v1975 = vunpack.c.l.b16 %v1683
        %v1976 = vunpack.c.l.b16 %v1684
        %v1977 = vunpack.c.l.b16 %v1685
        %v1978 = vunpack.c.l.b16 %v1686
        %v1979 = vunpack.c.l.b16 %v1687
        %v1980 = vunpack.c.l.b16 %v1688
        %v1981 = vunpack.c.l.b16 %v1689
        %v1982 = vunpack.c.l.b16 %v1690
        %v1983 = vunpack.c.l.b16 %v1691
        %v1984 = vunpack.c.l.b16 %v1692
        %v1985 = vunpack.c.l.b16 %v1693
        %v1986 = vunpack.c.l.b16 %v1694
        %v1987 = vunpack.c.l.b16 %v1695
        %v1988 = vunpack.c.l.b16 %v1696
        %v1989 = vunpack.c.l.b16 %v1697
        %v1990 = vunpack.c.l.b16 %v1698
        %v1991 = vunpack.c.l.b16 %v1699
        %v1992 = vunpack.c.l.b16 %v1700
        %v1993 = vunpack.c.l.b16 %v1701
        %v1994 = vunpack.c.l.b16 %v1702
        %v1995 = vunpack.c.l.b16 %v1703
        %v1996 = vunpack.c.l.b16 %v1704
        %v1997 = vunpack.c.l.b16 %v1705
        %v1998 = vunpack.c.l.b16 %v1706
        %v1999 = vunpack.c.l.b16 %v1707
        %v2000 = vunpack.c.l.b16 %v1708
        %v2001 = vunpack.c.l.b16 %v1709
        %v2002 = vunpack.c.l.b16 %v1710
        %v2003 = vunpack.c.l.b16 %v1711
        %v2004 = vunpack.c.l.b16 %v1712
        %v2005 = vunpack.c.l.b16 %v1713
        %v2006 = vunpack.c.l.b16 %v1714
        %v2007 = vpack.c.b16 %v1864, %v1863
        %v2008 = vpack.c.b16 %v1866, %v1865
        %v2009 = vpack.c.b16 %v1868, %v1867
        %v2010 = vpack.c.b16 %v1870, %v1869
        %v2011 = vpack.c.b16 %v1872, %v1871
        %v2012 = vpack.c.b16 %v1874, %v1873
        %v2013 = vpack.c.b16 %v1876, %v1875
        %v2014 = vpack.c.b16 %v1878, %v1877
        %v2015 = vpack.c.b16 %v1880, %v1879
        %v2016 = vpack.c.b16 %v1882, %v1881
        %v2017 = vpack.c.b16 %v1884, %v1883
        %v2018 = vpack.c.b16 %v1886, %v1885
        %v2019 = vpack.c.b16 %v1888, %v1887
        %v2020 = vpack.c.b16 %v1890, %v1889
        %v2021 = vpack.c.b16 %v1892, %v1891
        %v2022 = vpack.c.b16 %v1894, %v1893
        %v2023 = vpack.c.b16 %v1896, %v1895
        %v2024 = vpack.c.b16 %v1898, %v1897
        %v2025 = vpack.c.b16 %v1900, %v1899
        %v2026 = vpack.c.b16 %v1902, %v1901
        %v2027 = vpack.c.b16 %v1904, %v1903
        %v2028 = vpack.c.b16 %v1906, %v1905
        %v2029 = vpack.c.b16 %v1908, %v1907
        %v2030 = vpack.c.b16 %v1910, %v1909
        %v2031 = vpack.c.b16 %v1912, %v1911
        %v2032 = vpack.c.b16 %v1914, %v1913
        %v2033 = vpack.c.b16 %v1916, %v1915
        %v2034 = vpack.c.b16 %v1918, %v1917
        %v2035 = vpack.c.b16 %v1920, %v1919
        %v2036 = vpack.c.b16 %v1922, %v1921
        %v2037 = vpack.c.b16 %v1924, %v1923
        %v2038 = vpack.c.b16 %v1926, %v1925
        %v2039 = vpack.c.b16 %v1928, %v1927
        %v2040 = vpack.c.b16 %v1930, %v1929
        %v2041 = vpack.c.b16 %v1932, %v1931
        %v2042 = vpack.c.b16 %v1934, %v1933
        %v2043 = vpack.c.b16 %v1936, %v1935
        %v2044 = vpack.c.b16 %v1938, %v1937
        %v2045 = vpack.c.b16 %v1940, %v1939
        %v2046 = vpack.c.b16 %v1942, %v1941
        %v2047 = vpack.c.b16 %v1944, %v1943
        %v2048 = vpack.c.b16 %v1946, %v1945
        %v2049 = vpack.c.b16 %v1948, %v1947
        %v2050 = vpack.c.b16 %v1950, %v1949
        %v2051 = vpack.c.b16 %v1952, %v1951
        %v2052 = vpack.c.b16 %v1954, %v1953
        %v2053 = vpack.c.b16 %v1956, %v1955
        %v2054 = vpack.c.b16 %v1958, %v1957
        %v2055 = vpack.c.b16 %v1960, %v1959
        %v2056 = vpack.c.b16 %v1962, %v1961
        %v2057 = vpack.c.b16 %v1964, %v1963
        %v2058 = vpack.c.b16 %v1966, %v1965
        %v2059 = vpack.c.b16 %v1968, %v1967
        %v2060 = vpack.c.b16 %v1970, %v1969
        %v2061 = vpack.c.b16 %v1972, %v1971
        %v2062 = vpack.c.b16 %v1974, %v1973
        %v2063 = vpack.c.b16 %v1976, %v1975
        %v2064 = vpack.c.b16 %v1978, %v1977
        %v2065 = vpack.c.b16 %v1980, %v1979
        %v2066 = vpack.c.b16 %v1982, %v1981
        %v2067 = vpack.c.b16 %v1984, %v1983
        %v2068 = vpack.c.b16 %v1986, %v1985
        %v2069 = vpack.c.b16 %v1988, %v1987
        %v2070 = vpack.c.b16 %v1990, %v1989
        %v2071 = vpack.c.b16 %v1992, %v1991
        %v2072 = vpack.c.b16 %v1994, %v1993
        %v2073 = vpack.c.b16 %v1996, %v1995
        %v2074 = vpack.c.b16 %v1998, %v1997
        %v2075 = vpack.c.b16 %v2000, %v1999
        %v2076 = vpack.c.b16 %v2002, %v2001
        %v2077 = vpack.c.b16 %v2004, %v2003
        %v2078 = vpack.c.b16 %v2006, %v2005
        %2151 = vmatpush.bf16.msra.mxu0 %v2014
        %2152 = vmatpush.bf16.msra.mxu0 %v2013
        %2153 = vmatpush.bf16.msra.mxu0 %v2012
        %2154 = vmatpush.bf16.msra.mxu0 %v2011
        %2155 = vmatpush.bf16.msra.mxu0 %v2010
        %2156 = vmatpush.bf16.msra.mxu0 %v2009
        %2157 = vmatpush.bf16.msra.mxu0 %v2008
        %2158 = vmatpush.bf16.msra.mxu0 %v2007
        %2159 = vmatmul.bf16.gmra.mxu0 %v1165
        %v2160 = vpop.f32.mrf.mxu0
        %v2161 = vadd.f32 %v1717, %v2160
        %v2162 = vpop.f32.mrf.mxu0
        %v2163 = vadd.f32 %v1717, %v2162
        %2164 = vmatmul.bf16.gmra.mxu0 %v1166
        %v2165 = vpop.f32.mrf.mxu0
        %v2166 = vadd.f32 %v1717, %v2165
        %v2167 = vpop.f32.mrf.mxu0
        %v2168 = vadd.f32 %v1717, %v2167
        %2169 = vmatmul.bf16.gmra.mxu0 %v1167
        %v2170 = vpop.f32.mrf.mxu0
        %v2171 = vadd.f32 %v1717, %v2170
        %v2172 = vpop.f32.mrf.mxu0
        %v2173 = vadd.f32 %v1717, %v2172
        %2174 = vmatmul.bf16.gmra.mxu0 %v1168
        %v2175 = vpop.f32.mrf.mxu0
        %v2176 = vadd.f32 %v1717, %v2175
        %v2177 = vpop.f32.mrf.mxu0
        %v2178 = vadd.f32 %v1717, %v2177
        %2179 = vmatmul.bf16.gmra.mxu0 %v1169
        %v2180 = vpop.f32.mrf.mxu0
        %v2181 = vadd.f32 %v1717, %v2180
        %v2182 = vpop.f32.mrf.mxu0
        %v2183 = vadd.f32 %v1717, %v2182
        %2184 = vmatmul.bf16.gmra.mxu0 %v1170
        %v2185 = vpop.f32.mrf.mxu0
        %v2186 = vadd.f32 %v1717, %v2185
        %v2187 = vpop.f32.mrf.mxu0
        %v2188 = vadd.f32 %v1717, %v2187
        %2189 = vmatmul.bf16.gmra.mxu0 %v1171
        %v2190 = vpop.f32.mrf.mxu0
        %v2191 = vadd.f32 %v1717, %v2190
        %v2192 = vpop.f32.mrf.mxu0
        %v2193 = vadd.f32 %v1717, %v2192
        %2194 = vmatmul.bf16.gmra.mxu0 %v1172
        %v2195 = vpop.f32.mrf.mxu0
        %v2196 = vadd.f32 %v1717, %v2195
        %v2197 = vpop.f32.mrf.mxu0
        %v2198 = vadd.f32 %v1717, %v2197
        %2199 = vmatmul.bf16.gmra.mxu0 %v1173
        %v2200 = vpop.f32.mrf.mxu0
        %v2201 = vadd.f32 %v1717, %v2200
        %v2202 = vpop.f32.mrf.mxu0
        %v2203 = vadd.f32 %v1717, %v2202
        %2204 = vmatmul.bf16.gmra.mxu0 %v1174
        %v2205 = vpop.f32.mrf.mxu0
        %v2206 = vadd.f32 %v1717, %v2205
        %v2207 = vpop.f32.mrf.mxu0
        %v2208 = vadd.f32 %v1717, %v2207
        %2209 = vmatmul.bf16.gmra.mxu0 %v1175
        %v2210 = vpop.f32.mrf.mxu0
        %v2211 = vadd.f32 %v1717, %v2210
        %v2212 = vpop.f32.mrf.mxu0
        %v2213 = vadd.f32 %v1717, %v2212
        %2214 = vmatmul.bf16.gmra.mxu0 %v1176
        %v2215 = vpop.f32.mrf.mxu0
        %v2216 = vadd.f32 %v1717, %v2215
        %v2217 = vpop.f32.mrf.mxu0
        %v2218 = vadd.f32 %v1717, %v2217
        %2219 = vmatmul.bf16.gmra.mxu0 %v1177
        %v2220 = vpop.f32.mrf.mxu0
        %v2221 = vadd.f32 %v1717, %v2220
        %v2222 = vpop.f32.mrf.mxu0
        %v2223 = vadd.f32 %v1717, %v2222
        %2224 = vmatmul.bf16.gmra.mxu0 %v1178
        %v2225 = vpop.f32.mrf.mxu0
        %v2226 = vadd.f32 %v1717, %v2225
        %v2227 = vpop.f32.mrf.mxu0
        %v2228 = vadd.f32 %v1717, %v2227
        %2229 = vmatmul.bf16.gmra.mxu0 %v1179
        %v2230 = vpop.f32.mrf.mxu0
        %v2231 = vadd.f32 %v1717, %v2230
        %v2232 = vpop.f32.mrf.mxu0
        %v2233 = vadd.f32 %v1717, %v2232
        %2234 = vmatmul.bf16.gmra.mxu0 %v1180
        %v2235 = vpop.f32.mrf.mxu0
        %v2236 = vadd.f32 %v1717, %v2235
        %v2237 = vpop.f32.mrf.mxu0
        %v2238 = vadd.f32 %v1717, %v2237
        %2239 = vdwg.mxu0
        %2240 = vmatpush.bf16.msra.mxu0 %v2022
        %2241 = vmatpush.bf16.msra.mxu0 %v2021
        %2242 = vmatpush.bf16.msra.mxu0 %v2020
        %2243 = vmatpush.bf16.msra.mxu0 %v2019
        %2244 = vmatpush.bf16.msra.mxu0 %v2018
        %2245 = vmatpush.bf16.msra.mxu0 %v2017
        %2246 = vmatpush.bf16.msra.mxu0 %v2016
        %2247 = vmatpush.bf16.msra.mxu0 %v2015
        %2248 = vmatmul.bf16.gmra.mxu0 %v1257
        %v2249 = vpop.f32.mrf.mxu0
        %v2250 = vadd.f32 %v2161, %v2249
        %v2251 = vpop.f32.mrf.mxu0
        %v2252 = vadd.f32 %v2163, %v2251
        %2253 = vmatmul.bf16.gmra.mxu0 %v1269
        %v2254 = vpop.f32.mrf.mxu0
        %v2255 = vadd.f32 %v2166, %v2254
        %v2256 = vpop.f32.mrf.mxu0
        %v2257 = vadd.f32 %v2168, %v2256
        %2258 = vmatmul.bf16.gmra.mxu0 %v1281
        %v2259 = vpop.f32.mrf.mxu0
        %v2260 = vadd.f32 %v2171, %v2259
        %v2261 = vpop.f32.mrf.mxu0
        %v2262 = vadd.f32 %v2173, %v2261
        %2263 = vmatmul.bf16.gmra.mxu0 %v1293
        %v2264 = vpop.f32.mrf.mxu0
        %v2265 = vadd.f32 %v2176, %v2264
        %v2266 = vpop.f32.mrf.mxu0
        %v2267 = vadd.f32 %v2178, %v2266
        %2268 = vmatmul.bf16.gmra.mxu0 %v1305
        %v2269 = vpop.f32.mrf.mxu0
        %v2270 = vadd.f32 %v2181, %v2269
        %v2271 = vpop.f32.mrf.mxu0
        %v2272 = vadd.f32 %v2183, %v2271
        %2273 = vmatmul.bf16.gmra.mxu0 %v1317
        %v2274 = vpop.f32.mrf.mxu0
        %v2275 = vadd.f32 %v2186, %v2274
        %v2276 = vpop.f32.mrf.mxu0
        %v2277 = vadd.f32 %v2188, %v2276
        %2278 = vmatmul.bf16.gmra.mxu0 %v1329
        %v2279 = vpop.f32.mrf.mxu0
        %v2280 = vadd.f32 %v2191, %v2279
        %v2281 = vpop.f32.mrf.mxu0
        %v2282 = vadd.f32 %v2193, %v2281
        %2283 = vmatmul.bf16.gmra.mxu0 %v1341
        %v2284 = vpop.f32.mrf.mxu0
        %v2285 = vadd.f32 %v2196, %v2284
        %v2286 = vpop.f32.mrf.mxu0
        %v2287 = vadd.f32 %v2198, %v2286
        %2288 = vmatmul.bf16.gmra.mxu0 %v1353
        %v2289 = vpop.f32.mrf.mxu0
        %v2290 = vadd.f32 %v2201, %v2289
        %v2291 = vpop.f32.mrf.mxu0
        %v2292 = vadd.f32 %v2203, %v2291
        %2293 = vmatmul.bf16.gmra.mxu0 %v1365
        %v2294 = vpop.f32.mrf.mxu0
        %v2295 = vadd.f32 %v2206, %v2294
        %v2296 = vpop.f32.mrf.mxu0
        %v2297 = vadd.f32 %v2208, %v2296
        %2298 = vmatmul.bf16.gmra.mxu0 %v1377
        %v2299 = vpop.f32.mrf.mxu0
        %v2300 = vadd.f32 %v2211, %v2299
        %v2301 = vpop.f32.mrf.mxu0
        %v2302 = vadd.f32 %v2213, %v2301
        %2303 = vmatmul.bf16.gmra.mxu0 %v1389
        %v2304 = vpop.f32.mrf.mxu0
        %v2305 = vadd.f32 %v2216, %v2304
        %v2306 = vpop.f32.mrf.mxu0
        %v2307 = vadd.f32 %v2218, %v2306
        %2308 = vmatmul.bf16.gmra.mxu0 %v1401
        %v2309 = vpop.f32.mrf.mxu0
        %v2310 = vadd.f32 %v2221, %v2309
        %v2311 = vpop.f32.mrf.mxu0
        %v2312 = vadd.f32 %v2223, %v2311
        %2313 = vmatmul.bf16.gmra.mxu0 %v1413
        %v2314 = vpop.f32.mrf.mxu0
        %v2315 = vadd.f32 %v2226, %v2314
        %v2316 = vpop.f32.mrf.mxu0
        %v2317 = vadd.f32 %v2228, %v2316
        %2318 = vmatmul.bf16.gmra.mxu0 %v1425
        %v2319 = vpop.f32.mrf.mxu0
        %v2320 = vadd.f32 %v2231, %v2319
        %v2321 = vpop.f32.mrf.mxu0
        %v2322 = vadd.f32 %v2233, %v2321
        %2323 = vmatmul.bf16.gmra.mxu0 %v1437
        %v2324 = vpop.f32.mrf.mxu0
        %v2325 = vadd.f32 %v2236, %v2324
        %v2326 = vpop.f32.mrf.mxu0
        %v2327 = vadd.f32 %v2238, %v2326
        %2328 = vdwg.mxu0
        %2329 = vmatpush.bf16.msra.mxu0 %v2030
        %2330 = vmatpush.bf16.msra.mxu0 %v2029
        %2331 = vmatpush.bf16.msra.mxu0 %v2028
        %2332 = vmatpush.bf16.msra.mxu0 %v2027
        %2333 = vmatpush.bf16.msra.mxu0 %v2026
        %2334 = vmatpush.bf16.msra.mxu0 %v2025
        %2335 = vmatpush.bf16.msra.mxu0 %v2024
        %2336 = vmatpush.bf16.msra.mxu0 %v2023
        %2337 = vmatmul.bf16.gmra.mxu0 %v1457
        %v2338 = vpop.f32.mrf.mxu0
        %v2339 = vadd.f32 %v2250, %v2338
        %v2340 = vpop.f32.mrf.mxu0
        %v2341 = vadd.f32 %v2252, %v2340
        %2342 = vmatmul.bf16.gmra.mxu0 %v1460
        %v2343 = vpop.f32.mrf.mxu0
        %v2344 = vadd.f32 %v2255, %v2343
        %v2345 = vpop.f32.mrf.mxu0
        %v2346 = vadd.f32 %v2257, %v2345
        %2347 = vmatmul.bf16.gmra.mxu0 %v1463
        %v2348 = vpop.f32.mrf.mxu0
        %v2349 = vadd.f32 %v2260, %v2348
        %v2350 = vpop.f32.mrf.mxu0
        %v2351 = vadd.f32 %v2262, %v2350
        %2352 = vmatmul.bf16.gmra.mxu0 %v1466
        %v2353 = vpop.f32.mrf.mxu0
        %v2354 = vadd.f32 %v2265, %v2353
        %v2355 = vpop.f32.mrf.mxu0
        %v2356 = vadd.f32 %v2267, %v2355
        %2357 = vmatmul.bf16.gmra.mxu0 %v1469
        %v2358 = vpop.f32.mrf.mxu0
        %v2359 = vadd.f32 %v2270, %v2358
        %v2360 = vpop.f32.mrf.mxu0
        %v2361 = vadd.f32 %v2272, %v2360
        %2362 = vmatmul.bf16.gmra.mxu0 %v1472
        %v2363 = vpop.f32.mrf.mxu0
        %v2364 = vadd.f32 %v2275, %v2363
        %v2365 = vpop.f32.mrf.mxu0
        %v2366 = vadd.f32 %v2277, %v2365
        %2367 = vmatmul.bf16.gmra.mxu0 %v1475
        %v2368 = vpop.f32.mrf.mxu0
        %v2369 = vadd.f32 %v2280, %v2368
        %v2370 = vpop.f32.mrf.mxu0
        %v2371 = vadd.f32 %v2282, %v2370
        %2372 = vmatmul.bf16.gmra.mxu0 %v1478
        %v2373 = vpop.f32.mrf.mxu0
        %v2374 = vadd.f32 %v2285, %v2373
        %v2375 = vpop.f32.mrf.mxu0
        %v2376 = vadd.f32 %v2287, %v2375
        %2377 = vmatmul.bf16.gmra.mxu0 %v1481
        %v2378 = vpop.f32.mrf.mxu0
        %v2379 = vadd.f32 %v2290, %v2378
        %v2380 = vpop.f32.mrf.mxu0
        %v2381 = vadd.f32 %v2292, %v2380
        %2382 = vmatmul.bf16.gmra.mxu0 %v1484
        %v2383 = vpop.f32.mrf.mxu0
        %v2384 = vadd.f32 %v2295, %v2383
        %v2385 = vpop.f32.mrf.mxu0
        %v2386 = vadd.f32 %v2297, %v2385
        %2387 = vmatmul.bf16.gmra.mxu0 %v1487
        %v2388 = vpop.f32.mrf.mxu0
        %v2389 = vadd.f32 %v2300, %v2388
        %v2390 = vpop.f32.mrf.mxu0
        %v2391 = vadd.f32 %v2302, %v2390
        %2392 = vmatmul.bf16.gmra.mxu0 %v1490
        %v2393 = vpop.f32.mrf.mxu0
        %v2394 = vadd.f32 %v2305, %v2393
        %v2395 = vpop.f32.mrf.mxu0
        %v2396 = vadd.f32 %v2307, %v2395
        %2397 = vmatmul.bf16.gmra.mxu0 %v1493
        %v2398 = vpop.f32.mrf.mxu0
        %v2399 = vadd.f32 %v2310, %v2398
        %v2400 = vpop.f32.mrf.mxu0
        %v2401 = vadd.f32 %v2312, %v2400
        %2402 = vmatmul.bf16.gmra.mxu0 %v1496
        %v2403 = vpop.f32.mrf.mxu0
        %v2404 = vadd.f32 %v2315, %v2403
        %v2405 = vpop.f32.mrf.mxu0
        %v2406 = vadd.f32 %v2317, %v2405
        %2407 = vmatmul.bf16.gmra.mxu0 %v1499
        %v2408 = vpop.f32.mrf.mxu0
        %v2409 = vadd.f32 %v2320, %v2408
        %v2410 = vpop.f32.mrf.mxu0
        %v2411 = vadd.f32 %v2322, %v2410
        %2412 = vmatmul.bf16.gmra.mxu0 %v1502
        %v2413 = vpop.f32.mrf.mxu0
        %v2414 = vadd.f32 %v2325, %v2413
        %v2415 = vpop.f32.mrf.mxu0
        %v2416 = vadd.f32 %v2327, %v2415
        %2417 = vdwg.mxu0
        %2418 = vmatpush.bf16.msra.mxu0 %v2038
        %2419 = vmatpush.bf16.msra.mxu0 %v2037
        %2420 = vmatpush.bf16.msra.mxu0 %v2036
        %2421 = vmatpush.bf16.msra.mxu0 %v2035
        %2422 = vmatpush.bf16.msra.mxu0 %v2034
        %2423 = vmatpush.bf16.msra.mxu0 %v2033
        %2424 = vmatpush.bf16.msra.mxu0 %v2032
        %2425 = vmatpush.bf16.msra.mxu0 %v2031
        %2426 = vmatmul.bf16.gmra.mxu0 %v1166
        %v2427 = vpop.f32.mrf.mxu0
        %v2428 = vadd.f32 %v2339, %v2427
        %v2429 = vpop.f32.mrf.mxu0
        %v2430 = vadd.f32 %v2341, %v2429
        %2431 = vmatmul.bf16.gmra.mxu0 %v1167
        %v2432 = vpop.f32.mrf.mxu0
        %v2433 = vadd.f32 %v2344, %v2432
        %v2434 = vpop.f32.mrf.mxu0
        %v2435 = vadd.f32 %v2346, %v2434
        %2436 = vmatmul.bf16.gmra.mxu0 %v1168
        %v2437 = vpop.f32.mrf.mxu0
        %v2438 = vadd.f32 %v2349, %v2437
        %v2439 = vpop.f32.mrf.mxu0
        %v2440 = vadd.f32 %v2351, %v2439
        %2441 = vmatmul.bf16.gmra.mxu0 %v1169
        %v2442 = vpop.f32.mrf.mxu0
        %v2443 = vadd.f32 %v2354, %v2442
        %v2444 = vpop.f32.mrf.mxu0
        %v2445 = vadd.f32 %v2356, %v2444
        %2446 = vmatmul.bf16.gmra.mxu0 %v1170
        %v2447 = vpop.f32.mrf.mxu0
        %v2448 = vadd.f32 %v2359, %v2447
        %v2449 = vpop.f32.mrf.mxu0
        %v2450 = vadd.f32 %v2361, %v2449
        %2451 = vmatmul.bf16.gmra.mxu0 %v1171
        %v2452 = vpop.f32.mrf.mxu0
        %v2453 = vadd.f32 %v2364, %v2452
        %v2454 = vpop.f32.mrf.mxu0
        %v2455 = vadd.f32 %v2366, %v2454
        %2456 = vmatmul.bf16.gmra.mxu0 %v1172
        %v2457 = vpop.f32.mrf.mxu0
        %v2458 = vadd.f32 %v2369, %v2457
        %v2459 = vpop.f32.mrf.mxu0
        %v2460 = vadd.f32 %v2371, %v2459
        %2461 = vmatmul.bf16.gmra.mxu0 %v1173
        %v2462 = vpop.f32.mrf.mxu0
        %v2463 = vadd.f32 %v2374, %v2462
        %v2464 = vpop.f32.mrf.mxu0
        %v2465 = vadd.f32 %v2376, %v2464
        %2466 = vmatmul.bf16.gmra.mxu0 %v1174
        %v2467 = vpop.f32.mrf.mxu0
        %v2468 = vadd.f32 %v2379, %v2467
        %v2469 = vpop.f32.mrf.mxu0
        %v2470 = vadd.f32 %v2381, %v2469
        %2471 = vmatmul.bf16.gmra.mxu0 %v1175
        %v2472 = vpop.f32.mrf.mxu0
        %v2473 = vadd.f32 %v2384, %v2472
        %v2474 = vpop.f32.mrf.mxu0
        %v2475 = vadd.f32 %v2386, %v2474
        %2476 = vmatmul.bf16.gmra.mxu0 %v1176
        %v2477 = vpop.f32.mrf.mxu0
        %v2478 = vadd.f32 %v2389, %v2477
        %v2479 = vpop.f32.mrf.mxu0
        %v2480 = vadd.f32 %v2391, %v2479
        %2481 = vmatmul.bf16.gmra.mxu0 %v1177
        %v2482 = vpop.f32.mrf.mxu0
        %v2483 = vadd.f32 %v2394, %v2482
        %v2484 = vpop.f32.mrf.mxu0
        %v2485 = vadd.f32 %v2396, %v2484
        %2486 = vmatmul.bf16.gmra.mxu0 %v1178
        %v2487 = vpop.f32.mrf.mxu0
        %v2488 = vadd.f32 %v2399, %v2487
        %v2489 = vpop.f32.mrf.mxu0
        %v2490 = vadd.f32 %v2401, %v2489
        %2491 = vmatmul.bf16.gmra.mxu0 %v1179
        %v2492 = vpop.f32.mrf.mxu0
        %v2493 = vadd.f32 %v2404, %v2492
        %v2494 = vpop.f32.mrf.mxu0
        %v2495 = vadd.f32 %v2406, %v2494
        %2496 = vmatmul.bf16.gmra.mxu0 %v1180
        %v2497 = vpop.f32.mrf.mxu0
        %v2498 = vadd.f32 %v2409, %v2497
        %v2499 = vpop.f32.mrf.mxu0
        %v2500 = vadd.f32 %v2411, %v2499
        %2501 = vmatmul.bf16.gmra.mxu0 %v1523
        %v2502 = vpop.f32.mrf.mxu0
        %v2503 = vadd.f32 %v2414, %v2502
        %v2504 = vpop.f32.mrf.mxu0
        %v2505 = vadd.f32 %v2416, %v2504
        %2506 = vdwg.mxu0
        %2507 = vmatpush.bf16.msra.mxu0 %v2046
        %2508 = vmatpush.bf16.msra.mxu0 %v2045
        %2509 = vmatpush.bf16.msra.mxu0 %v2044
        %2510 = vmatpush.bf16.msra.mxu0 %v2043
        %2511 = vmatpush.bf16.msra.mxu0 %v2042
        %2512 = vmatpush.bf16.msra.mxu0 %v2041
        %2513 = vmatpush.bf16.msra.mxu0 %v2040
        %2514 = vmatpush.bf16.msra.mxu0 %v2039
        %2515 = vmatmul.bf16.gmra.mxu0 %v1269
        %v2516 = vpop.f32.mrf.mxu0
        %v2517 = vadd.f32 %v2428, %v2516
        %v2518 = vpop.f32.mrf.mxu0
        %v2519 = vadd.f32 %v2430, %v2518
        %2520 = vmatmul.bf16.gmra.mxu0 %v1281
        %v2521 = vpop.f32.mrf.mxu0
        %v2522 = vadd.f32 %v2433, %v2521
        %v2523 = vpop.f32.mrf.mxu0
        %v2524 = vadd.f32 %v2435, %v2523
        %2525 = vmatmul.bf16.gmra.mxu0 %v1293
        %v2526 = vpop.f32.mrf.mxu0
        %v2527 = vadd.f32 %v2438, %v2526
        %v2528 = vpop.f32.mrf.mxu0
        %v2529 = vadd.f32 %v2440, %v2528
        %2530 = vmatmul.bf16.gmra.mxu0 %v1305
        %v2531 = vpop.f32.mrf.mxu0
        %v2532 = vadd.f32 %v2443, %v2531
        %v2533 = vpop.f32.mrf.mxu0
        %v2534 = vadd.f32 %v2445, %v2533
        %2535 = vmatmul.bf16.gmra.mxu0 %v1317
        %v2536 = vpop.f32.mrf.mxu0
        %v2537 = vadd.f32 %v2448, %v2536
        %v2538 = vpop.f32.mrf.mxu0
        %v2539 = vadd.f32 %v2450, %v2538
        %2540 = vmatmul.bf16.gmra.mxu0 %v1329
        %v2541 = vpop.f32.mrf.mxu0
        %v2542 = vadd.f32 %v2453, %v2541
        %v2543 = vpop.f32.mrf.mxu0
        %v2544 = vadd.f32 %v2455, %v2543
        %2545 = vmatmul.bf16.gmra.mxu0 %v1341
        %v2546 = vpop.f32.mrf.mxu0
        %v2547 = vadd.f32 %v2458, %v2546
        %v2548 = vpop.f32.mrf.mxu0
        %v2549 = vadd.f32 %v2460, %v2548
        %2550 = vmatmul.bf16.gmra.mxu0 %v1353
        %v2551 = vpop.f32.mrf.mxu0
        %v2552 = vadd.f32 %v2463, %v2551
        %v2553 = vpop.f32.mrf.mxu0
        %v2554 = vadd.f32 %v2465, %v2553
        %2555 = vmatmul.bf16.gmra.mxu0 %v1365
        %v2556 = vpop.f32.mrf.mxu0
        %v2557 = vadd.f32 %v2468, %v2556
        %v2558 = vpop.f32.mrf.mxu0
        %v2559 = vadd.f32 %v2470, %v2558
        %2560 = vmatmul.bf16.gmra.mxu0 %v1377
        %v2561 = vpop.f32.mrf.mxu0
        %v2562 = vadd.f32 %v2473, %v2561
        %v2563 = vpop.f32.mrf.mxu0
        %v2564 = vadd.f32 %v2475, %v2563
        %2565 = vmatmul.bf16.gmra.mxu0 %v1389
        %v2566 = vpop.f32.mrf.mxu0
        %v2567 = vadd.f32 %v2478, %v2566
        %v2568 = vpop.f32.mrf.mxu0
        %v2569 = vadd.f32 %v2480, %v2568
        %2570 = vmatmul.bf16.gmra.mxu0 %v1401
        %v2571 = vpop.f32.mrf.mxu0
        %v2572 = vadd.f32 %v2483, %v2571
        %v2573 = vpop.f32.mrf.mxu0
        %v2574 = vadd.f32 %v2485, %v2573
        %2575 = vmatmul.bf16.gmra.mxu0 %v1413
        %v2576 = vpop.f32.mrf.mxu0
        %v2577 = vadd.f32 %v2488, %v2576
        %v2578 = vpop.f32.mrf.mxu0
        %v2579 = vadd.f32 %v2490, %v2578
        %2580 = vmatmul.bf16.gmra.mxu0 %v1425
        %v2581 = vpop.f32.mrf.mxu0
        %v2582 = vadd.f32 %v2493, %v2581
        %v2583 = vpop.f32.mrf.mxu0
        %v2584 = vadd.f32 %v2495, %v2583
        %2585 = vmatmul.bf16.gmra.mxu0 %v1437
        %v2586 = vpop.f32.mrf.mxu0
        %v2587 = vadd.f32 %v2498, %v2586
        %v2588 = vpop.f32.mrf.mxu0
        %v2589 = vadd.f32 %v2500, %v2588
        %2590 = vmatmul.bf16.gmra.mxu0 %v1539
        %v2591 = vpop.f32.mrf.mxu0
        %v2592 = vadd.f32 %v2503, %v2591
        %v2593 = vpop.f32.mrf.mxu0
        %v2594 = vadd.f32 %v2505, %v2593
        %2595 = vdwg.mxu0
        %2596 = vmatpush.bf16.msra.mxu0 %v2054
        %2597 = vmatpush.bf16.msra.mxu0 %v2053
        %2598 = vmatpush.bf16.msra.mxu0 %v2052
        %2599 = vmatpush.bf16.msra.mxu0 %v2051
        %2600 = vmatpush.bf16.msra.mxu0 %v2050
        %2601 = vmatpush.bf16.msra.mxu0 %v2049
        %2602 = vmatpush.bf16.msra.mxu0 %v2048
        %2603 = vmatpush.bf16.msra.mxu0 %v2047
        %2604 = vmatmul.bf16.gmra.mxu0 %v1460
        %v2605 = vpop.f32.mrf.mxu0
        %v2606 = vadd.f32 %v2517, %v2605
        %v2607 = vpop.f32.mrf.mxu0
        %v2608 = vadd.f32 %v2519, %v2607
        %2609 = vmatmul.bf16.gmra.mxu0 %v1463
        %v2610 = vpop.f32.mrf.mxu0
        %v2611 = vadd.f32 %v2522, %v2610
        %v2612 = vpop.f32.mrf.mxu0
        %v2613 = vadd.f32 %v2524, %v2612
        %2614 = vmatmul.bf16.gmra.mxu0 %v1466
        %v2615 = vpop.f32.mrf.mxu0
        %v2616 = vadd.f32 %v2527, %v2615
        %v2617 = vpop.f32.mrf.mxu0
        %v2618 = vadd.f32 %v2529, %v2617
        %2619 = vmatmul.bf16.gmra.mxu0 %v1469
        %v2620 = vpop.f32.mrf.mxu0
        %v2621 = vadd.f32 %v2532, %v2620
        %v2622 = vpop.f32.mrf.mxu0
        %v2623 = vadd.f32 %v2534, %v2622
        %2624 = vmatmul.bf16.gmra.mxu0 %v1472
        %v2625 = vpop.f32.mrf.mxu0
        %v2626 = vadd.f32 %v2537, %v2625
        %v2627 = vpop.f32.mrf.mxu0
        %v2628 = vadd.f32 %v2539, %v2627
        %2629 = vmatmul.bf16.gmra.mxu0 %v1475
        %v2630 = vpop.f32.mrf.mxu0
        %v2631 = vadd.f32 %v2542, %v2630
        %v2632 = vpop.f32.mrf.mxu0
        %v2633 = vadd.f32 %v2544, %v2632
        %2634 = vmatmul.bf16.gmra.mxu0 %v1478
        %v2635 = vpop.f32.mrf.mxu0
        %v2636 = vadd.f32 %v2547, %v2635
        %v2637 = vpop.f32.mrf.mxu0
        %v2638 = vadd.f32 %v2549, %v2637
        %2639 = vmatmul.bf16.gmra.mxu0 %v1481
        %v2640 = vpop.f32.mrf.mxu0
        %v2641 = vadd.f32 %v2552, %v2640
        %v2642 = vpop.f32.mrf.mxu0
        %v2643 = vadd.f32 %v2554, %v2642
        %2644 = vmatmul.bf16.gmra.mxu0 %v1484
        %v2645 = vpop.f32.mrf.mxu0
        %v2646 = vadd.f32 %v2557, %v2645
        %v2647 = vpop.f32.mrf.mxu0
        %v2648 = vadd.f32 %v2559, %v2647
        %2649 = vmatmul.bf16.gmra.mxu0 %v1487
        %v2650 = vpop.f32.mrf.mxu0
        %v2651 = vadd.f32 %v2562, %v2650
        %v2652 = vpop.f32.mrf.mxu0
        %v2653 = vadd.f32 %v2564, %v2652
        %2654 = vmatmul.bf16.gmra.mxu0 %v1490
        %v2655 = vpop.f32.mrf.mxu0
        %v2656 = vadd.f32 %v2567, %v2655
        %v2657 = vpop.f32.mrf.mxu0
        %v2658 = vadd.f32 %v2569, %v2657
        %2659 = vmatmul.bf16.gmra.mxu0 %v1493
        %v2660 = vpop.f32.mrf.mxu0
        %v2661 = vadd.f32 %v2572, %v2660
        %v2662 = vpop.f32.mrf.mxu0
        %v2663 = vadd.f32 %v2574, %v2662
        %2664 = vmatmul.bf16.gmra.mxu0 %v1496
        %v2665 = vpop.f32.mrf.mxu0
        %v2666 = vadd.f32 %v2577, %v2665
        %v2667 = vpop.f32.mrf.mxu0
        %v2668 = vadd.f32 %v2579, %v2667
        %2669 = vmatmul.bf16.gmra.mxu0 %v1499
        %v2670 = vpop.f32.mrf.mxu0
        %v2671 = vadd.f32 %v2582, %v2670
        %v2672 = vpop.f32.mrf.mxu0
        %v2673 = vadd.f32 %v2584, %v2672
        %2674 = vmatmul.bf16.gmra.mxu0 %v1502
        %v2675 = vpop.f32.mrf.mxu0
        %v2676 = vadd.f32 %v2587, %v2675
        %v2677 = vpop.f32.mrf.mxu0
        %v2678 = vadd.f32 %v2589, %v2677
        %2679 = vmatmul.bf16.gmra.mxu0 %v1543
        %v2680 = vpop.f32.mrf.mxu0
        %v2681 = vadd.f32 %v2592, %v2680
        %v2682 = vpop.f32.mrf.mxu0
        %v2683 = vadd.f32 %v2594, %v2682
        %2684 = vdwg.mxu0
        %2685 = vmatpush.bf16.msra.mxu0 %v2062
        %2686 = vmatpush.bf16.msra.mxu0 %v2061
        %2687 = vmatpush.bf16.msra.mxu0 %v2060
        %2688 = vmatpush.bf16.msra.mxu0 %v2059
        %2689 = vmatpush.bf16.msra.mxu0 %v2058
        %2690 = vmatpush.bf16.msra.mxu0 %v2057
        %2691 = vmatpush.bf16.msra.mxu0 %v2056
        %2692 = vmatpush.bf16.msra.mxu0 %v2055
        %2693 = vmatmul.bf16.gmra.mxu0 %v1167
        %v2694 = vpop.f32.mrf.mxu0
        %v2695 = vadd.f32 %v2606, %v2694
        %v2696 = vpop.f32.mrf.mxu0
        %v2697 = vadd.f32 %v2608, %v2696
        %2698 = vmatmul.bf16.gmra.mxu0 %v1168
        %v2699 = vpop.f32.mrf.mxu0
        %v2700 = vadd.f32 %v2611, %v2699
        %v2701 = vpop.f32.mrf.mxu0
        %v2702 = vadd.f32 %v2613, %v2701
        %2703 = vmatmul.bf16.gmra.mxu0 %v1169
        %v2704 = vpop.f32.mrf.mxu0
        %v2705 = vadd.f32 %v2616, %v2704
        %v2706 = vpop.f32.mrf.mxu0
        %v2707 = vadd.f32 %v2618, %v2706
        %2708 = vmatmul.bf16.gmra.mxu0 %v1170
        %v2709 = vpop.f32.mrf.mxu0
        %v2710 = vadd.f32 %v2621, %v2709
        %v2711 = vpop.f32.mrf.mxu0
        %v2712 = vadd.f32 %v2623, %v2711
        %2713 = vmatmul.bf16.gmra.mxu0 %v1171
        %v2714 = vpop.f32.mrf.mxu0
        %v2715 = vadd.f32 %v2626, %v2714
        %v2716 = vpop.f32.mrf.mxu0
        %v2717 = vadd.f32 %v2628, %v2716
        %2718 = vmatmul.bf16.gmra.mxu0 %v1172
        %v2719 = vpop.f32.mrf.mxu0
        %v2720 = vadd.f32 %v2631, %v2719
        %v2721 = vpop.f32.mrf.mxu0
        %v2722 = vadd.f32 %v2633, %v2721
        %2723 = vmatmul.bf16.gmra.mxu0 %v1173
        %v2724 = vpop.f32.mrf.mxu0
        %v2725 = vadd.f32 %v2636, %v2724
        %v2726 = vpop.f32.mrf.mxu0
        %v2727 = vadd.f32 %v2638, %v2726
        %2728 = vmatmul.bf16.gmra.mxu0 %v1174
        %v2729 = vpop.f32.mrf.mxu0
        %v2730 = vadd.f32 %v2641, %v2729
        %v2731 = vpop.f32.mrf.mxu0
        %v2732 = vadd.f32 %v2643, %v2731
        %2733 = vmatmul.bf16.gmra.mxu0 %v1175
        %v2734 = vpop.f32.mrf.mxu0
        %v2735 = vadd.f32 %v2646, %v2734
        %v2736 = vpop.f32.mrf.mxu0
        %v2737 = vadd.f32 %v2648, %v2736
        %2738 = vmatmul.bf16.gmra.mxu0 %v1176
        %v2739 = vpop.f32.mrf.mxu0
        %v2740 = vadd.f32 %v2651, %v2739
        %v2741 = vpop.f32.mrf.mxu0
        %v2742 = vadd.f32 %v2653, %v2741
        %2743 = vmatmul.bf16.gmra.mxu0 %v1177
        %v2744 = vpop.f32.mrf.mxu0
        %v2745 = vadd.f32 %v2656, %v2744
        %v2746 = vpop.f32.mrf.mxu0
        %v2747 = vadd.f32 %v2658, %v2746
        %2748 = vmatmul.bf16.gmra.mxu0 %v1178
        %v2749 = vpop.f32.mrf.mxu0
        %v2750 = vadd.f32 %v2661, %v2749
        %v2751 = vpop.f32.mrf.mxu0
        %v2752 = vadd.f32 %v2663, %v2751
        %2753 = vmatmul.bf16.gmra.mxu0 %v1179
        %v2754 = vpop.f32.mrf.mxu0
        %v2755 = vadd.f32 %v2666, %v2754
        %v2756 = vpop.f32.mrf.mxu0
        %v2757 = vadd.f32 %v2668, %v2756
        %2758 = vmatmul.bf16.gmra.mxu0 %v1180
        %v2759 = vpop.f32.mrf.mxu0
        %v2760 = vadd.f32 %v2671, %v2759
        %v2761 = vpop.f32.mrf.mxu0
        %v2762 = vadd.f32 %v2673, %v2761
        %2763 = vmatmul.bf16.gmra.mxu0 %v1523
        %v2764 = vpop.f32.mrf.mxu0
        %v2765 = vadd.f32 %v2676, %v2764
        %v2766 = vpop.f32.mrf.mxu0
        %v2767 = vadd.f32 %v2678, %v2766
        %2768 = vmatmul.bf16.gmra.mxu0 %v1549
        %v2769 = vpop.f32.mrf.mxu0
        %v2770 = vadd.f32 %v2681, %v2769
        %v2771 = vpop.f32.mrf.mxu0
        %v2772 = vadd.f32 %v2683, %v2771
        %2773 = vdwg.mxu0
        %2774 = vmatpush.bf16.msra.mxu0 %v2070
        %2775 = vmatpush.bf16.msra.mxu0 %v2069
        %2776 = vmatpush.bf16.msra.mxu0 %v2068
        %2777 = vmatpush.bf16.msra.mxu0 %v2067
        %2778 = vmatpush.bf16.msra.mxu0 %v2066
        %2779 = vmatpush.bf16.msra.mxu0 %v2065
        %2780 = vmatpush.bf16.msra.mxu0 %v2064
        %2781 = vmatpush.bf16.msra.mxu0 %v2063
        %2782 = vmatmul.bf16.gmra.mxu0 %v1281
        %v2783 = vpop.f32.mrf.mxu0
        %v2784 = vadd.f32 %v2695, %v2783
        %v2785 = vpop.f32.mrf.mxu0
        %v2786 = vadd.f32 %v2697, %v2785
        %2787 = vmatmul.bf16.gmra.mxu0 %v1293
        %v2788 = vpop.f32.mrf.mxu0
        %v2789 = vadd.f32 %v2700, %v2788
        %v2790 = vpop.f32.mrf.mxu0
        %v2791 = vadd.f32 %v2702, %v2790
        %2792 = vmatmul.bf16.gmra.mxu0 %v1305
        %v2793 = vpop.f32.mrf.mxu0
        %v2794 = vadd.f32 %v2705, %v2793
        %v2795 = vpop.f32.mrf.mxu0
        %v2796 = vadd.f32 %v2707, %v2795
        %2797 = vmatmul.bf16.gmra.mxu0 %v1317
        %v2798 = vpop.f32.mrf.mxu0
        %v2799 = vadd.f32 %v2710, %v2798
        %v2800 = vpop.f32.mrf.mxu0
        %v2801 = vadd.f32 %v2712, %v2800
        %2802 = vmatmul.bf16.gmra.mxu0 %v1329
        %v2803 = vpop.f32.mrf.mxu0
        %v2804 = vadd.f32 %v2715, %v2803
        %v2805 = vpop.f32.mrf.mxu0
        %v2806 = vadd.f32 %v2717, %v2805
        %2807 = vmatmul.bf16.gmra.mxu0 %v1341
        %v2808 = vpop.f32.mrf.mxu0
        %v2809 = vadd.f32 %v2720, %v2808
        %v2810 = vpop.f32.mrf.mxu0
        %v2811 = vadd.f32 %v2722, %v2810
        %2812 = vmatmul.bf16.gmra.mxu0 %v1353
        %v2813 = vpop.f32.mrf.mxu0
        %v2814 = vadd.f32 %v2725, %v2813
        %v2815 = vpop.f32.mrf.mxu0
        %v2816 = vadd.f32 %v2727, %v2815
        %2817 = vmatmul.bf16.gmra.mxu0 %v1365
        %v2818 = vpop.f32.mrf.mxu0
        %v2819 = vadd.f32 %v2730, %v2818
        %v2820 = vpop.f32.mrf.mxu0
        %v2821 = vadd.f32 %v2732, %v2820
        %2822 = vmatmul.bf16.gmra.mxu0 %v1377
        %v2823 = vpop.f32.mrf.mxu0
        %v2824 = vadd.f32 %v2735, %v2823
        %v2825 = vpop.f32.mrf.mxu0
        %v2826 = vadd.f32 %v2737, %v2825
        %2827 = vmatmul.bf16.gmra.mxu0 %v1389
        %v2828 = vpop.f32.mrf.mxu0
        %v2829 = vadd.f32 %v2740, %v2828
        %v2830 = vpop.f32.mrf.mxu0
        %v2831 = vadd.f32 %v2742, %v2830
        %2832 = vmatmul.bf16.gmra.mxu0 %v1401
        %v2833 = vpop.f32.mrf.mxu0
        %v2834 = vadd.f32 %v2745, %v2833
        %v2835 = vpop.f32.mrf.mxu0
        %v2836 = vadd.f32 %v2747, %v2835
        %2837 = vmatmul.bf16.gmra.mxu0 %v1413
        %v2838 = vpop.f32.mrf.mxu0
        %v2839 = vadd.f32 %v2750, %v2838
        %v2840 = vpop.f32.mrf.mxu0
        %v2841 = vadd.f32 %v2752, %v2840
        %2842 = vmatmul.bf16.gmra.mxu0 %v1425
        %v2843 = vpop.f32.mrf.mxu0
        %v2844 = vadd.f32 %v2755, %v2843
        %v2845 = vpop.f32.mrf.mxu0
        %v2846 = vadd.f32 %v2757, %v2845
        %2847 = vmatmul.bf16.gmra.mxu0 %v1437
        %v2848 = vpop.f32.mrf.mxu0
        %v2849 = vadd.f32 %v2760, %v2848
        %v2850 = vpop.f32.mrf.mxu0
        %v2851 = vadd.f32 %v2762, %v2850
        %2852 = vmatmul.bf16.gmra.mxu0 %v1539
        %v2853 = vpop.f32.mrf.mxu0
        %v2854 = vadd.f32 %v2765, %v2853
        %v2855 = vpop.f32.mrf.mxu0
        %v2856 = vadd.f32 %v2767, %v2855
        %2857 = vmatmul.bf16.gmra.mxu0 %v1565
        %v2858 = vpop.f32.mrf.mxu0
        %v2859 = vadd.f32 %v2770, %v2858
        %v2860 = vpop.f32.mrf.mxu0
        %v2861 = vadd.f32 %v2772, %v2860
        %2862 = vdwg.mxu0
        %2863 = vmatpush.bf16.msra.mxu0 %v2078
        %2864 = vmatpush.bf16.msra.mxu0 %v2077
        %2865 = vmatpush.bf16.msra.mxu0 %v2076
        %2866 = vmatpush.bf16.msra.mxu0 %v2075
        %2867 = vmatpush.bf16.msra.mxu0 %v2074
        %2868 = vmatpush.bf16.msra.mxu0 %v2073
        %2869 = vmatpush.bf16.msra.mxu0 %v2072
        %2870 = vmatpush.bf16.msra.mxu0 %v2071
        %2871 = vmatmul.bf16.gmra.mxu0 %v1463
        %v2872 = vpop.f32.mrf.mxu0
        %v2873 = vadd.f32 %v2784, %v2872
        %v2874 = vpop.f32.mrf.mxu0
        %v2875 = vadd.f32 %v2786, %v2874
        %2876 = vmatmul.bf16.gmra.mxu0 %v1466
        %v2877 = vpop.f32.mrf.mxu0
        %v2878 = vadd.f32 %v2789, %v2877
        %v2879 = vpop.f32.mrf.mxu0
        %v2880 = vadd.f32 %v2791, %v2879
        %2881 = vmatmul.bf16.gmra.mxu0 %v1469
        %v2882 = vpop.f32.mrf.mxu0
        %v2883 = vadd.f32 %v2794, %v2882
        %v2884 = vpop.f32.mrf.mxu0
        %v2885 = vadd.f32 %v2796, %v2884
        %2886 = vmatmul.bf16.gmra.mxu0 %v1472
        %v2887 = vpop.f32.mrf.mxu0
        %v2888 = vadd.f32 %v2799, %v2887
        %v2889 = vpop.f32.mrf.mxu0
        %v2890 = vadd.f32 %v2801, %v2889
        %2891 = vmatmul.bf16.gmra.mxu0 %v1475
        %v2892 = vpop.f32.mrf.mxu0
        %v2893 = vadd.f32 %v2804, %v2892
        %v2894 = vpop.f32.mrf.mxu0
        %v2895 = vadd.f32 %v2806, %v2894
        %2896 = vmatmul.bf16.gmra.mxu0 %v1478
        %v2897 = vpop.f32.mrf.mxu0
        %v2898 = vadd.f32 %v2809, %v2897
        %v2899 = vpop.f32.mrf.mxu0
        %v2900 = vadd.f32 %v2811, %v2899
        %2901 = vmatmul.bf16.gmra.mxu0 %v1481
        %v2902 = vpop.f32.mrf.mxu0
        %v2903 = vadd.f32 %v2814, %v2902
        %v2904 = vpop.f32.mrf.mxu0
        %v2905 = vadd.f32 %v2816, %v2904
        %2906 = vmatmul.bf16.gmra.mxu0 %v1484
        %v2907 = vpop.f32.mrf.mxu0
        %v2908 = vadd.f32 %v2819, %v2907
        %v2909 = vpop.f32.mrf.mxu0
        %v2910 = vadd.f32 %v2821, %v2909
        %2911 = vmatmul.bf16.gmra.mxu0 %v1487
        %v2912 = vpop.f32.mrf.mxu0
        %v2913 = vadd.f32 %v2824, %v2912
        %v2914 = vpop.f32.mrf.mxu0
        %v2915 = vadd.f32 %v2826, %v2914
        %2916 = vmatmul.bf16.gmra.mxu0 %v1490
        %v2917 = vpop.f32.mrf.mxu0
        %v2918 = vadd.f32 %v2829, %v2917
        %v2919 = vpop.f32.mrf.mxu0
        %v2920 = vadd.f32 %v2831, %v2919
        %2921 = vmatmul.bf16.gmra.mxu0 %v1493
        %v2922 = vpop.f32.mrf.mxu0
        %v2923 = vadd.f32 %v2834, %v2922
        %v2924 = vpop.f32.mrf.mxu0
        %v2925 = vadd.f32 %v2836, %v2924
        %2926 = vmatmul.bf16.gmra.mxu0 %v1496
        %v2927 = vpop.f32.mrf.mxu0
        %v2928 = vadd.f32 %v2839, %v2927
        %v2929 = vpop.f32.mrf.mxu0
        %v2930 = vadd.f32 %v2841, %v2929
        %2931 = vmatmul.bf16.gmra.mxu0 %v1499
        %v2932 = vpop.f32.mrf.mxu0
        %v2933 = vadd.f32 %v2844, %v2932
        %v2934 = vpop.f32.mrf.mxu0
        %v2935 = vadd.f32 %v2846, %v2934
        %2936 = vmatmul.bf16.gmra.mxu0 %v1502
        %v2937 = vpop.f32.mrf.mxu0
        %v2938 = vadd.f32 %v2849, %v2937
        %v2939 = vpop.f32.mrf.mxu0
        %v2940 = vadd.f32 %v2851, %v2939
        %2941 = vmatmul.bf16.gmra.mxu0 %v1543
        %v2942 = vpop.f32.mrf.mxu0
        %v2943 = vadd.f32 %v2854, %v2942
        %v2944 = vpop.f32.mrf.mxu0
        %v2945 = vadd.f32 %v2856, %v2944
        %2946 = vmatmul.bf16.gmra.mxu0 %v1569
        %v2947 = vpop.f32.mrf.mxu0
        %v2948 = vadd.f32 %v2859, %v2947
        %v2949 = vpop.f32.mrf.mxu0
        %v2950 = vadd.f32 %v2861, %v2949
        %2951 = vdwg.mxu0
        %v2952 = vmax.f32 %v2873, 0.0
        %v2953 = vmax.f32 %v2875, 0.0
        %v2954 = vmax.f32 %v2878, 0.0
        %v2955 = vmax.f32 %v2880, 0.0
        %v2956 = vmax.f32 %v2883, 0.0
        %v2957 = vmax.f32 %v2885, 0.0
        %v2958 = vmax.f32 %v2888, 0.0
        %v2959 = vmax.f32 %v2890, 0.0
        %v2960 = vmax.f32 %v2893, 0.0
        %v2961 = vmax.f32 %v2895, 0.0
        %v2962 = vmax.f32 %v2898, 0.0
        %v2963 = vmax.f32 %v2900, 0.0
        %v2964 = vmax.f32 %v2903, 0.0
        %v2965 = vmax.f32 %v2905, 0.0
        %v2966 = vmax.f32 %v2908, 0.0
        %v2967 = vmax.f32 %v2910, 0.0
        %v2968 = vmax.f32 %v2913, 0.0
        %v2969 = vmax.f32 %v2915, 0.0
        %v2970 = vmax.f32 %v2918, 0.0
        %v2971 = vmax.f32 %v2920, 0.0
        %v2972 = vmax.f32 %v2923, 0.0
        %v2973 = vmax.f32 %v2925, 0.0
        %v2974 = vmax.f32 %v2928, 0.0
        %v2975 = vmax.f32 %v2930, 0.0
        %v2976 = vmax.f32 %v2933, 0.0
        %v2977 = vmax.f32 %v2935, 0.0
        %v2978 = vmax.f32 %v2938, 0.0
        %v2979 = vmax.f32 %v2940, 0.0
        %v2980 = vmax.f32 %v2943, 0.0
        %v2981 = vmax.f32 %v2945, 0.0
        %v2982 = vmax.f32 %v2948, 0.0
        %v2983 = vmax.f32 %v2950, 0.0
        %v2984 = vpack.c.bf16 %v2952, %v2952
        %v2985 = vpack.c.bf16 %v2953, %v2953
        %v2986 = vpack.c.bf16 %v2954, %v2954
        %v2987 = vpack.c.bf16 %v2955, %v2955
        %v2988 = vpack.c.bf16 %v2956, %v2956
        %v2989 = vpack.c.bf16 %v2957, %v2957
        %v2990 = vpack.c.bf16 %v2958, %v2958
        %v2991 = vpack.c.bf16 %v2959, %v2959
        %v2992 = vpack.c.bf16 %v2960, %v2960
        %v2993 = vpack.c.bf16 %v2961, %v2961
        %v2994 = vpack.c.bf16 %v2962, %v2962
        %v2995 = vpack.c.bf16 %v2963, %v2963
        %v2996 = vpack.c.bf16 %v2964, %v2964
        %v2997 = vpack.c.bf16 %v2965, %v2965
        %v2998 = vpack.c.bf16 %v2966, %v2966
        %v2999 = vpack.c.bf16 %v2967, %v2967
        %v3000 = vpack.c.bf16 %v2968, %v2968
        %v3001 = vpack.c.bf16 %v2969, %v2969
        %v3002 = vpack.c.bf16 %v2970, %v2970
        %v3003 = vpack.c.bf16 %v2971, %v2971
        %v3004 = vpack.c.bf16 %v2972, %v2972
        %v3005 = vpack.c.bf16 %v2973, %v2973
        %v3006 = vpack.c.bf16 %v2974, %v2974
        %v3007 = vpack.c.bf16 %v2975, %v2975
        %v3008 = vpack.c.bf16 %v2976, %v2976
        %v3009 = vpack.c.bf16 %v2977, %v2977
        %v3010 = vpack.c.bf16 %v2978, %v2978
        %v3011 = vpack.c.bf16 %v2979, %v2979
        %v3012 = vpack.c.bf16 %v2980, %v2980
        %v3013 = vpack.c.bf16 %v2981, %v2981
        %v3014 = vpack.c.bf16 %v2982, %v2982
        %v3015 = vpack.c.bf16 %v2983, %v2983
        %v3017 = vshrl.u32 %v2984, 16
        %v3019 = vrot.slane %v3017, 7
        %v3020 = vshll.u32 %v2984, 16
        %v3022 = vor.u32 %v3019, %v3020
        %v3023 = vrot.slane %v3019, 4
        %v3025 = vshrl.u32 %v2985, 16
        %v3027 = vrot.slane %v3025, 7
        %v3028 = vshll.u32 %v2985, 16
        %v3030 = vor.u32 %v3027, %v3028
        %v3031 = vsel %vm611, %v3023, %v3030
        %v3032 = vrot.slane %v3027, 4
        %v3034 = vshrl.u32 %v2986, 16
        %v3036 = vrot.slane %v3034, 7
        %v3037 = vshll.u32 %v2986, 16
        %v3039 = vor.u32 %v3036, %v3037
        %v3040 = vrot.slane %v3036, 4
        %v3042 = vshrl.u32 %v2987, 16
        %v3044 = vrot.slane %v3042, 7
        %v3045 = vshll.u32 %v2987, 16
        %v3047 = vor.u32 %v3044, %v3045
        %v3048 = vsel %vm611, %v3040, %v3047
        %v3049 = vrot.slane %v3044, 4
        %v3051 = vshrl.u32 %v2988, 16
        %v3053 = vrot.slane %v3051, 7
        %v3054 = vshll.u32 %v2988, 16
        %v3056 = vor.u32 %v3053, %v3054
        %v3057 = vrot.slane %v3053, 4
        %v3059 = vshrl.u32 %v2989, 16
        %v3061 = vrot.slane %v3059, 7
        %v3062 = vshll.u32 %v2989, 16
        %v3064 = vor.u32 %v3061, %v3062
        %v3065 = vsel %vm611, %v3057, %v3064
        %v3066 = vrot.slane %v3061, 4
        %v3068 = vshrl.u32 %v2990, 16
        %v3070 = vrot.slane %v3068, 7
        %v3071 = vshll.u32 %v2990, 16
        %v3073 = vor.u32 %v3070, %v3071
        %v3074 = vrot.slane %v3070, 4
        %v3076 = vshrl.u32 %v2991, 16
        %v3078 = vrot.slane %v3076, 7
        %v3079 = vshll.u32 %v2991, 16
        %v3081 = vor.u32 %v3078, %v3079
        %v3082 = vsel %vm611, %v3074, %v3081
        %v3083 = vrot.slane %v3078, 4
        %v3085 = vshrl.u32 %v2992, 16
        %v3087 = vrot.slane %v3085, 7
        %v3088 = vshll.u32 %v2992, 16
        %v3090 = vor.u32 %v3087, %v3088
        %v3091 = vrot.slane %v3087, 4
        %v3093 = vshrl.u32 %v2993, 16
        %v3095 = vrot.slane %v3093, 7
        %v3096 = vshll.u32 %v2993, 16
        %v3098 = vor.u32 %v3095, %v3096
        %v3099 = vsel %vm611, %v3091, %v3098
        %v3100 = vrot.slane %v3095, 4
        %v3102 = vshrl.u32 %v2994, 16
        %v3104 = vrot.slane %v3102, 7
        %v3105 = vshll.u32 %v2994, 16
        %v3107 = vor.u32 %v3104, %v3105
        %v3108 = vrot.slane %v3104, 4
        %v3110 = vshrl.u32 %v2995, 16
        %v3112 = vrot.slane %v3110, 7
        %v3113 = vshll.u32 %v2995, 16
        %v3115 = vor.u32 %v3112, %v3113
        %v3116 = vsel %vm611, %v3108, %v3115
        %v3117 = vrot.slane %v3112, 4
        %v3119 = vshrl.u32 %v2996, 16
        %v3121 = vrot.slane %v3119, 7
        %v3122 = vshll.u32 %v2996, 16
        %v3124 = vor.u32 %v3121, %v3122
        %v3125 = vrot.slane %v3121, 4
        %v3127 = vshrl.u32 %v2997, 16
        %v3129 = vrot.slane %v3127, 7
        %v3130 = vshll.u32 %v2997, 16
        %v3132 = vor.u32 %v3129, %v3130
        %v3133 = vsel %vm611, %v3125, %v3132
        %v3134 = vrot.slane %v3129, 4
        %v3136 = vshrl.u32 %v2998, 16
        %v3138 = vrot.slane %v3136, 7
        %v3139 = vshll.u32 %v2998, 16
        %v3141 = vor.u32 %v3138, %v3139
        %v3142 = vrot.slane %v3138, 4
        %v3144 = vshrl.u32 %v2999, 16
        %v3146 = vrot.slane %v3144, 7
        %v3147 = vshll.u32 %v2999, 16
        %v3149 = vor.u32 %v3146, %v3147
        %v3150 = vsel %vm611, %v3142, %v3149
        %v3151 = vrot.slane %v3146, 4
        %v3153 = vshrl.u32 %v3000, 16
        %v3155 = vrot.slane %v3153, 7
        %v3156 = vshll.u32 %v3000, 16
        %v3158 = vor.u32 %v3155, %v3156
        %v3159 = vrot.slane %v3155, 4
        %v3161 = vshrl.u32 %v3001, 16
        %v3163 = vrot.slane %v3161, 7
        %v3164 = vshll.u32 %v3001, 16
        %v3166 = vor.u32 %v3163, %v3164
        %v3167 = vsel %vm611, %v3159, %v3166
        %v3168 = vrot.slane %v3163, 4
        %v3170 = vshrl.u32 %v3002, 16
        %v3172 = vrot.slane %v3170, 7
        %v3173 = vshll.u32 %v3002, 16
        %v3175 = vor.u32 %v3172, %v3173
        %v3176 = vrot.slane %v3172, 4
        %v3178 = vshrl.u32 %v3003, 16
        %v3180 = vrot.slane %v3178, 7
        %v3181 = vshll.u32 %v3003, 16
        %v3183 = vor.u32 %v3180, %v3181
        %v3184 = vsel %vm611, %v3176, %v3183
        %v3185 = vrot.slane %v3180, 4
        %v3187 = vshrl.u32 %v3004, 16
        %v3189 = vrot.slane %v3187, 7
        %v3190 = vshll.u32 %v3004, 16
        %v3192 = vor.u32 %v3189, %v3190
        %v3193 = vrot.slane %v3189, 4
        %v3195 = vshrl.u32 %v3005, 16
        %v3197 = vrot.slane %v3195, 7
        %v3198 = vshll.u32 %v3005, 16
        %v3200 = vor.u32 %v3197, %v3198
        %v3201 = vsel %vm611, %v3193, %v3200
        %v3202 = vrot.slane %v3197, 4
        %v3204 = vshrl.u32 %v3006, 16
        %v3206 = vrot.slane %v3204, 7
        %v3207 = vshll.u32 %v3006, 16
        %v3209 = vor.u32 %v3206, %v3207
        %v3210 = vrot.slane %v3206, 4
        %v3212 = vshrl.u32 %v3007, 16
        %v3214 = vrot.slane %v3212, 7
        %v3215 = vshll.u32 %v3007, 16
        %v3217 = vor.u32 %v3214, %v3215
        %v3218 = vsel %vm611, %v3210, %v3217
        %v3219 = vrot.slane %v3214, 4
        %v3221 = vshrl.u32 %v3008, 16
        %v3223 = vrot.slane %v3221, 7
        %v3224 = vshll.u32 %v3008, 16
        %v3226 = vor.u32 %v3223, %v3224
        %v3227 = vrot.slane %v3223, 4
        %v3229 = vshrl.u32 %v3009, 16
        %v3231 = vrot.slane %v3229, 7
        %v3232 = vshll.u32 %v3009, 16
        %v3234 = vor.u32 %v3231, %v3232
        %v3235 = vsel %vm611, %v3227, %v3234
        %v3236 = vrot.slane %v3231, 4
        %v3238 = vshrl.u32 %v3010, 16
        %v3240 = vrot.slane %v3238, 7
        %v3241 = vshll.u32 %v3010, 16
        %v3243 = vor.u32 %v3240, %v3241
        %v3244 = vrot.slane %v3240, 4
        %v3246 = vshrl.u32 %v3011, 16
        %v3248 = vrot.slane %v3246, 7
        %v3249 = vshll.u32 %v3011, 16
        %v3251 = vor.u32 %v3248, %v3249
        %v3252 = vsel %vm611, %v3244, %v3251
        %v3253 = vrot.slane %v3248, 4
        %v3255 = vshrl.u32 %v3012, 16
        %v3257 = vrot.slane %v3255, 7
        %v3258 = vshll.u32 %v3012, 16
        %v3260 = vor.u32 %v3257, %v3258
        %v3261 = vrot.slane %v3257, 4
        %v3263 = vshrl.u32 %v3013, 16
        %v3265 = vrot.slane %v3263, 7
        %v3266 = vshll.u32 %v3013, 16
        %v3268 = vor.u32 %v3265, %v3266
        %v3269 = vsel %vm611, %v3261, %v3268
        %v3270 = vrot.slane %v3265, 4
        %v3272 = vshrl.u32 %v3014, 16
        %v3274 = vrot.slane %v3272, 7
        %v3275 = vshll.u32 %v3014, 16
        %v3277 = vor.u32 %v3274, %v3275
        %v3278 = vrot.slane %v3274, 4
        %v3280 = vshrl.u32 %v3015, 16
        %v3282 = vrot.slane %v3280, 7
        %v3283 = vshll.u32 %v3015, 16
        %v3285 = vor.u32 %v3282, %v3283
        %v3286 = vsel %vm611, %v3278, %v3285
        %v3287 = vrot.slane %v3282, 4
        %s3336 = scalar_lea.vmem [#allocation3], 12
        %v3337 = vld [vmem:[%s3336] sm:$0xf]
        %v3338 = vsel %vm934, %v3022, %v3337
        %3339 = vst [vmem:[%s3336] sm:$0xf] %v3338
        %3340 = vst [vmem:[%s3336 + $0x4] sm:$0xf] %v3031
        %v3341 = vld [vmem:[%s3336 + $0x8] sm:$0x1]
        %v3342 = vsel %vm288, %v3032, %v3341
        %3343 = vst [vmem:[%s3336 + $0x8] sm:$0x1] %v3342
        %v3344 = vld [vmem:[%s3336 + $0xc] sm:$0xf]
        %v3345 = vsel %vm934, %v3039, %v3344
        %3346 = vst [vmem:[%s3336 + $0xc] sm:$0xf] %v3345
        %3347 = vst [vmem:[%s3336 + $0x10] sm:$0xf] %v3048
        %v3348 = vld [vmem:[%s3336 + $0x14] sm:$0x1]
        %v3349 = vsel %vm288, %v3049, %v3348
        %3350 = vst [vmem:[%s3336 + $0x14] sm:$0x1] %v3349
        %v3351 = vld [vmem:[%s3336 + $0x18] sm:$0xf]
        %v3352 = vsel %vm934, %v3056, %v3351
        %3353 = vst [vmem:[%s3336 + $0x18] sm:$0xf] %v3352
        %3354 = vst [vmem:[%s3336 + $0x1c] sm:$0xf] %v3065
        %v3355 = vld [vmem:[%s3336 + $0x20] sm:$0x1]
        %v3356 = vsel %vm288, %v3066, %v3355
        %3357 = vst [vmem:[%s3336 + $0x20] sm:$0x1] %v3356
        %v3358 = vld [vmem:[%s3336 + $0x24] sm:$0xf]
        %v3359 = vsel %vm934, %v3073, %v3358
        %3360 = vst [vmem:[%s3336 + $0x24] sm:$0xf] %v3359
        %3361 = vst [vmem:[%s3336 + $0x28] sm:$0xf] %v3082
        %v3362 = vld [vmem:[%s3336 + $0x2c] sm:$0x1]
        %v3363 = vsel %vm288, %v3083, %v3362
        %3364 = vst [vmem:[%s3336 + $0x2c] sm:$0x1] %v3363
        %v3365 = vld [vmem:[%s3336 + $0x30] sm:$0xf]
        %v3366 = vsel %vm934, %v3090, %v3365
        %3367 = vst [vmem:[%s3336 + $0x30] sm:$0xf] %v3366
        %3368 = vst [vmem:[%s3336 + $0x34] sm:$0xf] %v3099
        %v3369 = vld [vmem:[%s3336 + $0x38] sm:$0x1]
        %v3370 = vsel %vm288, %v3100, %v3369
        %3371 = vst [vmem:[%s3336 + $0x38] sm:$0x1] %v3370
        %v3372 = vld [vmem:[%s3336 + $0x3c] sm:$0xf]
        %v3373 = vsel %vm934, %v3107, %v3372
        %3374 = vst [vmem:[%s3336 + $0x3c] sm:$0xf] %v3373
        %3375 = vst [vmem:[%s3336 + $0x40] sm:$0xf] %v3116
        %v3376 = vld [vmem:[%s3336 + $0x44] sm:$0x1]
        %v3377 = vsel %vm288, %v3117, %v3376
        %3378 = vst [vmem:[%s3336 + $0x44] sm:$0x1] %v3377
        %v3379 = vld [vmem:[%s3336 + $0x48] sm:$0xf]
        %v3380 = vsel %vm934, %v3124, %v3379
        %3381 = vst [vmem:[%s3336 + $0x48] sm:$0xf] %v3380
        %3382 = vst [vmem:[%s3336 + $0x4c] sm:$0xf] %v3133
        %v3383 = vld [vmem:[%s3336 + $0x50] sm:$0x1]
        %v3384 = vsel %vm288, %v3134, %v3383
        %3385 = vst [vmem:[%s3336 + $0x50] sm:$0x1] %v3384
        %v3386 = vld [vmem:[%s3336 + $0x54] sm:$0xf]
        %v3387 = vsel %vm934, %v3141, %v3386
        %3388 = vst [vmem:[%s3336 + $0x54] sm:$0xf] %v3387
        %3389 = vst [vmem:[%s3336 + $0x58] sm:$0xf] %v3150
        %v3390 = vld [vmem:[%s3336 + $0x5c] sm:$0x1]
        %v3391 = vsel %vm288, %v3151, %v3390
        %3392 = vst [vmem:[%s3336 + $0x5c] sm:$0x1] %v3391
        %v3393 = vld [vmem:[%s3336 + $0x60] sm:$0xf]
        %v3394 = vsel %vm934, %v3158, %v3393
        %3395 = vst [vmem:[%s3336 + $0x60] sm:$0xf] %v3394
        %3396 = vst [vmem:[%s3336 + $0x64] sm:$0xf] %v3167
        %v3397 = vld [vmem:[%s3336 + $0x68] sm:$0x1]
        %v3398 = vsel %vm288, %v3168, %v3397
        %3399 = vst [vmem:[%s3336 + $0x68] sm:$0x1] %v3398
        %v3400 = vld [vmem:[%s3336 + $0x6c] sm:$0xf]
        %v3401 = vsel %vm934, %v3175, %v3400
        %3402 = vst [vmem:[%s3336 + $0x6c] sm:$0xf] %v3401
        %3403 = vst [vmem:[%s3336 + $0x70] sm:$0xf] %v3184
        %v3404 = vld [vmem:[%s3336 + $0x74] sm:$0x1]
        %v3405 = vsel %vm288, %v3185, %v3404
        %3406 = vst [vmem:[%s3336 + $0x74] sm:$0x1] %v3405
        %v3407 = vld [vmem:[%s3336 + $0x78] sm:$0xf]
        %v3408 = vsel %vm934, %v3192, %v3407
        %3409 = vst [vmem:[%s3336 + $0x78] sm:$0xf] %v3408
        %3410 = vst [vmem:[%s3336 + $0x7c] sm:$0xf] %v3201
        %v3411 = vld [vmem:[%s3336 + $0x80] sm:$0x1]
        %v3412 = vsel %vm288, %v3202, %v3411
        %3413 = vst [vmem:[%s3336 + $0x80] sm:$0x1] %v3412
        %v3414 = vld [vmem:[%s3336 + $0x84] sm:$0xf]
        %v3415 = vsel %vm934, %v3209, %v3414
        %3416 = vst [vmem:[%s3336 + $0x84] sm:$0xf] %v3415
        %3417 = vst [vmem:[%s3336 + $0x88] sm:$0xf] %v3218
        %v3418 = vld [vmem:[%s3336 + $0x8c] sm:$0x1]
        %v3419 = vsel %vm288, %v3219, %v3418
        %3420 = vst [vmem:[%s3336 + $0x8c] sm:$0x1] %v3419
        %v3421 = vld [vmem:[%s3336 + $0x90] sm:$0xf]
        %v3422 = vsel %vm934, %v3226, %v3421
        %3423 = vst [vmem:[%s3336 + $0x90] sm:$0xf] %v3422
        %3424 = vst [vmem:[%s3336 + $0x94] sm:$0xf] %v3235
        %v3425 = vld [vmem:[%s3336 + $0x98] sm:$0x1]
        %v3426 = vsel %vm288, %v3236, %v3425
        %3427 = vst [vmem:[%s3336 + $0x98] sm:$0x1] %v3426
        %v3428 = vld [vmem:[%s3336 + $0x9c] sm:$0xf]
        %v3429 = vsel %vm934, %v3243, %v3428
        %3430 = vst [vmem:[%s3336 + $0x9c] sm:$0xf] %v3429
        %3431 = vst [vmem:[%s3336 + $0xa0] sm:$0xf] %v3252
        %v3432 = vld [vmem:[%s3336 + $0xa4] sm:$0x1]
        %v3433 = vsel %vm288, %v3253, %v3432
        %3434 = vst [vmem:[%s3336 + $0xa4] sm:$0x1] %v3433
        %v3435 = vld [vmem:[%s3336 + $0xa8] sm:$0xf]
        %v3436 = vsel %vm934, %v3260, %v3435
        %3437 = vst [vmem:[%s3336 + $0xa8] sm:$0xf] %v3436
        %3438 = vst [vmem:[%s3336 + $0xac] sm:$0xf] %v3269
        %v3439 = vld [vmem:[%s3336 + $0xb0] sm:$0x1]
        %v3440 = vsel %vm288, %v3270, %v3439
        %3441 = vst [vmem:[%s3336 + $0xb0] sm:$0x1] %v3440
        %v3442 = vld [vmem:[%s3336 + $0xb4] sm:$0xf]
        %v3443 = vsel %vm934, %v3277, %v3442
        %3444 = vst [vmem:[%s3336 + $0xb4] sm:$0xf] %v3443
        %3445 = vst [vmem:[%s3336 + $0xb8] sm:$0xf] %v3286
        %v3446 = vld [vmem:[%s3336 + $0xbc] sm:$0x1]
        %v3447 = vsel %vm288, %v3287, %v3446
        %3448 = vst [vmem:[%s3336 + $0xbc] sm:$0x1] %v3447
        %v3449 = vld [vmem:[#allocation3] sm:$0xf]
        %v3450 = vld [vmem:[#allocation3 + $0x4] sm:$0xf]
        %v3451 = vld [vmem:[#allocation3 + $0x8] sm:$0x1]
        %v3452 = vld [vmem:[#allocation3 + $0xc] sm:$0xf]
        %v3453 = vld [vmem:[#allocation3 + $0x10] sm:$0xf]
        %v3454 = vld [vmem:[#allocation3 + $0x14] sm:$0x1]
        %v3455 = vld [vmem:[#allocation3 + $0x18] sm:$0xf]
        %v3456 = vld [vmem:[#allocation3 + $0x1c] sm:$0xf]
        %v3457 = vld [vmem:[#allocation3 + $0x20] sm:$0x1]
        %v3458 = vld [vmem:[#allocation3 + $0x24] sm:$0xf]
        %v3459 = vld [vmem:[#allocation3 + $0x28] sm:$0xf]
        %v3460 = vld [vmem:[#allocation3 + $0x2c] sm:$0x1]
        %v3461 = vld [vmem:[#allocation3 + $0x30] sm:$0xf]
        %v3462 = vld [vmem:[#allocation3 + $0x34] sm:$0xf]
        %v3463 = vld [vmem:[#allocation3 + $0x38] sm:$0x1]
        %v3464 = vld [vmem:[#allocation3 + $0x3c] sm:$0xf]
        %v3465 = vld [vmem:[#allocation3 + $0x40] sm:$0xf]
        %v3466 = vld [vmem:[#allocation3 + $0x44] sm:$0x1]
        %v3467 = vld [vmem:[#allocation3 + $0x48] sm:$0xf]
        %v3468 = vld [vmem:[#allocation3 + $0x4c] sm:$0xf]
        %v3469 = vld [vmem:[#allocation3 + $0x50] sm:$0x1]
        %v3470 = vld [vmem:[#allocation3 + $0x54] sm:$0xf]
        %v3471 = vld [vmem:[#allocation3 + $0x58] sm:$0xf]
        %v3472 = vld [vmem:[#allocation3 + $0x5c] sm:$0x1]
        %v3473 = vld [vmem:[#allocation3 + $0x60] sm:$0xf]
        %v3474 = vld [vmem:[#allocation3 + $0x64] sm:$0xf]
        %v3475 = vld [vmem:[#allocation3 + $0x68] sm:$0x1]
        %v3476 = vld [vmem:[#allocation3 + $0x6c] sm:$0xf]
        %v3477 = vld [vmem:[#allocation3 + $0x70] sm:$0xf]
        %v3478 = vld [vmem:[#allocation3 + $0x74] sm:$0x1]
        %v3479 = vld [vmem:[#allocation3 + $0x78] sm:$0xf]
        %v3480 = vld [vmem:[#allocation3 + $0x7c] sm:$0xf]
        %v3481 = vld [vmem:[#allocation3 + $0x80] sm:$0x1]
        %v3482 = vld [vmem:[#allocation3 + $0x84] sm:$0xf]
        %v3483 = vld [vmem:[#allocation3 + $0x88] sm:$0xf]
        %v3484 = vld [vmem:[#allocation3 + $0x8c] sm:$0x1]
        %v3485 = vld [vmem:[#allocation3 + $0x90] sm:$0xf]
        %v3486 = vld [vmem:[#allocation3 + $0x94] sm:$0xf]
        %v3487 = vld [vmem:[#allocation3 + $0x98] sm:$0x1]
        %v3488 = vld [vmem:[#allocation3 + $0x9c] sm:$0xf]
        %v3489 = vld [vmem:[#allocation3 + $0xa0] sm:$0xf]
        %v3490 = vld [vmem:[#allocation3 + $0xa4] sm:$0x1]
        %v3491 = vld [vmem:[#allocation3 + $0xa8] sm:$0xf]
        %v3492 = vld [vmem:[#allocation3 + $0xac] sm:$0xf]
        %v3493 = vld [vmem:[#allocation3 + $0xb0] sm:$0x1]
        %v3494 = vld [vmem:[#allocation3 + $0xb4] sm:$0xf]
        %v3495 = vld [vmem:[#allocation3 + $0xb8] sm:$0xf]
        %v3496 = vld [vmem:[#allocation3 + $0xbc] sm:$0x1]
        %v3497 = vld [vmem:[#allocation3 + $0xc0] sm:$0xf]
        %v3498 = vld [vmem:[#allocation3 + $0xc4] sm:$0xf]
        %v3499 = vld [vmem:[#allocation3 + $0xc8] sm:$0x1]
        %v3500 = vld [vmem:[#allocation3 + $0xcc] sm:$0xf]
        %v3501 = vld [vmem:[#allocation3 + $0xd0] sm:$0xf]
        %v3502 = vld [vmem:[#allocation3 + $0xd4] sm:$0x1]
        %v3535 = vunpack.c.l.b16 %v3449
        %v3536 = vunpack.c.l.b16 %v3450
        %v3537 = vunpack.c.l.b16 %v3452
        %v3538 = vunpack.c.l.b16 %v3453
        %v3539 = vunpack.c.l.b16 %v3455
        %v3540 = vunpack.c.l.b16 %v3456
        %v3541 = vunpack.c.l.b16 %v3458
        %v3542 = vunpack.c.l.b16 %v3459
        %v3543 = vunpack.c.l.b16 %v3461
        %v3544 = vunpack.c.l.b16 %v3462
        %v3545 = vunpack.c.l.b16 %v3464
        %v3546 = vunpack.c.l.b16 %v3465
        %v3547 = vunpack.c.l.b16 %v3467
        %v3548 = vunpack.c.l.b16 %v3468
        %v3549 = vunpack.c.l.b16 %v3470
        %v3550 = vunpack.c.l.b16 %v3471
        %v3551 = vunpack.c.l.b16 %v3473
        %v3552 = vunpack.c.l.b16 %v3474
        %v3553 = vunpack.c.l.b16 %v3476
        %v3554 = vunpack.c.l.b16 %v3477
        %v3555 = vunpack.c.l.b16 %v3479
        %v3556 = vunpack.c.l.b16 %v3480
        %v3557 = vunpack.c.l.b16 %v3482
        %v3558 = vunpack.c.l.b16 %v3483
        %v3559 = vunpack.c.l.b16 %v3485
        %v3560 = vunpack.c.l.b16 %v3486
        %v3561 = vunpack.c.l.b16 %v3488
        %v3562 = vunpack.c.l.b16 %v3489
        %v3563 = vunpack.c.l.b16 %v3491
        %v3564 = vunpack.c.l.b16 %v3492
        %v3565 = vunpack.c.l.b16 %v3494
        %v3566 = vunpack.c.l.b16 %v3495
        %v3567 = vpack.c.b16 %v3536, %v3535
        %v3568 = vpack.c.b16 %v3538, %v3537
        %v3569 = vpack.c.b16 %v3540, %v3539
        %v3570 = vpack.c.b16 %v3542, %v3541
        %v3571 = vpack.c.b16 %v3544, %v3543
        %v3572 = vpack.c.b16 %v3546, %v3545
        %v3573 = vpack.c.b16 %v3548, %v3547
        %v3574 = vpack.c.b16 %v3550, %v3549
        %v3575 = vpack.c.b16 %v3552, %v3551
        %v3576 = vpack.c.b16 %v3554, %v3553
        %v3577 = vpack.c.b16 %v3556, %v3555
        %v3578 = vpack.c.b16 %v3558, %v3557
        %v3579 = vpack.c.b16 %v3560, %v3559
        %v3580 = vpack.c.b16 %v3562, %v3561
        %v3581 = vpack.c.b16 %v3564, %v3563
        %v3582 = vpack.c.b16 %v3566, %v3565
        %v3615 = vunpack.c.l.b16 %v3451
        %v3616 = vunpack.c.l.b16 %v3454
        %v3617 = vunpack.c.l.b16 %v3457
        %v3618 = vunpack.c.l.b16 %v3460
        %v3619 = vunpack.c.l.b16 %v3463
        %v3620 = vunpack.c.l.b16 %v3466
        %v3621 = vunpack.c.l.b16 %v3469
        %v3622 = vunpack.c.l.b16 %v3472
        %v3623 = vunpack.c.l.b16 %v3475
        %v3624 = vunpack.c.l.b16 %v3478
        %v3625 = vunpack.c.l.b16 %v3481
        %v3626 = vunpack.c.l.b16 %v3484
        %v3627 = vunpack.c.l.b16 %v3487
        %v3628 = vunpack.c.l.b16 %v3490
        %v3629 = vunpack.c.l.b16 %v3493
        %v3630 = vunpack.c.l.b16 %v3496
        %v3631 = vpack.c.b16 %v3615, %v3615
        %v3632 = vpack.c.b16 %v3616, %v3616
        %v3633 = vpack.c.b16 %v3617, %v3617
        %v3634 = vpack.c.b16 %v3618, %v3618
        %v3635 = vpack.c.b16 %v3619, %v3619
        %v3636 = vpack.c.b16 %v3620, %v3620
        %v3637 = vpack.c.b16 %v3621, %v3621
        %v3638 = vpack.c.b16 %v3622, %v3622
        %v3639 = vpack.c.b16 %v3623, %v3623
        %v3640 = vpack.c.b16 %v3624, %v3624
        %v3641 = vpack.c.b16 %v3625, %v3625
        %v3642 = vpack.c.b16 %v3626, %v3626
        %v3643 = vpack.c.b16 %v3627, %v3627
        %v3644 = vpack.c.b16 %v3628, %v3628
        %v3645 = vpack.c.b16 %v3629, %v3629
        %v3646 = vpack.c.b16 %v3630, %v3630
        %v3648 = vshrl.u32 %v3567, 16
        %v3650 = vshll.u32 %v3567, 16
        %v3652 = vrot.slane %v3650, 1
        %v3653 = vor.u32 %v3648, %v3652
        %v3655 = vshll.u32 %v3631, 16
        %v3657 = vrot.slane %v3655, 1
        %v3658 = vsel %vm1245, %v3653, %v3657
        %v3660 = vshrl.u32 %v3568, 16
        %v3662 = vshll.u32 %v3568, 16
        %v3664 = vrot.slane %v3662, 1
        %v3665 = vor.u32 %v3660, %v3664
        %v3667 = vshll.u32 %v3632, 16
        %v3669 = vrot.slane %v3667, 1
        %v3670 = vsel %vm1245, %v3665, %v3669
        %v3672 = vshrl.u32 %v3569, 16
        %v3674 = vshll.u32 %v3569, 16
        %v3676 = vrot.slane %v3674, 1
        %v3677 = vor.u32 %v3672, %v3676
        %v3679 = vshll.u32 %v3633, 16
        %v3681 = vrot.slane %v3679, 1
        %v3682 = vsel %vm1245, %v3677, %v3681
        %v3684 = vshrl.u32 %v3570, 16
        %v3686 = vshll.u32 %v3570, 16
        %v3688 = vrot.slane %v3686, 1
        %v3689 = vor.u32 %v3684, %v3688
        %v3691 = vshll.u32 %v3634, 16
        %v3693 = vrot.slane %v3691, 1
        %v3694 = vsel %vm1245, %v3689, %v3693
        %v3696 = vshrl.u32 %v3571, 16
        %v3698 = vshll.u32 %v3571, 16
        %v3700 = vrot.slane %v3698, 1
        %v3701 = vor.u32 %v3696, %v3700
        %v3703 = vshll.u32 %v3635, 16
        %v3705 = vrot.slane %v3703, 1
        %v3706 = vsel %vm1245, %v3701, %v3705
        %v3708 = vshrl.u32 %v3572, 16
        %v3710 = vshll.u32 %v3572, 16
        %v3712 = vrot.slane %v3710, 1
        %v3713 = vor.u32 %v3708, %v3712
        %v3715 = vshll.u32 %v3636, 16
        %v3717 = vrot.slane %v3715, 1
        %v3718 = vsel %vm1245, %v3713, %v3717
        %v3720 = vshrl.u32 %v3573, 16
        %v3722 = vshll.u32 %v3573, 16
        %v3724 = vrot.slane %v3722, 1
        %v3725 = vor.u32 %v3720, %v3724
        %v3727 = vshll.u32 %v3637, 16
        %v3729 = vrot.slane %v3727, 1
        %v3730 = vsel %vm1245, %v3725, %v3729
        %v3732 = vshrl.u32 %v3574, 16
        %v3734 = vshll.u32 %v3574, 16
        %v3736 = vrot.slane %v3734, 1
        %v3737 = vor.u32 %v3732, %v3736
        %v3739 = vshll.u32 %v3638, 16
        %v3741 = vrot.slane %v3739, 1
        %v3742 = vsel %vm1245, %v3737, %v3741
        %v3744 = vshrl.u32 %v3575, 16
        %v3746 = vshll.u32 %v3575, 16
        %v3748 = vrot.slane %v3746, 1
        %v3749 = vor.u32 %v3744, %v3748
        %v3751 = vshll.u32 %v3639, 16
        %v3753 = vrot.slane %v3751, 1
        %v3754 = vsel %vm1245, %v3749, %v3753
        %v3756 = vshrl.u32 %v3576, 16
        %v3758 = vshll.u32 %v3576, 16
        %v3760 = vrot.slane %v3758, 1
        %v3761 = vor.u32 %v3756, %v3760
        %v3763 = vshll.u32 %v3640, 16
        %v3765 = vrot.slane %v3763, 1
        %v3766 = vsel %vm1245, %v3761, %v3765
        %v3768 = vshrl.u32 %v3577, 16
        %v3770 = vshll.u32 %v3577, 16
        %v3772 = vrot.slane %v3770, 1
        %v3773 = vor.u32 %v3768, %v3772
        %v3775 = vshll.u32 %v3641, 16
        %v3777 = vrot.slane %v3775, 1
        %v3778 = vsel %vm1245, %v3773, %v3777
        %v3780 = vshrl.u32 %v3578, 16
        %v3782 = vshll.u32 %v3578, 16
        %v3784 = vrot.slane %v3782, 1
        %v3785 = vor.u32 %v3780, %v3784
        %v3787 = vshll.u32 %v3642, 16
        %v3789 = vrot.slane %v3787, 1
        %v3790 = vsel %vm1245, %v3785, %v3789
        %v3792 = vshrl.u32 %v3579, 16
        %v3794 = vshll.u32 %v3579, 16
        %v3796 = vrot.slane %v3794, 1
        %v3797 = vor.u32 %v3792, %v3796
        %v3799 = vshll.u32 %v3643, 16
        %v3801 = vrot.slane %v3799, 1
        %v3802 = vsel %vm1245, %v3797, %v3801
        %v3804 = vshrl.u32 %v3580, 16
        %v3806 = vshll.u32 %v3580, 16
        %v3808 = vrot.slane %v3806, 1
        %v3809 = vor.u32 %v3804, %v3808
        %v3811 = vshll.u32 %v3644, 16
        %v3813 = vrot.slane %v3811, 1
        %v3814 = vsel %vm1245, %v3809, %v3813
        %v3816 = vshrl.u32 %v3581, 16
        %v3818 = vshll.u32 %v3581, 16
        %v3820 = vrot.slane %v3818, 1
        %v3821 = vor.u32 %v3816, %v3820
        %v3823 = vshll.u32 %v3645, 16
        %v3825 = vrot.slane %v3823, 1
        %v3826 = vsel %vm1245, %v3821, %v3825
        %v3828 = vshrl.u32 %v3582, 16
        %v3830 = vshll.u32 %v3582, 16
        %v3832 = vrot.slane %v3830, 1
        %v3833 = vor.u32 %v3828, %v3832
        %v3835 = vshll.u32 %v3646, 16
        %v3837 = vrot.slane %v3835, 1
        %v3838 = vsel %vm1245, %v3833, %v3837
        %v3855 = vrot.slane %v3567, 1
        %v3856 = vrot.slane %v3631, 1
        %v3857 = vsel %vm1454, %v3855, %v3856
        %v3858 = vrot.slane %v3568, 1
        %v3859 = vrot.slane %v3632, 1
        %v3860 = vsel %vm1454, %v3858, %v3859
        %v3861 = vrot.slane %v3569, 1
        %v3862 = vrot.slane %v3633, 1
        %v3863 = vsel %vm1454, %v3861, %v3862
        %v3864 = vrot.slane %v3570, 1
        %v3865 = vrot.slane %v3634, 1
        %v3866 = vsel %vm1454, %v3864, %v3865
        %v3867 = vrot.slane %v3571, 1
        %v3868 = vrot.slane %v3635, 1
        %v3869 = vsel %vm1454, %v3867, %v3868
        %v3870 = vrot.slane %v3572, 1
        %v3871 = vrot.slane %v3636, 1
        %v3872 = vsel %vm1454, %v3870, %v3871
        %v3873 = vrot.slane %v3573, 1
        %v3874 = vrot.slane %v3637, 1
        %v3875 = vsel %vm1454, %v3873, %v3874
        %v3876 = vrot.slane %v3574, 1
        %v3877 = vrot.slane %v3638, 1
        %v3878 = vsel %vm1454, %v3876, %v3877
        %v3879 = vrot.slane %v3575, 1
        %v3880 = vrot.slane %v3639, 1
        %v3881 = vsel %vm1454, %v3879, %v3880
        %v3882 = vrot.slane %v3576, 1
        %v3883 = vrot.slane %v3640, 1
        %v3884 = vsel %vm1454, %v3882, %v3883
        %v3885 = vrot.slane %v3577, 1
        %v3886 = vrot.slane %v3641, 1
        %v3887 = vsel %vm1454, %v3885, %v3886
        %v3888 = vrot.slane %v3578, 1
        %v3889 = vrot.slane %v3642, 1
        %v3890 = vsel %vm1454, %v3888, %v3889
        %v3891 = vrot.slane %v3579, 1
        %v3892 = vrot.slane %v3643, 1
        %v3893 = vsel %vm1454, %v3891, %v3892
        %v3894 = vrot.slane %v3580, 1
        %v3895 = vrot.slane %v3644, 1
        %v3896 = vsel %vm1454, %v3894, %v3895
        %v3897 = vrot.slane %v3581, 1
        %v3898 = vrot.slane %v3645, 1
        %v3899 = vsel %vm1454, %v3897, %v3898
        %v3900 = vrot.slane %v3582, 1
        %v3901 = vrot.slane %v3646, 1
        %v3902 = vsel %vm1454, %v3900, %v3901
        %v3921 = vunpack.c.l.b16 %v3497
        %v3922 = vunpack.c.l.b16 %v3498
        %v3923 = vpack.c.b16 %v3922, %v3921
        %v3926 = vunpack.c.l.b16 %v3499
        %v3927 = vpack.c.b16 %v3926, %v3926
        %v3929 = vshrl.u32 %v3923, 16
        %v3931 = vshll.u32 %v3923, 16
        %v3933 = vrot.slane %v3931, 1
        %v3934 = vor.u32 %v3929, %v3933
        %v3936 = vshll.u32 %v3927, 16
        %v3938 = vrot.slane %v3936, 1
        %v3939 = vsel %vm1245, %v3934, %v3938
        %v3941 = vrot.slane %v3923, 1
        %v3942 = vrot.slane %v3927, 1
        %v3943 = vsel %vm1454, %v3941, %v3942
        %v3947 = vunpack.c.l.b16 %v3500
        %v3948 = vunpack.c.l.b16 %v3501
        %v3949 = vpack.c.b16 %v3948, %v3947
        %v3952 = vunpack.c.l.b16 %v3502
        %v3953 = vpack.c.b16 %v3952, %v3952
        %v3955 = vshrl.u32 %v3949, 16
        %v3957 = vshll.u32 %v3949, 16
        %v3959 = vrot.slane %v3957, 1
        %v3960 = vor.u32 %v3955, %v3959
        %v3962 = vshll.u32 %v3953, 16
        %v3964 = vrot.slane %v3962, 1
        %v3965 = vsel %vm1245, %v3960, %v3964
        %v3967 = vrot.slane %v3949, 1
        %v3968 = vrot.slane %v3953, 1
        %v3969 = vsel %vm1454, %v3967, %v3968
        %v3971 = vld [vmem:[#allocation9] sm:$0xf]
        %v3972 = vld [vmem:[#allocation9 + $0x4] sm:$0xf]
        %v3973 = vld [vmem:[#allocation9 + $0x8] sm:$0xf]
        %v3974 = vld [vmem:[#allocation9 + $0xc] sm:$0xf]
        %v3975 = vld [vmem:[#allocation9 + $0x10] sm:$0xf]
        %v3976 = vld [vmem:[#allocation9 + $0x14] sm:$0xf]
        %v3977 = vld [vmem:[#allocation9 + $0x18] sm:$0xf]
        %v3978 = vld [vmem:[#allocation9 + $0x1c] sm:$0xf]
        %v3979 = vld [vmem:[#allocation9 + $0x20] sm:$0xf]
        %v3980 = vld [vmem:[#allocation9 + $0x24] sm:$0xf]
        %v3981 = vld [vmem:[#allocation9 + $0x28] sm:$0xf]
        %v3982 = vld [vmem:[#allocation9 + $0x2c] sm:$0xf]
        %v3983 = vld [vmem:[#allocation9 + $0x30] sm:$0xf]
        %v3984 = vld [vmem:[#allocation9 + $0x34] sm:$0xf]
        %v3985 = vld [vmem:[#allocation9 + $0x38] sm:$0xf]
        %v3986 = vld [vmem:[#allocation9 + $0x3c] sm:$0xf]
        %v3987 = vld [vmem:[#allocation9 + $0x40] sm:$0xf]
        %v3988 = vld [vmem:[#allocation9 + $0x44] sm:$0xf]
        %v3989 = vld [vmem:[#allocation9 + $0x48] sm:$0xf]
        %v3990 = vld [vmem:[#allocation9 + $0x4c] sm:$0xf]
        %v3991 = vld [vmem:[#allocation9 + $0x50] sm:$0xf]
        %v3992 = vld [vmem:[#allocation9 + $0x54] sm:$0xf]
        %v3993 = vld [vmem:[#allocation9 + $0x58] sm:$0xf]
        %v3994 = vld [vmem:[#allocation9 + $0x5c] sm:$0xf]
        %v3995 = vld [vmem:[#allocation9 + $0x60] sm:$0xf]
        %v3996 = vld [vmem:[#allocation9 + $0x64] sm:$0xf]
        %v3997 = vld [vmem:[#allocation9 + $0x68] sm:$0xf]
        %v3998 = vld [vmem:[#allocation9 + $0x6c] sm:$0xf]
        %v3999 = vld [vmem:[#allocation9 + $0x70] sm:$0xf]
        %v4000 = vld [vmem:[#allocation9 + $0x74] sm:$0xf]
        %v4001 = vld [vmem:[#allocation9 + $0x78] sm:$0xf]
        %v4002 = vld [vmem:[#allocation9 + $0x7c] sm:$0xf]
        %v4003 = vld [vmem:[#allocation9 + $0x80] sm:$0xf]
        %v4004 = vld [vmem:[#allocation9 + $0x84] sm:$0xf]
        %v4005 = vld [vmem:[#allocation9 + $0x88] sm:$0xf]
        %v4006 = vld [vmem:[#allocation9 + $0x8c] sm:$0xf]
        %v4007 = vld [vmem:[#allocation9 + $0x90] sm:$0xf]
        %v4008 = vld [vmem:[#allocation9 + $0x94] sm:$0xf]
        %v4009 = vld [vmem:[#allocation9 + $0x98] sm:$0xf]
        %v4010 = vld [vmem:[#allocation9 + $0x9c] sm:$0xf]
        %v4011 = vld [vmem:[#allocation9 + $0xa0] sm:$0xf]
        %v4012 = vld [vmem:[#allocation9 + $0xa4] sm:$0xf]
        %v4013 = vld [vmem:[#allocation9 + $0xa8] sm:$0xf]
        %v4014 = vld [vmem:[#allocation9 + $0xac] sm:$0xf]
        %v4015 = vld [vmem:[#allocation9 + $0xb0] sm:$0xf]
        %v4016 = vld [vmem:[#allocation9 + $0xb4] sm:$0xf]
        %v4017 = vld [vmem:[#allocation9 + $0xb8] sm:$0xf]
        %v4018 = vld [vmem:[#allocation9 + $0xbc] sm:$0xf]
        %v4019 = vld [vmem:[#allocation9 + $0xc0] sm:$0xf]
        %v4020 = vld [vmem:[#allocation9 + $0xc4] sm:$0xf]
        %v4021 = vld [vmem:[#allocation9 + $0xc8] sm:$0xf]
        %v4022 = vld [vmem:[#allocation9 + $0xcc] sm:$0xf]
        %v4023 = vld [vmem:[#allocation9 + $0xd0] sm:$0xf]
        %v4024 = vld [vmem:[#allocation9 + $0xd4] sm:$0xf]
        %v4025 = vld [vmem:[#allocation9 + $0xd8] sm:$0xf]
        %v4026 = vld [vmem:[#allocation9 + $0xdc] sm:$0xf]
        %v4027 = vld [vmem:[#allocation9 + $0xe0] sm:$0xf]
        %v4028 = vld [vmem:[#allocation9 + $0xe4] sm:$0xf]
        %v4029 = vld [vmem:[#allocation9 + $0xe8] sm:$0xf]
        %v4030 = vld [vmem:[#allocation9 + $0xec] sm:$0xf]
        %v4031 = vld [vmem:[#allocation9 + $0xf0] sm:$0xf]
        %v4032 = vld [vmem:[#allocation9 + $0xf4] sm:$0xf]
        %v4033 = vld [vmem:[#allocation9 + $0xf8] sm:$0xf]
        %v4034 = vld [vmem:[#allocation9 + $0xfc] sm:$0xf]
        %v4035 = vld [vmem:[#allocation9 + $0x100] sm:$0xf]
        %v4036 = vld [vmem:[#allocation9 + $0x104] sm:$0xf]
        %v4037 = vld [vmem:[#allocation9 + $0x108] sm:$0xf]
        %v4038 = vld [vmem:[#allocation9 + $0x10c] sm:$0xf]
        %v4039 = vld [vmem:[#allocation9 + $0x110] sm:$0xf]
        %v4040 = vld [vmem:[#allocation9 + $0x114] sm:$0xf]
        %v4041 = vld [vmem:[#allocation9 + $0x118] sm:$0xf]
        %v4042 = vld [vmem:[#allocation9 + $0x11c] sm:$0xf]
        %v4043 = vld [vmem:[#allocation9 + $0x120] sm:$0xf]
        %v4044 = vld [vmem:[#allocation9 + $0x124] sm:$0xf]
        %v4045 = vld [vmem:[#allocation9 + $0x128] sm:$0xf]
        %v4046 = vld [vmem:[#allocation9 + $0x12c] sm:$0xf]
        %v4047 = vld [vmem:[#allocation9 + $0x130] sm:$0xf]
        %v4048 = vld [vmem:[#allocation9 + $0x134] sm:$0xf]
        %v4049 = vld [vmem:[#allocation9 + $0x138] sm:$0xf]
        %v4050 = vld [vmem:[#allocation9 + $0x13c] sm:$0xf]
        %v4051 = vld [vmem:[#allocation9 + $0x140] sm:$0xf]
        %v4052 = vld [vmem:[#allocation9 + $0x144] sm:$0xf]
        %v4053 = vld [vmem:[#allocation9 + $0x148] sm:$0xf]
        %v4054 = vld [vmem:[#allocation9 + $0x14c] sm:$0xf]
        %v4055 = vld [vmem:[#allocation9 + $0x150] sm:$0xf]
        %v4056 = vld [vmem:[#allocation9 + $0x154] sm:$0xf]
        %v4057 = vld [vmem:[#allocation9 + $0x158] sm:$0xf]
        %v4058 = vld [vmem:[#allocation9 + $0x15c] sm:$0xf]
        %v4059 = vld [vmem:[#allocation9 + $0x160] sm:$0xf]
        %v4060 = vld [vmem:[#allocation9 + $0x164] sm:$0xf]
        %v4061 = vld [vmem:[#allocation9 + $0x168] sm:$0xf]
        %v4062 = vld [vmem:[#allocation9 + $0x16c] sm:$0xf]
        %v4063 = vld [vmem:[#allocation9 + $0x170] sm:$0xf]
        %v4064 = vld [vmem:[#allocation9 + $0x174] sm:$0xf]
        %v4065 = vld [vmem:[#allocation9 + $0x178] sm:$0xf]
        %v4066 = vld [vmem:[#allocation9 + $0x17c] sm:$0xf]
        %v4067 = vld [vmem:[#allocation9 + $0x180] sm:$0xf]
        %v4068 = vld [vmem:[#allocation9 + $0x184] sm:$0xf]
        %v4069 = vld [vmem:[#allocation9 + $0x188] sm:$0xf]
        %v4070 = vld [vmem:[#allocation9 + $0x18c] sm:$0xf]
        %v4071 = vld [vmem:[#allocation9 + $0x190] sm:$0xf]
        %v4072 = vld [vmem:[#allocation9 + $0x194] sm:$0xf]
        %v4073 = vld [vmem:[#allocation9 + $0x198] sm:$0xf]
        %v4074 = vld [vmem:[#allocation9 + $0x19c] sm:$0xf]
        %v4075 = vld [vmem:[#allocation9 + $0x1a0] sm:$0xf]
        %v4076 = vld [vmem:[#allocation9 + $0x1a4] sm:$0xf]
        %v4077 = vld [vmem:[#allocation9 + $0x1a8] sm:$0xf]
        %v4078 = vld [vmem:[#allocation9 + $0x1ac] sm:$0xf]
        %v4079 = vld [vmem:[#allocation9 + $0x1b0] sm:$0xf]
        %v4080 = vld [vmem:[#allocation9 + $0x1b4] sm:$0xf]
        %v4081 = vld [vmem:[#allocation9 + $0x1b8] sm:$0xf]
        %v4082 = vld [vmem:[#allocation9 + $0x1bc] sm:$0xf]
        %v4083 = vld [vmem:[#allocation9 + $0x1c0] sm:$0xf]
        %v4084 = vld [vmem:[#allocation9 + $0x1c4] sm:$0xf]
        %v4085 = vld [vmem:[#allocation9 + $0x1c8] sm:$0xf]
        %v4086 = vld [vmem:[#allocation9 + $0x1cc] sm:$0xf]
        %v4087 = vld [vmem:[#allocation9 + $0x1d0] sm:$0xf]
        %v4088 = vld [vmem:[#allocation9 + $0x1d4] sm:$0xf]
        %v4089 = vld [vmem:[#allocation9 + $0x1d8] sm:$0xf]
        %v4090 = vld [vmem:[#allocation9 + $0x1dc] sm:$0xf]
        %v4091 = vld [vmem:[#allocation9 + $0x1e0] sm:$0xf]
        %v4092 = vld [vmem:[#allocation9 + $0x1e4] sm:$0xf]
        %v4093 = vld [vmem:[#allocation9 + $0x1e8] sm:$0xf]
        %v4094 = vld [vmem:[#allocation9 + $0x1ec] sm:$0xf]
        %v4095 = vld [vmem:[#allocation9 + $0x1f0] sm:$0xf]
        %v4096 = vld [vmem:[#allocation9 + $0x1f4] sm:$0xf]
        %v4097 = vld [vmem:[#allocation9 + $0x1f8] sm:$0xf]
        %v4098 = vld [vmem:[#allocation9 + $0x1fc] sm:$0xf]
        %v4099 = vld [vmem:[#allocation9 + $0x200] sm:$0xf]
        %v4100 = vld [vmem:[#allocation9 + $0x204] sm:$0xf]
        %v4101 = vld [vmem:[#allocation9 + $0x208] sm:$0xf]
        %v4102 = vld [vmem:[#allocation9 + $0x20c] sm:$0xf]
        %v4103 = vld [vmem:[#allocation9 + $0x210] sm:$0xf]
        %v4104 = vld [vmem:[#allocation9 + $0x214] sm:$0xf]
        %v4105 = vld [vmem:[#allocation9 + $0x218] sm:$0xf]
        %v4106 = vld [vmem:[#allocation9 + $0x21c] sm:$0xf]
        %v4107 = vld [vmem:[#allocation9 + $0x220] sm:$0xf]
        %v4108 = vld [vmem:[#allocation9 + $0x224] sm:$0xf]
        %v4109 = vld [vmem:[#allocation9 + $0x228] sm:$0xf]
        %v4110 = vld [vmem:[#allocation9 + $0x22c] sm:$0xf]
        %v4111 = vld [vmem:[#allocation9 + $0x230] sm:$0xf]
        %v4112 = vld [vmem:[#allocation9 + $0x234] sm:$0xf]
        %v4113 = vld [vmem:[#allocation9 + $0x238] sm:$0xf]
        %v4114 = vld [vmem:[#allocation9 + $0x23c] sm:$0xf]
        %v4115 = vld [vmem:[%s4] sm:$0x1]
        %v4117 = vperm.slane %v4115, 0
        %v4263 = vunpack.c.l.b16 %v3971
        %v4264 = vunpack.c.l.b16 %v3972
        %v4265 = vunpack.c.l.b16 %v3973
        %v4266 = vunpack.c.l.b16 %v3974
        %v4267 = vunpack.c.l.b16 %v3975
        %v4268 = vunpack.c.l.b16 %v3976
        %v4269 = vunpack.c.l.b16 %v3977
        %v4270 = vunpack.c.l.b16 %v3978
        %v4271 = vunpack.c.l.b16 %v3979
        %v4272 = vunpack.c.l.b16 %v3980
        %v4273 = vunpack.c.l.b16 %v3981
        %v4274 = vunpack.c.l.b16 %v3982
        %v4275 = vunpack.c.l.b16 %v3983
        %v4276 = vunpack.c.l.b16 %v3984
        %v4277 = vunpack.c.l.b16 %v3985
        %v4278 = vunpack.c.l.b16 %v3986
        %v4279 = vunpack.c.l.b16 %v3987
        %v4280 = vunpack.c.l.b16 %v3988
        %v4281 = vunpack.c.l.b16 %v3989
        %v4282 = vunpack.c.l.b16 %v3990
        %v4283 = vunpack.c.l.b16 %v3991
        %v4284 = vunpack.c.l.b16 %v3992
        %v4285 = vunpack.c.l.b16 %v3993
        %v4286 = vunpack.c.l.b16 %v3994
        %v4287 = vunpack.c.l.b16 %v3995
        %v4288 = vunpack.c.l.b16 %v3996
        %v4289 = vunpack.c.l.b16 %v3997
        %v4290 = vunpack.c.l.b16 %v3998
        %v4291 = vunpack.c.l.b16 %v3999
        %v4292 = vunpack.c.l.b16 %v4000
        %v4293 = vunpack.c.l.b16 %v4001
        %v4294 = vunpack.c.l.b16 %v4002
        %v4295 = vunpack.c.l.b16 %v4003
        %v4296 = vunpack.c.l.b16 %v4004
        %v4297 = vunpack.c.l.b16 %v4005
        %v4298 = vunpack.c.l.b16 %v4006
        %v4299 = vunpack.c.l.b16 %v4007
        %v4300 = vunpack.c.l.b16 %v4008
        %v4301 = vunpack.c.l.b16 %v4009
        %v4302 = vunpack.c.l.b16 %v4010
        %v4303 = vunpack.c.l.b16 %v4011
        %v4304 = vunpack.c.l.b16 %v4012
        %v4305 = vunpack.c.l.b16 %v4013
        %v4306 = vunpack.c.l.b16 %v4014
        %v4307 = vunpack.c.l.b16 %v4015
        %v4308 = vunpack.c.l.b16 %v4016
        %v4309 = vunpack.c.l.b16 %v4017
        %v4310 = vunpack.c.l.b16 %v4018
        %v4311 = vunpack.c.l.b16 %v4019
        %v4312 = vunpack.c.l.b16 %v4020
        %v4313 = vunpack.c.l.b16 %v4021
        %v4314 = vunpack.c.l.b16 %v4022
        %v4315 = vunpack.c.l.b16 %v4023
        %v4316 = vunpack.c.l.b16 %v4024
        %v4317 = vunpack.c.l.b16 %v4025
        %v4318 = vunpack.c.l.b16 %v4026
        %v4319 = vunpack.c.l.b16 %v4027
        %v4320 = vunpack.c.l.b16 %v4028
        %v4321 = vunpack.c.l.b16 %v4029
        %v4322 = vunpack.c.l.b16 %v4030
        %v4323 = vunpack.c.l.b16 %v4031
        %v4324 = vunpack.c.l.b16 %v4032
        %v4325 = vunpack.c.l.b16 %v4033
        %v4326 = vunpack.c.l.b16 %v4034
        %v4327 = vunpack.c.l.b16 %v4035
        %v4328 = vunpack.c.l.b16 %v4036
        %v4329 = vunpack.c.l.b16 %v4037
        %v4330 = vunpack.c.l.b16 %v4038
        %v4331 = vunpack.c.l.b16 %v4039
        %v4332 = vunpack.c.l.b16 %v4040
        %v4333 = vunpack.c.l.b16 %v4041
        %v4334 = vunpack.c.l.b16 %v4042
        %v4335 = vunpack.c.l.b16 %v4043
        %v4336 = vunpack.c.l.b16 %v4044
        %v4337 = vunpack.c.l.b16 %v4045
        %v4338 = vunpack.c.l.b16 %v4046
        %v4339 = vunpack.c.l.b16 %v4047
        %v4340 = vunpack.c.l.b16 %v4048
        %v4341 = vunpack.c.l.b16 %v4049
        %v4342 = vunpack.c.l.b16 %v4050
        %v4343 = vunpack.c.l.b16 %v4051
        %v4344 = vunpack.c.l.b16 %v4052
        %v4345 = vunpack.c.l.b16 %v4053
        %v4346 = vunpack.c.l.b16 %v4054
        %v4347 = vunpack.c.l.b16 %v4055
        %v4348 = vunpack.c.l.b16 %v4056
        %v4349 = vunpack.c.l.b16 %v4057
        %v4350 = vunpack.c.l.b16 %v4058
        %v4351 = vunpack.c.l.b16 %v4059
        %v4352 = vunpack.c.l.b16 %v4060
        %v4353 = vunpack.c.l.b16 %v4061
        %v4354 = vunpack.c.l.b16 %v4062
        %v4355 = vunpack.c.l.b16 %v4063
        %v4356 = vunpack.c.l.b16 %v4064
        %v4357 = vunpack.c.l.b16 %v4065
        %v4358 = vunpack.c.l.b16 %v4066
        %v4359 = vunpack.c.l.b16 %v4067
        %v4360 = vunpack.c.l.b16 %v4068
        %v4361 = vunpack.c.l.b16 %v4069
        %v4362 = vunpack.c.l.b16 %v4070
        %v4363 = vunpack.c.l.b16 %v4071
        %v4364 = vunpack.c.l.b16 %v4072
        %v4365 = vunpack.c.l.b16 %v4073
        %v4366 = vunpack.c.l.b16 %v4074
        %v4367 = vunpack.c.l.b16 %v4075
        %v4368 = vunpack.c.l.b16 %v4076
        %v4369 = vunpack.c.l.b16 %v4077
        %v4370 = vunpack.c.l.b16 %v4078
        %v4371 = vunpack.c.l.b16 %v4079
        %v4372 = vunpack.c.l.b16 %v4080
        %v4373 = vunpack.c.l.b16 %v4081
        %v4374 = vunpack.c.l.b16 %v4082
        %v4375 = vunpack.c.l.b16 %v4083
        %v4376 = vunpack.c.l.b16 %v4084
        %v4377 = vunpack.c.l.b16 %v4085
        %v4378 = vunpack.c.l.b16 %v4086
        %v4379 = vunpack.c.l.b16 %v4087
        %v4380 = vunpack.c.l.b16 %v4088
        %v4381 = vunpack.c.l.b16 %v4089
        %v4382 = vunpack.c.l.b16 %v4090
        %v4383 = vunpack.c.l.b16 %v4091
        %v4384 = vunpack.c.l.b16 %v4092
        %v4385 = vunpack.c.l.b16 %v4093
        %v4386 = vunpack.c.l.b16 %v4094
        %v4387 = vunpack.c.l.b16 %v4095
        %v4388 = vunpack.c.l.b16 %v4096
        %v4389 = vunpack.c.l.b16 %v4097
        %v4390 = vunpack.c.l.b16 %v4098
        %v4391 = vunpack.c.l.b16 %v4099
        %v4392 = vunpack.c.l.b16 %v4100
        %v4393 = vunpack.c.l.b16 %v4101
        %v4394 = vunpack.c.l.b16 %v4102
        %v4395 = vunpack.c.l.b16 %v4103
        %v4396 = vunpack.c.l.b16 %v4104
        %v4397 = vunpack.c.l.b16 %v4105
        %v4398 = vunpack.c.l.b16 %v4106
        %v4399 = vunpack.c.l.b16 %v4107
        %v4400 = vunpack.c.l.b16 %v4108
        %v4401 = vunpack.c.l.b16 %v4109
        %v4402 = vunpack.c.l.b16 %v4110
        %v4403 = vunpack.c.l.b16 %v4111
        %v4404 = vunpack.c.l.b16 %v4112
        %v4405 = vunpack.c.l.b16 %v4113
        %v4406 = vunpack.c.l.b16 %v4114
        %v4407 = vpack.c.b16 %v4264, %v4263
        %v4408 = vpack.c.b16 %v4266, %v4265
        %v4409 = vpack.c.b16 %v4268, %v4267
        %v4410 = vpack.c.b16 %v4270, %v4269
        %v4411 = vpack.c.b16 %v4272, %v4271
        %v4412 = vpack.c.b16 %v4274, %v4273
        %v4413 = vpack.c.b16 %v4276, %v4275
        %v4414 = vpack.c.b16 %v4278, %v4277
        %v4415 = vpack.c.b16 %v4280, %v4279
        %v4416 = vpack.c.b16 %v4282, %v4281
        %v4417 = vpack.c.b16 %v4284, %v4283
        %v4418 = vpack.c.b16 %v4286, %v4285
        %v4419 = vpack.c.b16 %v4288, %v4287
        %v4420 = vpack.c.b16 %v4290, %v4289
        %v4421 = vpack.c.b16 %v4292, %v4291
        %v4422 = vpack.c.b16 %v4294, %v4293
        %v4423 = vpack.c.b16 %v4296, %v4295
        %v4424 = vpack.c.b16 %v4298, %v4297
        %v4425 = vpack.c.b16 %v4300, %v4299
        %v4426 = vpack.c.b16 %v4302, %v4301
        %v4427 = vpack.c.b16 %v4304, %v4303
        %v4428 = vpack.c.b16 %v4306, %v4305
        %v4429 = vpack.c.b16 %v4308, %v4307
        %v4430 = vpack.c.b16 %v4310, %v4309
        %v4431 = vpack.c.b16 %v4312, %v4311
        %v4432 = vpack.c.b16 %v4314, %v4313
        %v4433 = vpack.c.b16 %v4316, %v4315
        %v4434 = vpack.c.b16 %v4318, %v4317
        %v4435 = vpack.c.b16 %v4320, %v4319
        %v4436 = vpack.c.b16 %v4322, %v4321
        %v4437 = vpack.c.b16 %v4324, %v4323
        %v4438 = vpack.c.b16 %v4326, %v4325
        %v4439 = vpack.c.b16 %v4328, %v4327
        %v4440 = vpack.c.b16 %v4330, %v4329
        %v4441 = vpack.c.b16 %v4332, %v4331
        %v4442 = vpack.c.b16 %v4334, %v4333
        %v4443 = vpack.c.b16 %v4336, %v4335
        %v4444 = vpack.c.b16 %v4338, %v4337
        %v4445 = vpack.c.b16 %v4340, %v4339
        %v4446 = vpack.c.b16 %v4342, %v4341
        %v4447 = vpack.c.b16 %v4344, %v4343
        %v4448 = vpack.c.b16 %v4346, %v4345
        %v4449 = vpack.c.b16 %v4348, %v4347
        %v4450 = vpack.c.b16 %v4350, %v4349
        %v4451 = vpack.c.b16 %v4352, %v4351
        %v4452 = vpack.c.b16 %v4354, %v4353
        %v4453 = vpack.c.b16 %v4356, %v4355
        %v4454 = vpack.c.b16 %v4358, %v4357
        %v4455 = vpack.c.b16 %v4360, %v4359
        %v4456 = vpack.c.b16 %v4362, %v4361
        %v4457 = vpack.c.b16 %v4364, %v4363
        %v4458 = vpack.c.b16 %v4366, %v4365
        %v4459 = vpack.c.b16 %v4368, %v4367
        %v4460 = vpack.c.b16 %v4370, %v4369
        %v4461 = vpack.c.b16 %v4372, %v4371
        %v4462 = vpack.c.b16 %v4374, %v4373
        %v4463 = vpack.c.b16 %v4376, %v4375
        %v4464 = vpack.c.b16 %v4378, %v4377
        %v4465 = vpack.c.b16 %v4380, %v4379
        %v4466 = vpack.c.b16 %v4382, %v4381
        %v4467 = vpack.c.b16 %v4384, %v4383
        %v4468 = vpack.c.b16 %v4386, %v4385
        %v4469 = vpack.c.b16 %v4388, %v4387
        %v4470 = vpack.c.b16 %v4390, %v4389
        %v4471 = vpack.c.b16 %v4392, %v4391
        %v4472 = vpack.c.b16 %v4394, %v4393
        %v4473 = vpack.c.b16 %v4396, %v4395
        %v4474 = vpack.c.b16 %v4398, %v4397
        %v4475 = vpack.c.b16 %v4400, %v4399
        %v4476 = vpack.c.b16 %v4402, %v4401
        %v4477 = vpack.c.b16 %v4404, %v4403
        %v4478 = vpack.c.b16 %v4406, %v4405
        %4551 = vmatpush.bf16.msra.mxu0 %v4414
        %4552 = vmatpush.bf16.msra.mxu0 %v4413
        %4553 = vmatpush.bf16.msra.mxu0 %v4412
        %4554 = vmatpush.bf16.msra.mxu0 %v4411
        %4555 = vmatpush.bf16.msra.mxu0 %v4410
        %4556 = vmatpush.bf16.msra.mxu0 %v4409
        %4557 = vmatpush.bf16.msra.mxu0 %v4408
        %4558 = vmatpush.bf16.msra.mxu0 %v4407
        %4559 = vmatmul.bf16.gmra.mxu0 %v3567
        %v4560 = vpop.f32.mrf.mxu0
        %v4561 = vadd.f32 %v4117, %v4560
        %v4562 = vpop.f32.mrf.mxu0
        %v4563 = vadd.f32 %v4117, %v4562
        %4564 = vmatmul.bf16.gmra.mxu0 %v3568
        %v4565 = vpop.f32.mrf.mxu0
        %v4566 = vadd.f32 %v4117, %v4565
        %v4567 = vpop.f32.mrf.mxu0
        %v4568 = vadd.f32 %v4117, %v4567
        %4569 = vmatmul.bf16.gmra.mxu0 %v3569
        %v4570 = vpop.f32.mrf.mxu0
        %v4571 = vadd.f32 %v4117, %v4570
        %v4572 = vpop.f32.mrf.mxu0
        %v4573 = vadd.f32 %v4117, %v4572
        %4574 = vmatmul.bf16.gmra.mxu0 %v3570
        %v4575 = vpop.f32.mrf.mxu0
        %v4576 = vadd.f32 %v4117, %v4575
        %v4577 = vpop.f32.mrf.mxu0
        %v4578 = vadd.f32 %v4117, %v4577
        %4579 = vmatmul.bf16.gmra.mxu0 %v3571
        %v4580 = vpop.f32.mrf.mxu0
        %v4581 = vadd.f32 %v4117, %v4580
        %v4582 = vpop.f32.mrf.mxu0
        %v4583 = vadd.f32 %v4117, %v4582
        %4584 = vmatmul.bf16.gmra.mxu0 %v3572
        %v4585 = vpop.f32.mrf.mxu0
        %v4586 = vadd.f32 %v4117, %v4585
        %v4587 = vpop.f32.mrf.mxu0
        %v4588 = vadd.f32 %v4117, %v4587
        %4589 = vmatmul.bf16.gmra.mxu0 %v3573
        %v4590 = vpop.f32.mrf.mxu0
        %v4591 = vadd.f32 %v4117, %v4590
        %v4592 = vpop.f32.mrf.mxu0
        %v4593 = vadd.f32 %v4117, %v4592
        %4594 = vmatmul.bf16.gmra.mxu0 %v3574
        %v4595 = vpop.f32.mrf.mxu0
        %v4596 = vadd.f32 %v4117, %v4595
        %v4597 = vpop.f32.mrf.mxu0
        %v4598 = vadd.f32 %v4117, %v4597
        %4599 = vmatmul.bf16.gmra.mxu0 %v3575
        %v4600 = vpop.f32.mrf.mxu0
        %v4601 = vadd.f32 %v4117, %v4600
        %v4602 = vpop.f32.mrf.mxu0
        %v4603 = vadd.f32 %v4117, %v4602
        %4604 = vmatmul.bf16.gmra.mxu0 %v3576
        %v4605 = vpop.f32.mrf.mxu0
        %v4606 = vadd.f32 %v4117, %v4605
        %v4607 = vpop.f32.mrf.mxu0
        %v4608 = vadd.f32 %v4117, %v4607
        %4609 = vmatmul.bf16.gmra.mxu0 %v3577
        %v4610 = vpop.f32.mrf.mxu0
        %v4611 = vadd.f32 %v4117, %v4610
        %v4612 = vpop.f32.mrf.mxu0
        %v4613 = vadd.f32 %v4117, %v4612
        %4614 = vmatmul.bf16.gmra.mxu0 %v3578
        %v4615 = vpop.f32.mrf.mxu0
        %v4616 = vadd.f32 %v4117, %v4615
        %v4617 = vpop.f32.mrf.mxu0
        %v4618 = vadd.f32 %v4117, %v4617
        %4619 = vmatmul.bf16.gmra.mxu0 %v3579
        %v4620 = vpop.f32.mrf.mxu0
        %v4621 = vadd.f32 %v4117, %v4620
        %v4622 = vpop.f32.mrf.mxu0
        %v4623 = vadd.f32 %v4117, %v4622
        %4624 = vmatmul.bf16.gmra.mxu0 %v3580
        %v4625 = vpop.f32.mrf.mxu0
        %v4626 = vadd.f32 %v4117, %v4625
        %v4627 = vpop.f32.mrf.mxu0
        %v4628 = vadd.f32 %v4117, %v4627
        %4629 = vmatmul.bf16.gmra.mxu0 %v3581
        %v4630 = vpop.f32.mrf.mxu0
        %v4631 = vadd.f32 %v4117, %v4630
        %v4632 = vpop.f32.mrf.mxu0
        %v4633 = vadd.f32 %v4117, %v4632
        %4634 = vmatmul.bf16.gmra.mxu0 %v3582
        %v4635 = vpop.f32.mrf.mxu0
        %v4636 = vadd.f32 %v4117, %v4635
        %v4637 = vpop.f32.mrf.mxu0
        %v4638 = vadd.f32 %v4117, %v4637
        %4639 = vdwg.mxu0
        %4640 = vmatpush.bf16.msra.mxu0 %v4422
        %4641 = vmatpush.bf16.msra.mxu0 %v4421
        %4642 = vmatpush.bf16.msra.mxu0 %v4420
        %4643 = vmatpush.bf16.msra.mxu0 %v4419
        %4644 = vmatpush.bf16.msra.mxu0 %v4418
        %4645 = vmatpush.bf16.msra.mxu0 %v4417
        %4646 = vmatpush.bf16.msra.mxu0 %v4416
        %4647 = vmatpush.bf16.msra.mxu0 %v4415
        %4648 = vmatmul.bf16.gmra.mxu0 %v3658
        %v4649 = vpop.f32.mrf.mxu0
        %v4650 = vadd.f32 %v4561, %v4649
        %v4651 = vpop.f32.mrf.mxu0
        %v4652 = vadd.f32 %v4563, %v4651
        %4653 = vmatmul.bf16.gmra.mxu0 %v3670
        %v4654 = vpop.f32.mrf.mxu0
        %v4655 = vadd.f32 %v4566, %v4654
        %v4656 = vpop.f32.mrf.mxu0
        %v4657 = vadd.f32 %v4568, %v4656
        %4658 = vmatmul.bf16.gmra.mxu0 %v3682
        %v4659 = vpop.f32.mrf.mxu0
        %v4660 = vadd.f32 %v4571, %v4659
        %v4661 = vpop.f32.mrf.mxu0
        %v4662 = vadd.f32 %v4573, %v4661
        %4663 = vmatmul.bf16.gmra.mxu0 %v3694
        %v4664 = vpop.f32.mrf.mxu0
        %v4665 = vadd.f32 %v4576, %v4664
        %v4666 = vpop.f32.mrf.mxu0
        %v4667 = vadd.f32 %v4578, %v4666
        %4668 = vmatmul.bf16.gmra.mxu0 %v3706
        %v4669 = vpop.f32.mrf.mxu0
        %v4670 = vadd.f32 %v4581, %v4669
        %v4671 = vpop.f32.mrf.mxu0
        %v4672 = vadd.f32 %v4583, %v4671
        %4673 = vmatmul.bf16.gmra.mxu0 %v3718
        %v4674 = vpop.f32.mrf.mxu0
        %v4675 = vadd.f32 %v4586, %v4674
        %v4676 = vpop.f32.mrf.mxu0
        %v4677 = vadd.f32 %v4588, %v4676
        %4678 = vmatmul.bf16.gmra.mxu0 %v3730
        %v4679 = vpop.f32.mrf.mxu0
        %v4680 = vadd.f32 %v4591, %v4679
        %v4681 = vpop.f32.mrf.mxu0
        %v4682 = vadd.f32 %v4593, %v4681
        %4683 = vmatmul.bf16.gmra.mxu0 %v3742
        %v4684 = vpop.f32.mrf.mxu0
        %v4685 = vadd.f32 %v4596, %v4684
        %v4686 = vpop.f32.mrf.mxu0
        %v4687 = vadd.f32 %v4598, %v4686
        %4688 = vmatmul.bf16.gmra.mxu0 %v3754
        %v4689 = vpop.f32.mrf.mxu0
        %v4690 = vadd.f32 %v4601, %v4689
        %v4691 = vpop.f32.mrf.mxu0
        %v4692 = vadd.f32 %v4603, %v4691
        %4693 = vmatmul.bf16.gmra.mxu0 %v3766
        %v4694 = vpop.f32.mrf.mxu0
        %v4695 = vadd.f32 %v4606, %v4694
        %v4696 = vpop.f32.mrf.mxu0
        %v4697 = vadd.f32 %v4608, %v4696
        %4698 = vmatmul.bf16.gmra.mxu0 %v3778
        %v4699 = vpop.f32.mrf.mxu0
        %v4700 = vadd.f32 %v4611, %v4699
        %v4701 = vpop.f32.mrf.mxu0
        %v4702 = vadd.f32 %v4613, %v4701
        %4703 = vmatmul.bf16.gmra.mxu0 %v3790
        %v4704 = vpop.f32.mrf.mxu0
        %v4705 = vadd.f32 %v4616, %v4704
        %v4706 = vpop.f32.mrf.mxu0
        %v4707 = vadd.f32 %v4618, %v4706
        %4708 = vmatmul.bf16.gmra.mxu0 %v3802
        %v4709 = vpop.f32.mrf.mxu0
        %v4710 = vadd.f32 %v4621, %v4709
        %v4711 = vpop.f32.mrf.mxu0
        %v4712 = vadd.f32 %v4623, %v4711
        %4713 = vmatmul.bf16.gmra.mxu0 %v3814
        %v4714 = vpop.f32.mrf.mxu0
        %v4715 = vadd.f32 %v4626, %v4714
        %v4716 = vpop.f32.mrf.mxu0
        %v4717 = vadd.f32 %v4628, %v4716
        %4718 = vmatmul.bf16.gmra.mxu0 %v3826
        %v4719 = vpop.f32.mrf.mxu0
        %v4720 = vadd.f32 %v4631, %v4719
        %v4721 = vpop.f32.mrf.mxu0
        %v4722 = vadd.f32 %v4633, %v4721
        %4723 = vmatmul.bf16.gmra.mxu0 %v3838
        %v4724 = vpop.f32.mrf.mxu0
        %v4725 = vadd.f32 %v4636, %v4724
        %v4726 = vpop.f32.mrf.mxu0
        %v4727 = vadd.f32 %v4638, %v4726
        %4728 = vdwg.mxu0
        %4729 = vmatpush.bf16.msra.mxu0 %v4430
        %4730 = vmatpush.bf16.msra.mxu0 %v4429
        %4731 = vmatpush.bf16.msra.mxu0 %v4428
        %4732 = vmatpush.bf16.msra.mxu0 %v4427
        %4733 = vmatpush.bf16.msra.mxu0 %v4426
        %4734 = vmatpush.bf16.msra.mxu0 %v4425
        %4735 = vmatpush.bf16.msra.mxu0 %v4424
        %4736 = vmatpush.bf16.msra.mxu0 %v4423
        %4737 = vmatmul.bf16.gmra.mxu0 %v3857
        %v4738 = vpop.f32.mrf.mxu0
        %v4739 = vadd.f32 %v4650, %v4738
        %v4740 = vpop.f32.mrf.mxu0
        %v4741 = vadd.f32 %v4652, %v4740
        %4742 = vmatmul.bf16.gmra.mxu0 %v3860
        %v4743 = vpop.f32.mrf.mxu0
        %v4744 = vadd.f32 %v4655, %v4743
        %v4745 = vpop.f32.mrf.mxu0
        %v4746 = vadd.f32 %v4657, %v4745
        %4747 = vmatmul.bf16.gmra.mxu0 %v3863
        %v4748 = vpop.f32.mrf.mxu0
        %v4749 = vadd.f32 %v4660, %v4748
        %v4750 = vpop.f32.mrf.mxu0
        %v4751 = vadd.f32 %v4662, %v4750
        %4752 = vmatmul.bf16.gmra.mxu0 %v3866
        %v4753 = vpop.f32.mrf.mxu0
        %v4754 = vadd.f32 %v4665, %v4753
        %v4755 = vpop.f32.mrf.mxu0
        %v4756 = vadd.f32 %v4667, %v4755
        %4757 = vmatmul.bf16.gmra.mxu0 %v3869
        %v4758 = vpop.f32.mrf.mxu0
        %v4759 = vadd.f32 %v4670, %v4758
        %v4760 = vpop.f32.mrf.mxu0
        %v4761 = vadd.f32 %v4672, %v4760
        %4762 = vmatmul.bf16.gmra.mxu0 %v3872
        %v4763 = vpop.f32.mrf.mxu0
        %v4764 = vadd.f32 %v4675, %v4763
        %v4765 = vpop.f32.mrf.mxu0
        %v4766 = vadd.f32 %v4677, %v4765
        %4767 = vmatmul.bf16.gmra.mxu0 %v3875
        %v4768 = vpop.f32.mrf.mxu0
        %v4769 = vadd.f32 %v4680, %v4768
        %v4770 = vpop.f32.mrf.mxu0
        %v4771 = vadd.f32 %v4682, %v4770
        %4772 = vmatmul.bf16.gmra.mxu0 %v3878
        %v4773 = vpop.f32.mrf.mxu0
        %v4774 = vadd.f32 %v4685, %v4773
        %v4775 = vpop.f32.mrf.mxu0
        %v4776 = vadd.f32 %v4687, %v4775
        %4777 = vmatmul.bf16.gmra.mxu0 %v3881
        %v4778 = vpop.f32.mrf.mxu0
        %v4779 = vadd.f32 %v4690, %v4778
        %v4780 = vpop.f32.mrf.mxu0
        %v4781 = vadd.f32 %v4692, %v4780
        %4782 = vmatmul.bf16.gmra.mxu0 %v3884
        %v4783 = vpop.f32.mrf.mxu0
        %v4784 = vadd.f32 %v4695, %v4783
        %v4785 = vpop.f32.mrf.mxu0
        %v4786 = vadd.f32 %v4697, %v4785
        %4787 = vmatmul.bf16.gmra.mxu0 %v3887
        %v4788 = vpop.f32.mrf.mxu0
        %v4789 = vadd.f32 %v4700, %v4788
        %v4790 = vpop.f32.mrf.mxu0
        %v4791 = vadd.f32 %v4702, %v4790
        %4792 = vmatmul.bf16.gmra.mxu0 %v3890
        %v4793 = vpop.f32.mrf.mxu0
        %v4794 = vadd.f32 %v4705, %v4793
        %v4795 = vpop.f32.mrf.mxu0
        %v4796 = vadd.f32 %v4707, %v4795
        %4797 = vmatmul.bf16.gmra.mxu0 %v3893
        %v4798 = vpop.f32.mrf.mxu0
        %v4799 = vadd.f32 %v4710, %v4798
        %v4800 = vpop.f32.mrf.mxu0
        %v4801 = vadd.f32 %v4712, %v4800
        %4802 = vmatmul.bf16.gmra.mxu0 %v3896
        %v4803 = vpop.f32.mrf.mxu0
        %v4804 = vadd.f32 %v4715, %v4803
        %v4805 = vpop.f32.mrf.mxu0
        %v4806 = vadd.f32 %v4717, %v4805
        %4807 = vmatmul.bf16.gmra.mxu0 %v3899
        %v4808 = vpop.f32.mrf.mxu0
        %v4809 = vadd.f32 %v4720, %v4808
        %v4810 = vpop.f32.mrf.mxu0
        %v4811 = vadd.f32 %v4722, %v4810
        %4812 = vmatmul.bf16.gmra.mxu0 %v3902
        %v4813 = vpop.f32.mrf.mxu0
        %v4814 = vadd.f32 %v4725, %v4813
        %v4815 = vpop.f32.mrf.mxu0
        %v4816 = vadd.f32 %v4727, %v4815
        %4817 = vdwg.mxu0
        %4818 = vmatpush.bf16.msra.mxu0 %v4438
        %4819 = vmatpush.bf16.msra.mxu0 %v4437
        %4820 = vmatpush.bf16.msra.mxu0 %v4436
        %4821 = vmatpush.bf16.msra.mxu0 %v4435
        %4822 = vmatpush.bf16.msra.mxu0 %v4434
        %4823 = vmatpush.bf16.msra.mxu0 %v4433
        %4824 = vmatpush.bf16.msra.mxu0 %v4432
        %4825 = vmatpush.bf16.msra.mxu0 %v4431
        %4826 = vmatmul.bf16.gmra.mxu0 %v3568
        %v4827 = vpop.f32.mrf.mxu0
        %v4828 = vadd.f32 %v4739, %v4827
        %v4829 = vpop.f32.mrf.mxu0
        %v4830 = vadd.f32 %v4741, %v4829
        %4831 = vmatmul.bf16.gmra.mxu0 %v3569
        %v4832 = vpop.f32.mrf.mxu0
        %v4833 = vadd.f32 %v4744, %v4832
        %v4834 = vpop.f32.mrf.mxu0
        %v4835 = vadd.f32 %v4746, %v4834
        %4836 = vmatmul.bf16.gmra.mxu0 %v3570
        %v4837 = vpop.f32.mrf.mxu0
        %v4838 = vadd.f32 %v4749, %v4837
        %v4839 = vpop.f32.mrf.mxu0
        %v4840 = vadd.f32 %v4751, %v4839
        %4841 = vmatmul.bf16.gmra.mxu0 %v3571
        %v4842 = vpop.f32.mrf.mxu0
        %v4843 = vadd.f32 %v4754, %v4842
        %v4844 = vpop.f32.mrf.mxu0
        %v4845 = vadd.f32 %v4756, %v4844
        %4846 = vmatmul.bf16.gmra.mxu0 %v3572
        %v4847 = vpop.f32.mrf.mxu0
        %v4848 = vadd.f32 %v4759, %v4847
        %v4849 = vpop.f32.mrf.mxu0
        %v4850 = vadd.f32 %v4761, %v4849
        %4851 = vmatmul.bf16.gmra.mxu0 %v3573
        %v4852 = vpop.f32.mrf.mxu0
        %v4853 = vadd.f32 %v4764, %v4852
        %v4854 = vpop.f32.mrf.mxu0
        %v4855 = vadd.f32 %v4766, %v4854
        %4856 = vmatmul.bf16.gmra.mxu0 %v3574
        %v4857 = vpop.f32.mrf.mxu0
        %v4858 = vadd.f32 %v4769, %v4857
        %v4859 = vpop.f32.mrf.mxu0
        %v4860 = vadd.f32 %v4771, %v4859
        %4861 = vmatmul.bf16.gmra.mxu0 %v3575
        %v4862 = vpop.f32.mrf.mxu0
        %v4863 = vadd.f32 %v4774, %v4862
        %v4864 = vpop.f32.mrf.mxu0
        %v4865 = vadd.f32 %v4776, %v4864
        %4866 = vmatmul.bf16.gmra.mxu0 %v3576
        %v4867 = vpop.f32.mrf.mxu0
        %v4868 = vadd.f32 %v4779, %v4867
        %v4869 = vpop.f32.mrf.mxu0
        %v4870 = vadd.f32 %v4781, %v4869
        %4871 = vmatmul.bf16.gmra.mxu0 %v3577
        %v4872 = vpop.f32.mrf.mxu0
        %v4873 = vadd.f32 %v4784, %v4872
        %v4874 = vpop.f32.mrf.mxu0
        %v4875 = vadd.f32 %v4786, %v4874
        %4876 = vmatmul.bf16.gmra.mxu0 %v3578
        %v4877 = vpop.f32.mrf.mxu0
        %v4878 = vadd.f32 %v4789, %v4877
        %v4879 = vpop.f32.mrf.mxu0
        %v4880 = vadd.f32 %v4791, %v4879
        %4881 = vmatmul.bf16.gmra.mxu0 %v3579
        %v4882 = vpop.f32.mrf.mxu0
        %v4883 = vadd.f32 %v4794, %v4882
        %v4884 = vpop.f32.mrf.mxu0
        %v4885 = vadd.f32 %v4796, %v4884
        %4886 = vmatmul.bf16.gmra.mxu0 %v3580
        %v4887 = vpop.f32.mrf.mxu0
        %v4888 = vadd.f32 %v4799, %v4887
        %v4889 = vpop.f32.mrf.mxu0
        %v4890 = vadd.f32 %v4801, %v4889
        %4891 = vmatmul.bf16.gmra.mxu0 %v3581
        %v4892 = vpop.f32.mrf.mxu0
        %v4893 = vadd.f32 %v4804, %v4892
        %v4894 = vpop.f32.mrf.mxu0
        %v4895 = vadd.f32 %v4806, %v4894
        %4896 = vmatmul.bf16.gmra.mxu0 %v3582
        %v4897 = vpop.f32.mrf.mxu0
        %v4898 = vadd.f32 %v4809, %v4897
        %v4899 = vpop.f32.mrf.mxu0
        %v4900 = vadd.f32 %v4811, %v4899
        %4901 = vmatmul.bf16.gmra.mxu0 %v3923
        %v4902 = vpop.f32.mrf.mxu0
        %v4903 = vadd.f32 %v4814, %v4902
        %v4904 = vpop.f32.mrf.mxu0
        %v4905 = vadd.f32 %v4816, %v4904
        %4906 = vdwg.mxu0
        %4907 = vmatpush.bf16.msra.mxu0 %v4446
        %4908 = vmatpush.bf16.msra.mxu0 %v4445
        %4909 = vmatpush.bf16.msra.mxu0 %v4444
        %4910 = vmatpush.bf16.msra.mxu0 %v4443
        %4911 = vmatpush.bf16.msra.mxu0 %v4442
        %4912 = vmatpush.bf16.msra.mxu0 %v4441
        %4913 = vmatpush.bf16.msra.mxu0 %v4440
        %4914 = vmatpush.bf16.msra.mxu0 %v4439
        %4915 = vmatmul.bf16.gmra.mxu0 %v3670
        %v4916 = vpop.f32.mrf.mxu0
        %v4917 = vadd.f32 %v4828, %v4916
        %v4918 = vpop.f32.mrf.mxu0
        %v4919 = vadd.f32 %v4830, %v4918
        %4920 = vmatmul.bf16.gmra.mxu0 %v3682
        %v4921 = vpop.f32.mrf.mxu0
        %v4922 = vadd.f32 %v4833, %v4921
        %v4923 = vpop.f32.mrf.mxu0
        %v4924 = vadd.f32 %v4835, %v4923
        %4925 = vmatmul.bf16.gmra.mxu0 %v3694
        %v4926 = vpop.f32.mrf.mxu0
        %v4927 = vadd.f32 %v4838, %v4926
        %v4928 = vpop.f32.mrf.mxu0
        %v4929 = vadd.f32 %v4840, %v4928
        %4930 = vmatmul.bf16.gmra.mxu0 %v3706
        %v4931 = vpop.f32.mrf.mxu0
        %v4932 = vadd.f32 %v4843, %v4931
        %v4933 = vpop.f32.mrf.mxu0
        %v4934 = vadd.f32 %v4845, %v4933
        %4935 = vmatmul.bf16.gmra.mxu0 %v3718
        %v4936 = vpop.f32.mrf.mxu0
        %v4937 = vadd.f32 %v4848, %v4936
        %v4938 = vpop.f32.mrf.mxu0
        %v4939 = vadd.f32 %v4850, %v4938
        %4940 = vmatmul.bf16.gmra.mxu0 %v3730
        %v4941 = vpop.f32.mrf.mxu0
        %v4942 = vadd.f32 %v4853, %v4941
        %v4943 = vpop.f32.mrf.mxu0
        %v4944 = vadd.f32 %v4855, %v4943
        %4945 = vmatmul.bf16.gmra.mxu0 %v3742
        %v4946 = vpop.f32.mrf.mxu0
        %v4947 = vadd.f32 %v4858, %v4946
        %v4948 = vpop.f32.mrf.mxu0
        %v4949 = vadd.f32 %v4860, %v4948
        %4950 = vmatmul.bf16.gmra.mxu0 %v3754
        %v4951 = vpop.f32.mrf.mxu0
        %v4952 = vadd.f32 %v4863, %v4951
        %v4953 = vpop.f32.mrf.mxu0
        %v4954 = vadd.f32 %v4865, %v4953
        %4955 = vmatmul.bf16.gmra.mxu0 %v3766
        %v4956 = vpop.f32.mrf.mxu0
        %v4957 = vadd.f32 %v4868, %v4956
        %v4958 = vpop.f32.mrf.mxu0
        %v4959 = vadd.f32 %v4870, %v4958
        %4960 = vmatmul.bf16.gmra.mxu0 %v3778
        %v4961 = vpop.f32.mrf.mxu0
        %v4962 = vadd.f32 %v4873, %v4961
        %v4963 = vpop.f32.mrf.mxu0
        %v4964 = vadd.f32 %v4875, %v4963
        %4965 = vmatmul.bf16.gmra.mxu0 %v3790
        %v4966 = vpop.f32.mrf.mxu0
        %v4967 = vadd.f32 %v4878, %v4966
        %v4968 = vpop.f32.mrf.mxu0
        %v4969 = vadd.f32 %v4880, %v4968
        %4970 = vmatmul.bf16.gmra.mxu0 %v3802
        %v4971 = vpop.f32.mrf.mxu0
        %v4972 = vadd.f32 %v4883, %v4971
        %v4973 = vpop.f32.mrf.mxu0
        %v4974 = vadd.f32 %v4885, %v4973
        %4975 = vmatmul.bf16.gmra.mxu0 %v3814
        %v4976 = vpop.f32.mrf.mxu0
        %v4977 = vadd.f32 %v4888, %v4976
        %v4978 = vpop.f32.mrf.mxu0
        %v4979 = vadd.f32 %v4890, %v4978
        %4980 = vmatmul.bf16.gmra.mxu0 %v3826
        %v4981 = vpop.f32.mrf.mxu0
        %v4982 = vadd.f32 %v4893, %v4981
        %v4983 = vpop.f32.mrf.mxu0
        %v4984 = vadd.f32 %v4895, %v4983
        %4985 = vmatmul.bf16.gmra.mxu0 %v3838
        %v4986 = vpop.f32.mrf.mxu0
        %v4987 = vadd.f32 %v4898, %v4986
        %v4988 = vpop.f32.mrf.mxu0
        %v4989 = vadd.f32 %v4900, %v4988
        %4990 = vmatmul.bf16.gmra.mxu0 %v3939
        %v4991 = vpop.f32.mrf.mxu0
        %v4992 = vadd.f32 %v4903, %v4991
        %v4993 = vpop.f32.mrf.mxu0
        %v4994 = vadd.f32 %v4905, %v4993
        %4995 = vdwg.mxu0
        %4996 = vmatpush.bf16.msra.mxu0 %v4454
        %4997 = vmatpush.bf16.msra.mxu0 %v4453
        %4998 = vmatpush.bf16.msra.mxu0 %v4452
        %4999 = vmatpush.bf16.msra.mxu0 %v4451
        %5000 = vmatpush.bf16.msra.mxu0 %v4450
        %5001 = vmatpush.bf16.msra.mxu0 %v4449
        %5002 = vmatpush.bf16.msra.mxu0 %v4448
        %5003 = vmatpush.bf16.msra.mxu0 %v4447
        %5004 = vmatmul.bf16.gmra.mxu0 %v3860
        %v5005 = vpop.f32.mrf.mxu0
        %v5006 = vadd.f32 %v4917, %v5005
        %v5007 = vpop.f32.mrf.mxu0
        %v5008 = vadd.f32 %v4919, %v5007
        %5009 = vmatmul.bf16.gmra.mxu0 %v3863
        %v5010 = vpop.f32.mrf.mxu0
        %v5011 = vadd.f32 %v4922, %v5010
        %v5012 = vpop.f32.mrf.mxu0
        %v5013 = vadd.f32 %v4924, %v5012
        %5014 = vmatmul.bf16.gmra.mxu0 %v3866
        %v5015 = vpop.f32.mrf.mxu0
        %v5016 = vadd.f32 %v4927, %v5015
        %v5017 = vpop.f32.mrf.mxu0
        %v5018 = vadd.f32 %v4929, %v5017
        %5019 = vmatmul.bf16.gmra.mxu0 %v3869
        %v5020 = vpop.f32.mrf.mxu0
        %v5021 = vadd.f32 %v4932, %v5020
        %v5022 = vpop.f32.mrf.mxu0
        %v5023 = vadd.f32 %v4934, %v5022
        %5024 = vmatmul.bf16.gmra.mxu0 %v3872
        %v5025 = vpop.f32.mrf.mxu0
        %v5026 = vadd.f32 %v4937, %v5025
        %v5027 = vpop.f32.mrf.mxu0
        %v5028 = vadd.f32 %v4939, %v5027
        %5029 = vmatmul.bf16.gmra.mxu0 %v3875
        %v5030 = vpop.f32.mrf.mxu0
        %v5031 = vadd.f32 %v4942, %v5030
        %v5032 = vpop.f32.mrf.mxu0
        %v5033 = vadd.f32 %v4944, %v5032
        %5034 = vmatmul.bf16.gmra.mxu0 %v3878
        %v5035 = vpop.f32.mrf.mxu0
        %v5036 = vadd.f32 %v4947, %v5035
        %v5037 = vpop.f32.mrf.mxu0
        %v5038 = vadd.f32 %v4949, %v5037
        %5039 = vmatmul.bf16.gmra.mxu0 %v3881
        %v5040 = vpop.f32.mrf.mxu0
        %v5041 = vadd.f32 %v4952, %v5040
        %v5042 = vpop.f32.mrf.mxu0
        %v5043 = vadd.f32 %v4954, %v5042
        %5044 = vmatmul.bf16.gmra.mxu0 %v3884
        %v5045 = vpop.f32.mrf.mxu0
        %v5046 = vadd.f32 %v4957, %v5045
        %v5047 = vpop.f32.mrf.mxu0
        %v5048 = vadd.f32 %v4959, %v5047
        %5049 = vmatmul.bf16.gmra.mxu0 %v3887
        %v5050 = vpop.f32.mrf.mxu0
        %v5051 = vadd.f32 %v4962, %v5050
        %v5052 = vpop.f32.mrf.mxu0
        %v5053 = vadd.f32 %v4964, %v5052
        %5054 = vmatmul.bf16.gmra.mxu0 %v3890
        %v5055 = vpop.f32.mrf.mxu0
        %v5056 = vadd.f32 %v4967, %v5055
        %v5057 = vpop.f32.mrf.mxu0
        %v5058 = vadd.f32 %v4969, %v5057
        %5059 = vmatmul.bf16.gmra.mxu0 %v3893
        %v5060 = vpop.f32.mrf.mxu0
        %v5061 = vadd.f32 %v4972, %v5060
        %v5062 = vpop.f32.mrf.mxu0
        %v5063 = vadd.f32 %v4974, %v5062
        %5064 = vmatmul.bf16.gmra.mxu0 %v3896
        %v5065 = vpop.f32.mrf.mxu0
        %v5066 = vadd.f32 %v4977, %v5065
        %v5067 = vpop.f32.mrf.mxu0
        %v5068 = vadd.f32 %v4979, %v5067
        %5069 = vmatmul.bf16.gmra.mxu0 %v3899
        %v5070 = vpop.f32.mrf.mxu0
        %v5071 = vadd.f32 %v4982, %v5070
        %v5072 = vpop.f32.mrf.mxu0
        %v5073 = vadd.f32 %v4984, %v5072
        %5074 = vmatmul.bf16.gmra.mxu0 %v3902
        %v5075 = vpop.f32.mrf.mxu0
        %v5076 = vadd.f32 %v4987, %v5075
        %v5077 = vpop.f32.mrf.mxu0
        %v5078 = vadd.f32 %v4989, %v5077
        %5079 = vmatmul.bf16.gmra.mxu0 %v3943
        %v5080 = vpop.f32.mrf.mxu0
        %v5081 = vadd.f32 %v4992, %v5080
        %v5082 = vpop.f32.mrf.mxu0
        %v5083 = vadd.f32 %v4994, %v5082
        %5084 = vdwg.mxu0
        %5085 = vmatpush.bf16.msra.mxu0 %v4462
        %5086 = vmatpush.bf16.msra.mxu0 %v4461
        %5087 = vmatpush.bf16.msra.mxu0 %v4460
        %5088 = vmatpush.bf16.msra.mxu0 %v4459
        %5089 = vmatpush.bf16.msra.mxu0 %v4458
        %5090 = vmatpush.bf16.msra.mxu0 %v4457
        %5091 = vmatpush.bf16.msra.mxu0 %v4456
        %5092 = vmatpush.bf16.msra.mxu0 %v4455
        %5093 = vmatmul.bf16.gmra.mxu0 %v3569
        %v5094 = vpop.f32.mrf.mxu0
        %v5095 = vadd.f32 %v5006, %v5094
        %v5096 = vpop.f32.mrf.mxu0
        %v5097 = vadd.f32 %v5008, %v5096
        %5098 = vmatmul.bf16.gmra.mxu0 %v3570
        %v5099 = vpop.f32.mrf.mxu0
        %v5100 = vadd.f32 %v5011, %v5099
        %v5101 = vpop.f32.mrf.mxu0
        %v5102 = vadd.f32 %v5013, %v5101
        %5103 = vmatmul.bf16.gmra.mxu0 %v3571
        %v5104 = vpop.f32.mrf.mxu0
        %v5105 = vadd.f32 %v5016, %v5104
        %v5106 = vpop.f32.mrf.mxu0
        %v5107 = vadd.f32 %v5018, %v5106
        %5108 = vmatmul.bf16.gmra.mxu0 %v3572
        %v5109 = vpop.f32.mrf.mxu0
        %v5110 = vadd.f32 %v5021, %v5109
        %v5111 = vpop.f32.mrf.mxu0
        %v5112 = vadd.f32 %v5023, %v5111
        %5113 = vmatmul.bf16.gmra.mxu0 %v3573
        %v5114 = vpop.f32.mrf.mxu0
        %v5115 = vadd.f32 %v5026, %v5114
        %v5116 = vpop.f32.mrf.mxu0
        %v5117 = vadd.f32 %v5028, %v5116
        %5118 = vmatmul.bf16.gmra.mxu0 %v3574
        %v5119 = vpop.f32.mrf.mxu0
        %v5120 = vadd.f32 %v5031, %v5119
        %v5121 = vpop.f32.mrf.mxu0
        %v5122 = vadd.f32 %v5033, %v5121
        %5123 = vmatmul.bf16.gmra.mxu0 %v3575
        %v5124 = vpop.f32.mrf.mxu0
        %v5125 = vadd.f32 %v5036, %v5124
        %v5126 = vpop.f32.mrf.mxu0
        %v5127 = vadd.f32 %v5038, %v5126
        %5128 = vmatmul.bf16.gmra.mxu0 %v3576
        %v5129 = vpop.f32.mrf.mxu0
        %v5130 = vadd.f32 %v5041, %v5129
        %v5131 = vpop.f32.mrf.mxu0
        %v5132 = vadd.f32 %v5043, %v5131
        %5133 = vmatmul.bf16.gmra.mxu0 %v3577
        %v5134 = vpop.f32.mrf.mxu0
        %v5135 = vadd.f32 %v5046, %v5134
        %v5136 = vpop.f32.mrf.mxu0
        %v5137 = vadd.f32 %v5048, %v5136
        %5138 = vmatmul.bf16.gmra.mxu0 %v3578
        %v5139 = vpop.f32.mrf.mxu0
        %v5140 = vadd.f32 %v5051, %v5139
        %v5141 = vpop.f32.mrf.mxu0
        %v5142 = vadd.f32 %v5053, %v5141
        %5143 = vmatmul.bf16.gmra.mxu0 %v3579
        %v5144 = vpop.f32.mrf.mxu0
        %v5145 = vadd.f32 %v5056, %v5144
        %v5146 = vpop.f32.mrf.mxu0
        %v5147 = vadd.f32 %v5058, %v5146
        %5148 = vmatmul.bf16.gmra.mxu0 %v3580
        %v5149 = vpop.f32.mrf.mxu0
        %v5150 = vadd.f32 %v5061, %v5149
        %v5151 = vpop.f32.mrf.mxu0
        %v5152 = vadd.f32 %v5063, %v5151
        %5153 = vmatmul.bf16.gmra.mxu0 %v3581
        %v5154 = vpop.f32.mrf.mxu0
        %v5155 = vadd.f32 %v5066, %v5154
        %v5156 = vpop.f32.mrf.mxu0
        %v5157 = vadd.f32 %v5068, %v5156
        %5158 = vmatmul.bf16.gmra.mxu0 %v3582
        %v5159 = vpop.f32.mrf.mxu0
        %v5160 = vadd.f32 %v5071, %v5159
        %v5161 = vpop.f32.mrf.mxu0
        %v5162 = vadd.f32 %v5073, %v5161
        %5163 = vmatmul.bf16.gmra.mxu0 %v3923
        %v5164 = vpop.f32.mrf.mxu0
        %v5165 = vadd.f32 %v5076, %v5164
        %v5166 = vpop.f32.mrf.mxu0
        %v5167 = vadd.f32 %v5078, %v5166
        %5168 = vmatmul.bf16.gmra.mxu0 %v3949
        %v5169 = vpop.f32.mrf.mxu0
        %v5170 = vadd.f32 %v5081, %v5169
        %v5171 = vpop.f32.mrf.mxu0
        %v5172 = vadd.f32 %v5083, %v5171
        %5173 = vdwg.mxu0
        %5174 = vmatpush.bf16.msra.mxu0 %v4470
        %5175 = vmatpush.bf16.msra.mxu0 %v4469
        %5176 = vmatpush.bf16.msra.mxu0 %v4468
        %5177 = vmatpush.bf16.msra.mxu0 %v4467
        %5178 = vmatpush.bf16.msra.mxu0 %v4466
        %5179 = vmatpush.bf16.msra.mxu0 %v4465
        %5180 = vmatpush.bf16.msra.mxu0 %v4464
        %5181 = vmatpush.bf16.msra.mxu0 %v4463
        %5182 = vmatmul.bf16.gmra.mxu0 %v3682
        %v5183 = vpop.f32.mrf.mxu0
        %v5184 = vadd.f32 %v5095, %v5183
        %v5185 = vpop.f32.mrf.mxu0
        %v5186 = vadd.f32 %v5097, %v5185
        %5187 = vmatmul.bf16.gmra.mxu0 %v3694
        %v5188 = vpop.f32.mrf.mxu0
        %v5189 = vadd.f32 %v5100, %v5188
        %v5190 = vpop.f32.mrf.mxu0
        %v5191 = vadd.f32 %v5102, %v5190
        %5192 = vmatmul.bf16.gmra.mxu0 %v3706
        %v5193 = vpop.f32.mrf.mxu0
        %v5194 = vadd.f32 %v5105, %v5193
        %v5195 = vpop.f32.mrf.mxu0
        %v5196 = vadd.f32 %v5107, %v5195
        %5197 = vmatmul.bf16.gmra.mxu0 %v3718
        %v5198 = vpop.f32.mrf.mxu0
        %v5199 = vadd.f32 %v5110, %v5198
        %v5200 = vpop.f32.mrf.mxu0
        %v5201 = vadd.f32 %v5112, %v5200
        %5202 = vmatmul.bf16.gmra.mxu0 %v3730
        %v5203 = vpop.f32.mrf.mxu0
        %v5204 = vadd.f32 %v5115, %v5203
        %v5205 = vpop.f32.mrf.mxu0
        %v5206 = vadd.f32 %v5117, %v5205
        %5207 = vmatmul.bf16.gmra.mxu0 %v3742
        %v5208 = vpop.f32.mrf.mxu0
        %v5209 = vadd.f32 %v5120, %v5208
        %v5210 = vpop.f32.mrf.mxu0
        %v5211 = vadd.f32 %v5122, %v5210
        %5212 = vmatmul.bf16.gmra.mxu0 %v3754
        %v5213 = vpop.f32.mrf.mxu0
        %v5214 = vadd.f32 %v5125, %v5213
        %v5215 = vpop.f32.mrf.mxu0
        %v5216 = vadd.f32 %v5127, %v5215
        %5217 = vmatmul.bf16.gmra.mxu0 %v3766
        %v5218 = vpop.f32.mrf.mxu0
        %v5219 = vadd.f32 %v5130, %v5218
        %v5220 = vpop.f32.mrf.mxu0
        %v5221 = vadd.f32 %v5132, %v5220
        %5222 = vmatmul.bf16.gmra.mxu0 %v3778
        %v5223 = vpop.f32.mrf.mxu0
        %v5224 = vadd.f32 %v5135, %v5223
        %v5225 = vpop.f32.mrf.mxu0
        %v5226 = vadd.f32 %v5137, %v5225
        %5227 = vmatmul.bf16.gmra.mxu0 %v3790
        %v5228 = vpop.f32.mrf.mxu0
        %v5229 = vadd.f32 %v5140, %v5228
        %v5230 = vpop.f32.mrf.mxu0
        %v5231 = vadd.f32 %v5142, %v5230
        %5232 = vmatmul.bf16.gmra.mxu0 %v3802
        %v5233 = vpop.f32.mrf.mxu0
        %v5234 = vadd.f32 %v5145, %v5233
        %v5235 = vpop.f32.mrf.mxu0
        %v5236 = vadd.f32 %v5147, %v5235
        %5237 = vmatmul.bf16.gmra.mxu0 %v3814
        %v5238 = vpop.f32.mrf.mxu0
        %v5239 = vadd.f32 %v5150, %v5238
        %v5240 = vpop.f32.mrf.mxu0
        %v5241 = vadd.f32 %v5152, %v5240
        %5242 = vmatmul.bf16.gmra.mxu0 %v3826
        %v5243 = vpop.f32.mrf.mxu0
        %v5244 = vadd.f32 %v5155, %v5243
        %v5245 = vpop.f32.mrf.mxu0
        %v5246 = vadd.f32 %v5157, %v5245
        %5247 = vmatmul.bf16.gmra.mxu0 %v3838
        %v5248 = vpop.f32.mrf.mxu0
        %v5249 = vadd.f32 %v5160, %v5248
        %v5250 = vpop.f32.mrf.mxu0
        %v5251 = vadd.f32 %v5162, %v5250
        %5252 = vmatmul.bf16.gmra.mxu0 %v3939
        %v5253 = vpop.f32.mrf.mxu0
        %v5254 = vadd.f32 %v5165, %v5253
        %v5255 = vpop.f32.mrf.mxu0
        %v5256 = vadd.f32 %v5167, %v5255
        %5257 = vmatmul.bf16.gmra.mxu0 %v3965
        %v5258 = vpop.f32.mrf.mxu0
        %v5259 = vadd.f32 %v5170, %v5258
        %v5260 = vpop.f32.mrf.mxu0
        %v5261 = vadd.f32 %v5172, %v5260
        %5262 = vdwg.mxu0
        %5263 = vmatpush.bf16.msra.mxu0 %v4478
        %5264 = vmatpush.bf16.msra.mxu0 %v4477
        %5265 = vmatpush.bf16.msra.mxu0 %v4476
        %5266 = vmatpush.bf16.msra.mxu0 %v4475
        %5267 = vmatpush.bf16.msra.mxu0 %v4474
        %5268 = vmatpush.bf16.msra.mxu0 %v4473
        %5269 = vmatpush.bf16.msra.mxu0 %v4472
        %5270 = vmatpush.bf16.msra.mxu0 %v4471
        %5271 = vmatmul.bf16.gmra.mxu0 %v3863
        %v5272 = vpop.f32.mrf.mxu0
        %v5273 = vadd.f32 %v5184, %v5272
        %v5274 = vpop.f32.mrf.mxu0
        %v5275 = vadd.f32 %v5186, %v5274
        %5276 = vmatmul.bf16.gmra.mxu0 %v3866
        %v5277 = vpop.f32.mrf.mxu0
        %v5278 = vadd.f32 %v5189, %v5277
        %v5279 = vpop.f32.mrf.mxu0
        %v5280 = vadd.f32 %v5191, %v5279
        %5281 = vmatmul.bf16.gmra.mxu0 %v3869
        %v5282 = vpop.f32.mrf.mxu0
        %v5283 = vadd.f32 %v5194, %v5282
        %v5284 = vpop.f32.mrf.mxu0
        %v5285 = vadd.f32 %v5196, %v5284
        %5286 = vmatmul.bf16.gmra.mxu0 %v3872
        %v5287 = vpop.f32.mrf.mxu0
        %v5288 = vadd.f32 %v5199, %v5287
        %v5289 = vpop.f32.mrf.mxu0
        %v5290 = vadd.f32 %v5201, %v5289
        %5291 = vmatmul.bf16.gmra.mxu0 %v3875
        %v5292 = vpop.f32.mrf.mxu0
        %v5293 = vadd.f32 %v5204, %v5292
        %v5294 = vpop.f32.mrf.mxu0
        %v5295 = vadd.f32 %v5206, %v5294
        %5296 = vmatmul.bf16.gmra.mxu0 %v3878
        %v5297 = vpop.f32.mrf.mxu0
        %v5298 = vadd.f32 %v5209, %v5297
        %v5299 = vpop.f32.mrf.mxu0
        %v5300 = vadd.f32 %v5211, %v5299
        %5301 = vmatmul.bf16.gmra.mxu0 %v3881
        %v5302 = vpop.f32.mrf.mxu0
        %v5303 = vadd.f32 %v5214, %v5302
        %v5304 = vpop.f32.mrf.mxu0
        %v5305 = vadd.f32 %v5216, %v5304
        %5306 = vmatmul.bf16.gmra.mxu0 %v3884
        %v5307 = vpop.f32.mrf.mxu0
        %v5308 = vadd.f32 %v5219, %v5307
        %v5309 = vpop.f32.mrf.mxu0
        %v5310 = vadd.f32 %v5221, %v5309
        %5311 = vmatmul.bf16.gmra.mxu0 %v3887
        %v5312 = vpop.f32.mrf.mxu0
        %v5313 = vadd.f32 %v5224, %v5312
        %v5314 = vpop.f32.mrf.mxu0
        %v5315 = vadd.f32 %v5226, %v5314
        %5316 = vmatmul.bf16.gmra.mxu0 %v3890
        %v5317 = vpop.f32.mrf.mxu0
        %v5318 = vadd.f32 %v5229, %v5317
        %v5319 = vpop.f32.mrf.mxu0
        %v5320 = vadd.f32 %v5231, %v5319
        %5321 = vmatmul.bf16.gmra.mxu0 %v3893
        %v5322 = vpop.f32.mrf.mxu0
        %v5323 = vadd.f32 %v5234, %v5322
        %v5324 = vpop.f32.mrf.mxu0
        %v5325 = vadd.f32 %v5236, %v5324
        %5326 = vmatmul.bf16.gmra.mxu0 %v3896
        %v5327 = vpop.f32.mrf.mxu0
        %v5328 = vadd.f32 %v5239, %v5327
        %v5329 = vpop.f32.mrf.mxu0
        %v5330 = vadd.f32 %v5241, %v5329
        %5331 = vmatmul.bf16.gmra.mxu0 %v3899
        %v5332 = vpop.f32.mrf.mxu0
        %v5333 = vadd.f32 %v5244, %v5332
        %v5334 = vpop.f32.mrf.mxu0
        %v5335 = vadd.f32 %v5246, %v5334
        %5336 = vmatmul.bf16.gmra.mxu0 %v3902
        %v5337 = vpop.f32.mrf.mxu0
        %v5338 = vadd.f32 %v5249, %v5337
        %v5339 = vpop.f32.mrf.mxu0
        %v5340 = vadd.f32 %v5251, %v5339
        %5341 = vmatmul.bf16.gmra.mxu0 %v3943
        %v5342 = vpop.f32.mrf.mxu0
        %v5343 = vadd.f32 %v5254, %v5342
        %v5344 = vpop.f32.mrf.mxu0
        %v5345 = vadd.f32 %v5256, %v5344
        %5346 = vmatmul.bf16.gmra.mxu0 %v3969
        %v5347 = vpop.f32.mrf.mxu0
        %v5348 = vadd.f32 %v5259, %v5347
        %v5349 = vpop.f32.mrf.mxu0
        %v5350 = vadd.f32 %v5261, %v5349
        %5351 = vdwg.mxu0
        %v5352 = vadd.f32 %v5273, %v514
        %v5353 = vadd.f32 %v5275, %v515
        %v5354 = vadd.f32 %v5278, %v516
        %v5355 = vadd.f32 %v5280, %v517
        %v5356 = vadd.f32 %v5283, %v518
        %v5357 = vadd.f32 %v5285, %v519
        %v5358 = vadd.f32 %v5288, %v520
        %v5359 = vadd.f32 %v5290, %v521
        %v5360 = vadd.f32 %v5293, %v522
        %v5361 = vadd.f32 %v5295, %v523
        %v5362 = vadd.f32 %v5298, %v524
        %v5363 = vadd.f32 %v5300, %v525
        %v5364 = vadd.f32 %v5303, %v526
        %v5365 = vadd.f32 %v5305, %v527
        %v5366 = vadd.f32 %v5308, %v528
        %v5367 = vadd.f32 %v5310, %v529
        %v5368 = vadd.f32 %v5313, %v530
        %v5369 = vadd.f32 %v5315, %v531
        %v5370 = vadd.f32 %v5318, %v532
        %v5371 = vadd.f32 %v5320, %v533
        %v5372 = vadd.f32 %v5323, %v534
        %v5373 = vadd.f32 %v5325, %v535
        %v5374 = vadd.f32 %v5328, %v536
        %v5375 = vadd.f32 %v5330, %v537
        %v5376 = vadd.f32 %v5333, %v538
        %v5377 = vadd.f32 %v5335, %v539
        %v5378 = vadd.f32 %v5338, %v540
        %v5379 = vadd.f32 %v5340, %v541
        %v5380 = vadd.f32 %v5343, %v542
        %v5381 = vadd.f32 %v5345, %v543
        %v5382 = vadd.f32 %v5348, %v544
        %v5383 = vadd.f32 %v5350, %v545
        %5384 = vst [vmem:[%s277] sm:$0xff] %v5352
        %5385 = vst [vmem:[%s277 + $0x8] sm:$0xff] %v5353
        %5386 = vst [vmem:[%s277 + $0x10] sm:$0xff] %v5354
        %5387 = vst [vmem:[%s277 + $0x18] sm:$0xff] %v5355
        %5388 = vst [vmem:[%s277 + $0x20] sm:$0xff] %v5356
        %5389 = vst [vmem:[%s277 + $0x28] sm:$0xff] %v5357
        %5390 = vst [vmem:[%s277 + $0x30] sm:$0xff] %v5358
        %5391 = vst [vmem:[%s277 + $0x38] sm:$0xff] %v5359
        %5392 = vst [vmem:[%s277 + $0x40] sm:$0xff] %v5360
        %5393 = vst [vmem:[%s277 + $0x48] sm:$0xff] %v5361
        %5394 = vst [vmem:[%s277 + $0x50] sm:$0xff] %v5362
        %5395 = vst [vmem:[%s277 + $0x58] sm:$0xff] %v5363
        %5396 = vst [vmem:[%s277 + $0x60] sm:$0xff] %v5364
        %5397 = vst [vmem:[%s277 + $0x68] sm:$0xff] %v5365
        %5398 = vst [vmem:[%s277 + $0x70] sm:$0xff] %v5366
        %5399 = vst [vmem:[%s277 + $0x78] sm:$0xff] %v5367
        %5400 = vst [vmem:[%s277 + $0x80] sm:$0xff] %v5368
        %5401 = vst [vmem:[%s277 + $0x88] sm:$0xff] %v5369
        %5402 = vst [vmem:[%s277 + $0x90] sm:$0xff] %v5370
        %5403 = vst [vmem:[%s277 + $0x98] sm:$0xff] %v5371
        %5404 = vst [vmem:[%s277 + $0xa0] sm:$0xff] %v5372
        %5405 = vst [vmem:[%s277 + $0xa8] sm:$0xff] %v5373
        %5406 = vst [vmem:[%s277 + $0xb0] sm:$0xff] %v5374
        %5407 = vst [vmem:[%s277 + $0xb8] sm:$0xff] %v5375
        %5408 = vst [vmem:[%s277 + $0xc0] sm:$0xff] %v5376
        %5409 = vst [vmem:[%s277 + $0xc8] sm:$0xff] %v5377
        %5410 = vst [vmem:[%s277 + $0xd0] sm:$0xff] %v5378
        %5411 = vst [vmem:[%s277 + $0xd8] sm:$0xff] %v5379
        %5412 = vst [vmem:[%s277 + $0xe0] sm:$0xff] %v5380
        %5413 = vst [vmem:[%s277 + $0xe8] sm:$0xff] %v5381
        %5414 = vst [vmem:[%s277 + $0xf0] sm:$0xff] %v5382
        %5415 = vst [vmem:[%s277 + $0xf8] sm:$0xff] %v5383
        %s5416 = sand.u32 %s141, 1
        %s5417 = scalar_lea.sflag [#allocation6], %s5416
        %s5418 = sand.u32 %s141, 1
        %s5419 = smul.addr %s5418, 256
        %s5420 = scalar_lea.vmem [#allocation10], %s5419
        // Predicated region
        $region53: #{tpu_custom_call.1} parent=39 // pred_check
          %p5421 = pneg %p151
        $region54: #{tpu_custom_call.1} parent=39 // pred_check_branch
          %5423 = sbr.rel (%p5421) target = $region56
        $region55: #{tpu_custom_call.1} parent=39 // pred_region
          %5425 = vsyncadd %s5417, 0
          %s5426 = smul.addr %s23, 32
          %s5427 = smul.addr %s5426, 8
          %s5428 = scalar_lea.hbm %s5, %s5427
          %s5429 = sshll.u32 %s5420, 4
          %s5430 = int_to_ptr.vmem [resolvable:$true] %s5429
          %s5431 = sshll.u32 %s5428, 4
          %s5432 = int_to_ptr.hbm [resolvable:$true] %s5431
          %5437 = dma.vmem_to_hbm [thread:$0]  %s5430, 4096, %s5432, %s5417, 128, 128, 8
        $region56: #{tpu_custom_call.1} parent=39 // pred_fallthru
          _
      $region40: #{tpu_custom_call.1} parent=5 // pred_fallthru
        _
      %p5438 = scmp.le.s32.totalorder 2, %s18
      // Predicated region
      $region57: #{tpu_custom_call.1} parent=5 // pred_check
        %p5439 = pneg %p5438
      $region58: #{tpu_custom_call.1} parent=5 // pred_check_branch
        %5441 = sbr.rel (%p5439) target = $region60
      $region59: #{tpu_custom_call.1} parent=5 // pred_region
        %s5442 = ssub.s32 %s18, 2
        // Predicated region
        $region61: #{tpu_custom_call.1} parent=59 // pred_check
          %p5443 = pneg %p157
        $region62: #{tpu_custom_call.1} parent=59 // pred_check_branch
          %5445 = sbr.rel (%p5443) target = $region64
        $region63: #{tpu_custom_call.1} parent=59 // pred_region
          %s5446 = sand.u32 %s142, 1
          %s5447 = scalar_lea.sflag [#allocation6], %s5446
          %s5448 = sand.u32 %s142, 1
          %s5449 = smul.addr %s5448, 256
          %s5450 = scalar_lea.vmem [#allocation10], %s5449
          %5452 = dma.done %s5447, 4096
        $region64: #{tpu_custom_call.1} parent=59 // pred_fallthru
          _
      $region60: #{tpu_custom_call.1} parent=5 // pred_fallthru
        _
    $region6: #{tpu_custom_call.1} parent=1 // loop_footer
      %s22 = sadd.s32 1, %s18
    $region7: #{tpu_custom_call.1} parent=1 // loop_footer_branch
      %17 = sbr.rel target = $region3
    $region8: #{tpu_custom_call.1} parent=1 // loop_exit
      _
    %5453 = vsyncpa [#allocation5], 1
    %s5454 = scalar_lea.sflag [#allocation5], 1
    %5455 = vsyncpa %s5454, 1
    %5456 = vsyncpa [#allocation8], 1
    %5457 = vsyncpa [#allocation6], 1
    %s5458 = scalar_lea.sflag [#allocation6], 1
    %5459 = vsyncpa %s5458, 1

</llo_original>
